<compile_context>
chip_gen: v6e
topology: v6e:2x2x1
jax: 0.10.0
libtpu: 0.0.40
codegen_flags: <defaults>
</compile_context>

<pallas_src>
import jax
import jax.numpy as jnp
from jax.experimental import pallas as pl
from jax.experimental.pallas import tpu as pltpu

HIDDEN = 128
D_FEAT = 6
D_PAD = 8     # pad GRU feature dim 6 -> 8 (padded input cols and weight rows are zero)
L1_OUT = 256


def make_actor_kernel(max_action, T, B, H):
    def sig(x):
        # logistic sigmoid via the tanh identity: single EUP op instead of exp+divide
        return 0.5 * jnp.tanh(0.5 * x) + 0.5

    def gru_gates(gx, gh, h, bhn):
        # PyTorch GRU cell gate math. b_hh r/z slices are pre-folded into gx in the
        # wrapper; b_hn must stay inside r * (.) per PyTorch semantics.
        r = sig(gx[:, :H] + gh[:, :H])
        z = sig(gx[:, H:2 * H] + gh[:, H:2 * H])
        n = jnp.tanh(gx[:, 2 * H:] + r * (gh[:, 2 * H:] + bhn))
        return n + z * (h - n)          # == (1-z)*n + z*h, one fewer VALU op

    def actor_kernel(feat_ref, xt_ref,
                     wih0_ref, bx0_ref, bhn0_ref,
                     w0f_ref, bx1_ref, bhn1_ref, whh1_ref,
                     head1_hbm, head3_hbm,
                     out_ref,
                     gx_ref, h1w_ref, h3w_ref, sem):
        # ---- Kick off head-weight DMAs; they complete under the recurrence. ----
        cp1 = pltpu.make_async_copy(head1_hbm, h1w_ref, sem.at[0])
        cp3 = pltpu.make_async_copy(head3_hbm, h3w_ref, sem.at[1])
        cp1.start()
        cp3.start()

        # ---- Batched layer-0 input projection gx0 = feat @ wih0^T + bx0 ----
        # Split so the t=0 rows are ready first (step 0 only needs gx[0:B]).
        wih0 = wih0_ref[...]
        bx0 = bx0_ref[...]
        gx_ref[0:B, :] = (
            jnp.dot(feat_ref[0:B, :], wih0, preferred_element_type=jnp.float32) + bx0)
        gx_ref[B:T * B, :] = (
            jnp.dot(feat_ref[B:T * B, :], wih0, preferred_element_type=jnp.float32) + bx0)

        w0f = w0f_ref[...]          # (H, 6H) bf16 = [whh0^T | wih1^T]
        whh1 = whh1_ref[...]        # (H, 3H) bf16
        bx1 = bx1_ref[...]
        bhn0 = bhn0_ref[...]
        bhn1 = bhn1_ref[...]

        h0 = jnp.zeros((B, H), jnp.float32)
        h1 = jnp.zeros((B, H), jnp.float32)
        gh0 = jnp.zeros((B, 3 * H), jnp.float32)    # h0_init @ whh0^T == 0
        gh1 = jnp.zeros((B, 3 * H), jnp.float32)    # h1_init @ whh1^T == 0

        # Wavefront over both GRU layers: layer-1 step t consumes the just-updated
        # h0[t]; layer-1 work for t < T-1 pipelines under layer-0's next step.
        for t in range(T):                           # static unroll, T small
            gx0 = gx_ref[t * B:(t + 1) * B, :]
            h0 = gru_gates(gx0, gh0, h0, bhn0)

            h0b = h0.astype(jnp.bfloat16)
            if t < T - 1:
                # one fused MXU issue: [gh0_{t+1} | gx1_t]
                fused = jnp.dot(h0b, w0f, preferred_element_type=jnp.float32)
                gh0 = fused[:, :3 * H]
                gx1 = fused[:, 3 * H:] + bx1
            else:
                # last step: next-step gh0 not needed
                gx1 = jnp.dot(h0b, w0f[:, 3 * H:],
                              preferred_element_type=jnp.float32) + bx1

            h1 = gru_gates(gx1, gh1, h1, bhn1)
            if t < T - 1:
                gh1 = jnp.dot(h1.astype(jnp.bfloat16), whh1,
                              preferred_element_type=jnp.float32)

        # ---- Head: l1(concat[h1, xt]) -> relu -> l3 -> tanh ----
        cp1.wait()
        cp3.wait()
        w1a = h1w_ref[0:H, :]                 # (128, 256) GRU-output part of l1.weight^T
        w1b = h1w_ref[H:H + 1, :]             # (1, 256)   xt part of l1.weight^T
        b1 = h1w_ref[136:137, :]              # (1, 256)
        a = jnp.dot(h1, w1a, preferred_element_type=jnp.float32)
        a = a + xt_ref[...] * w1b + b1
        a = jnp.maximum(a, 0.0)               # relu
        w3 = h3w_ref[0:L1_OUT, :]             # (256, A_PAD)
        b3 = h3w_ref[L1_OUT:L1_OUT + 1, :]    # (1, A_PAD)
        y = jnp.dot(a, w3, preferred_element_type=jnp.float32) + b3
        out_ref[...] = max_action * jnp.tanh(y)   # lane-dense unmasked store

    return actor_kernel


def init_actor_params(key, action_dim, hidden=HIDDEN, d_feat=D_FEAT):
    ks = jax.random.split(key, 12)
    s = 0.1
    p = {
        "wih0": jax.random.normal(ks[0], (3 * hidden, d_feat)) * s,
        "whh0": jax.random.normal(ks[1], (3 * hidden, hidden)) * s,
        "bih0": jax.random.normal(ks[2], (3 * hidden,)) * s,
        "bhh0": jax.random.normal(ks[3], (3 * hidden,)) * s,
        "wih1": jax.random.normal(ks[4], (3 * hidden, hidden)) * s,
        "whh1": jax.random.normal(ks[5], (3 * hidden, hidden)) * s,
        "bih1": jax.random.normal(ks[6], (3 * hidden,)) * s,
        "bhh1": jax.random.normal(ks[7], (3 * hidden,)) * s,
        "w1": jax.random.normal(ks[8], (256, hidden + 1)) * s,   # l1.weight
        "b1": jax.random.normal(ks[9], (256,)) * s,
        "w3": jax.random.normal(ks[10], (action_dim, 256)) * s,  # l3.weight
        "b3": jax.random.normal(ks[11], (action_dim,)) * s,
    }
    return jax.tree_util.tree_map(lambda x: x.astype(jnp.float32), p)


def _merge_gru_biases(bih, bhh, hidden):
    """Fold b_hh r/z slices into the batched-gx bias; keep b_hn separate (n-gate)."""
    bx = jnp.concatenate([bih[:2 * hidden] + bhh[:2 * hidden], bih[2 * hidden:]])[None, :]
    bhn = bhh[2 * hidden:][None, :]
    return bx, bhn


def actor_forward_pallas(state, params, action_dim, max_action):
    B, S = state.shape
    T = (S - 1) // D_FEAT
    H = HIDDEN

    # GRUModel glue (reshape/permute), same as torch: (B, 6, T) -> (B, T, 6)
    feature = state[:, :-1].reshape(B, D_FEAT, T).transpose(0, 2, 1)   # (B, T, 6)
    xt = state[:, -1:]                                                 # (B, 1)
    feat = jnp.transpose(feature, (1, 0, 2))                           # (T, B, 6) time-major
    feat = jnp.pad(feat, ((0, 0), (0, 0), (0, D_PAD - D_FEAT)))        # (T, B, 8)
    feat2d = feat.reshape(T * B, D_PAD)                                # (T*B, 8) lane-dense slab

    # Layer-0 input projection weight (K=8 matmul, one-shot) stays f32.
    wih0_t = jnp.pad(params["wih0"].T, ((0, D_PAD - D_FEAT), (0, 0)))  # (8, 384)
    bx0, bhn0 = _merge_gru_biases(params["bih0"], params["bhh0"], H)   # (1,384), (1,128)
    bx1, bhn1 = _merge_gru_biases(params["bih1"], params["bhh1"], H)

    # Fused per-step weight (bf16): h0 @ [whh0^T | wih1^T] -> [gh0_next | gx1_t]
    w0f = jnp.concatenate([params["whh0"].T, params["wih1"].T],
                          axis=1).astype(jnp.bfloat16)                 # (128, 768)
    whh1_t = params["whh1"].T.astype(jnp.bfloat16)                     # (128, 384)

    # Head weights packed into sublane-aligned slabs; DMA'd manually inside the kernel.
    a_pad = max(128, ((action_dim + 127) // 128) * 128)
    w1_t = params["w1"].T                                              # (129, 256)
    head1 = jnp.zeros((144, L1_OUT), jnp.float32)
    head1 = head1.at[:H, :].set(w1_t[:H, :])          # rows 0..127: w1a
    head1 = head1.at[H, :].set(w1_t[H, :])            # row 128:     w1b
    head1 = head1.at[136, :].set(params["b1"])        # row 136:     b1
    head3 = jnp.zeros((L1_OUT + 8, a_pad), jnp.float32)
    head3 = head3.at[:L1_OUT, :action_dim].set(params["w3"].T)   # rows 0..255: w3^T (lane-padded)
    head3 = head3.at[L1_OUT, :action_dim].set(params["b3"])      # row 256:     b3

    args = (feat2d, xt, wih0_t, bx0, bhn0, w0f, bx1, bhn1, whh1_t, head1, head3)

    vmem = pl.BlockSpec(memory_space=pltpu.MemorySpace.VMEM)
    anyspace = pl.BlockSpec(memory_space=pl.ANY)
    out_padded = pl.pallas_call(
        make_actor_kernel(max_action, T, B, H),
        out_shape=jax.ShapeDtypeStruct((B, a_pad), jnp.float32),
        in_specs=[vmem] * 9 + [anyspace, anyspace],
        out_specs=vmem,
        scratch_shapes=[
            pltpu.VMEM((T * B, 3 * H), jnp.float32),        # batched gx0 slab
            pltpu.VMEM((144, L1_OUT), jnp.float32),         # head1 DMA landing buffer
            pltpu.VMEM((L1_OUT + 8, a_pad), jnp.float32),   # head3 DMA landing buffer
            pltpu.SemaphoreType.DMA((2,)),
        ],
    )(*args)
    return out_padded[:, :action_dim]


def actor_forward_ref(state, params, max_action):
    """Pure-JAX f32 reference mirroring the PyTorch forward."""
    B, S = state.shape
    T = (S - 1) // D_FEAT
    feature = state[:, :-1].reshape(B, D_FEAT, T).transpose(0, 2, 1)
    xt = state[:, -1:]
    H = HIDDEN

    def cell(x, h, wih, whh, bih, bhh):
        gx = x @ wih.T + bih
        gh = h @ whh.T + bhh
        r = jax.nn.sigmoid(gx[:, :H] + gh[:, :H])
        z = jax.nn.sigmoid(gx[:, H:2 * H] + gh[:, H:2 * H])
        n = jnp.tanh(gx[:, 2 * H:] + r * gh[:, 2 * H:])
        return (1.0 - z) * n + z * h

    h0 = jnp.zeros((B, H), jnp.float32)
    h1 = jnp.zeros((B, H), jnp.float32)
    for t in range(T):
        x_t = feature[:, t, :]
        h0 = cell(x_t, h0, params["wih0"], params["whh0"], params["bih0"], params["bhh0"])
        h1 = cell(h0, h1, params["wih1"], params["whh1"], params["bih1"], params["bhh1"])
    ret = jnp.concatenate([h1, xt], axis=1)
    a = jax.nn.relu(ret @ params["w1"].T + params["b1"])
    return max_action * jnp.tanh(a @ params["w3"].T + params["b3"])


if __name__ == "__main__":
    B = 8          # batch
    T = 8          # GRU sequence length
    action_dim = 3
    max_action = 1.0
    state_dim = D_FEAT * T + 1   # 49

    key = jax.random.PRNGKey(0)
    k_state, k_params = jax.random.split(key)
    state = jax.random.normal(k_state, (B, state_dim), dtype=jnp.float32)
    params = init_actor_params(k_params, action_dim)

    out = actor_forward_pallas(state, params, action_dim, max_action)
    out = jax.block_until_ready(out)

    ref = actor_forward_ref(state, params, max_action)
    assert out.shape == (B, action_dim)
    # bf16 recurrent matmuls -> relaxed tolerance vs. the f32 reference.
    assert jnp.allclose(out, ref, atol=2e-2, rtol=2e-2), (out, ref)

    print("KERNEL_OK")
</pallas_src>

<mosaic_0001>
module attributes {stable_mosaic.version = 11 : i64} {
  func.func @actor_kernel(%arg0: memref<64x8xf32, #tpu.memory_space<vmem>>, %arg1: memref<8x1xf32, #tpu.memory_space<vmem>>, %arg2: memref<8x384xf32, #tpu.memory_space<vmem>>, %arg3: memref<1x384xf32, #tpu.memory_space<vmem>>, %arg4: memref<1x128xf32, #tpu.memory_space<vmem>>, %arg5: memref<128x768xbf16, #tpu.memory_space<vmem>>, %arg6: memref<1x384xf32, #tpu.memory_space<vmem>>, %arg7: memref<1x128xf32, #tpu.memory_space<vmem>>, %arg8: memref<128x384xbf16, #tpu.memory_space<vmem>>, %arg9: memref<144x256xf32, #tpu.memory_space<any>>, %arg10: memref<264x128xf32, #tpu.memory_space<any>>, %arg11: memref<8x128xf32, #tpu.memory_space<vmem>>, %arg12: memref<64x384xf32, #tpu.memory_space<vmem>>, %arg13: memref<144x256xf32, #tpu.memory_space<vmem>>, %arg14: memref<264x128xf32, #tpu.memory_space<vmem>>, %arg15: memref<2x!tpu.dma_semaphore, #tpu.memory_space<semaphore_mem>>) attributes {dimension_semantics = [], scalar_prefetch = 0 : i64, scratch_operands = 4 : i64, tpu.core_type = #tpu.core_type<tc>} {
    %c0_i32 = arith.constant 0 : i32
    %0 = tpu.memref_slice %arg15[%c0_i32] : memref<2x!tpu.dma_semaphore, #tpu.memory_space<semaphore_mem>> -> memref<1x!tpu.dma_semaphore, #tpu.memory_space<semaphore_mem>>
    %1 = tpu.memref_squeeze %0 : memref<1x!tpu.dma_semaphore, #tpu.memory_space<semaphore_mem>> -> memref<!tpu.dma_semaphore, #tpu.memory_space<semaphore_mem>>
    tpu.enqueue_dma source(%arg9 : memref<144x256xf32, #tpu.memory_space<any>>) target(%arg13 : memref<144x256xf32, #tpu.memory_space<vmem>>) target_semaphore(%1 : memref<!tpu.dma_semaphore, #tpu.memory_space<semaphore_mem>>)
    %c1_i32 = arith.constant 1 : i32
    %2 = tpu.memref_slice %arg15[%c1_i32] : memref<2x!tpu.dma_semaphore, #tpu.memory_space<semaphore_mem>> -> memref<1x!tpu.dma_semaphore, #tpu.memory_space<semaphore_mem>>
    %3 = tpu.memref_squeeze %2 : memref<1x!tpu.dma_semaphore, #tpu.memory_space<semaphore_mem>> -> memref<!tpu.dma_semaphore, #tpu.memory_space<semaphore_mem>>
    tpu.enqueue_dma source(%arg10 : memref<264x128xf32, #tpu.memory_space<any>>) target(%arg14 : memref<264x128xf32, #tpu.memory_space<vmem>>) target_semaphore(%3 : memref<!tpu.dma_semaphore, #tpu.memory_space<semaphore_mem>>)
    %c0 = arith.constant 0 : index
    %c0_0 = arith.constant 0 : index
    %4 = vector.load %arg2[%c0, %c0_0] : memref<8x384xf32, #tpu.memory_space<vmem>>, vector<8x384xf32>
    %c0_1 = arith.constant 0 : index
    %c0_2 = arith.constant 0 : index
    %5 = vector.load %arg3[%c0_1, %c0_2] : memref<1x384xf32, #tpu.memory_space<vmem>>, vector<1x384xf32>
    %c0_3 = arith.constant 0 : index
    %c0_4 = arith.constant 0 : index
    %6 = vector.load %arg0[%c0_3, %c0_4] : memref<64x8xf32, #tpu.memory_space<vmem>>, vector<8x8xf32>
    %cst = arith.constant dense<0.000000e+00> : vector<8x384xf32>
    %7 = tpu.matmul %6, %4, %cst {dimension_numbers = #tpu.dot_dimension_numbers<[1], [0], [0], [1], [0, 0, 1, 1], [], []>} : vector<8x8xf32>, vector<8x384xf32>, vector<8x384xf32> -> vector<8x384xf32>
    %8 = vector.broadcast %5 : vector<1x384xf32> to vector<8x384xf32>
    %9 = arith.addf %7, %8 : vector<8x384xf32>
    %c0_5 = arith.constant 0 : index
    %c0_6 = arith.constant 0 : index
    %10 = vector.load %arg12[%c0_5, %c0_6] : memref<64x384xf32, #tpu.memory_space<vmem>>, vector<8x384xf32>
    tpu.vector_store %arg12[%c0_5, %c0_6], %9 {strides = array<i32>} : memref<64x384xf32, #tpu.memory_space<vmem>>, vector<8x384xf32>,
    %c8 = arith.constant 8 : index
    %c0_7 = arith.constant 0 : index
    %11 = vector.load %arg0[%c8, %c0_7] : memref<64x8xf32, #tpu.memory_space<vmem>>, vector<56x8xf32>
    %cst_8 = arith.constant dense<0.000000e+00> : vector<56x384xf32>
    %12 = tpu.matmul %11, %4, %cst_8 {dimension_numbers = #tpu.dot_dimension_numbers<[1], [0], [0], [1], [0, 0, 1, 1], [], []>} : vector<56x8xf32>, vector<8x384xf32>, vector<56x384xf32> -> vector<56x384xf32>
    %13 = vector.broadcast %5 : vector<1x384xf32> to vector<56x384xf32>
    %14 = arith.addf %12, %13 : vector<56x384xf32>
    %c8_9 = arith.constant 8 : index
    %c0_10 = arith.constant 0 : index
    %15 = vector.load %arg12[%c8_9, %c0_10] : memref<64x384xf32, #tpu.memory_space<vmem>>, vector<56x384xf32>
    tpu.vector_store %arg12[%c8_9, %c0_10], %14 {strides = array<i32>} : memref<64x384xf32, #tpu.memory_space<vmem>>, vector<56x384xf32>,
    %c0_11 = arith.constant 0 : index
    %c0_12 = arith.constant 0 : index
    %16 = vector.load %arg5[%c0_11, %c0_12] : memref<128x768xbf16, #tpu.memory_space<vmem>>, vector<128x768xbf16>
    %c0_13 = arith.constant 0 : index
    %c0_14 = arith.constant 0 : index
    %17 = vector.load %arg8[%c0_13, %c0_14] : memref<128x384xbf16, #tpu.memory_space<vmem>>, vector<128x384xbf16>
    %c0_15 = arith.constant 0 : index
    %c0_16 = arith.constant 0 : index
    %18 = vector.load %arg6[%c0_15, %c0_16] : memref<1x384xf32, #tpu.memory_space<vmem>>, vector<1x384xf32>
    %c0_17 = arith.constant 0 : index
    %c0_18 = arith.constant 0 : index
    %19 = vector.load %arg4[%c0_17, %c0_18] : memref<1x128xf32, #tpu.memory_space<vmem>>, vector<1x128xf32>
    %c0_19 = arith.constant 0 : index
    %c0_20 = arith.constant 0 : index
    %20 = vector.load %arg7[%c0_19, %c0_20] : memref<1x128xf32, #tpu.memory_space<vmem>>, vector<1x128xf32>
    %cst_21 = arith.constant 0.000000e+00 : f32
    %21 = vector.broadcast %cst_21 : f32 to vector<8x128xf32>
    %cst_22 = arith.constant 0.000000e+00 : f32
    %22 = vector.broadcast %cst_22 : f32 to vector<8x128xf32>
    %cst_23 = arith.constant 0.000000e+00 : f32
    %23 = vector.broadcast %cst_23 : f32 to vector<8x384xf32>
    %cst_24 = arith.constant 0.000000e+00 : f32
    %24 = vector.broadcast %cst_24 : f32 to vector<8x384xf32>
    %c0_25 = arith.constant 0 : index
    %c0_26 = arith.constant 0 : index
    %25 = vector.load %arg12[%c0_25, %c0_26] : memref<64x384xf32, #tpu.memory_space<vmem>>, vector<8x384xf32>
    %26 = vector.extract_strided_slice %25 {offsets = [0, 0], sizes = [8, 128], strides = [1, 1]} : vector<8x384xf32> to vector<8x128xf32>
    %27 = vector.extract_strided_slice %23 {offsets = [0, 0], sizes = [8, 128], strides = [1, 1]} : vector<8x384xf32> to vector<8x128xf32>
    %28 = arith.addf %26, %27 : vector<8x128xf32>
    %cst_27 = arith.constant 5.000000e-01 : f32
    %29 = vector.broadcast %cst_27 : f32 to vector<8x128xf32>
    %30 = arith.mulf %29, %28 : vector<8x128xf32>
    %31 = math.tanh %30 : vector<8x128xf32>
    %cst_28 = arith.constant 5.000000e-01 : f32
    %32 = vector.broadcast %cst_28 : f32 to vector<8x128xf32>
    %33 = arith.mulf %32, %31 : vector<8x128xf32>
    %cst_29 = arith.constant 5.000000e-01 : f32
    %34 = vector.broadcast %cst_29 : f32 to vector<8x128xf32>
    %35 = arith.addf %33, %34 : vector<8x128xf32>
    %36 = vector.extract_strided_slice %25 {offsets = [0, 128], sizes = [8, 128], strides = [1, 1]} : vector<8x384xf32> to vector<8x128xf32>
    %37 = vector.extract_strided_slice %23 {offsets = [0, 128], sizes = [8, 128], strides = [1, 1]} : vector<8x384xf32> to vector<8x128xf32>
    %38 = arith.addf %36, %37 : vector<8x128xf32>
    %cst_30 = arith.constant 5.000000e-01 : f32
    %39 = vector.broadcast %cst_30 : f32 to vector<8x128xf32>
    %40 = arith.mulf %39, %38 : vector<8x128xf32>
    %41 = math.tanh %40 : vector<8x128xf32>
    %cst_31 = arith.constant 5.000000e-01 : f32
    %42 = vector.broadcast %cst_31 : f32 to vector<8x128xf32>
    %43 = arith.mulf %42, %41 : vector<8x128xf32>
    %cst_32 = arith.constant 5.000000e-01 : f32
    %44 = vector.broadcast %cst_32 : f32 to vector<8x128xf32>
    %45 = arith.addf %43, %44 : vector<8x128xf32>
    %46 = vector.extract_strided_slice %25 {offsets = [0, 256], sizes = [8, 128], strides = [1, 1]} : vector<8x384xf32> to vector<8x128xf32>
    %47 = vector.extract_strided_slice %23 {offsets = [0, 256], sizes = [8, 128], strides = [1, 1]} : vector<8x384xf32> to vector<8x128xf32>
    %48 = vector.broadcast %19 : vector<1x128xf32> to vector<8x128xf32>
    %49 = arith.addf %47, %48 : vector<8x128xf32>
    %50 = arith.mulf %35, %49 : vector<8x128xf32>
    %51 = arith.addf %46, %50 : vector<8x128xf32>
    %52 = math.tanh %51 : vector<8x128xf32>
    %53 = arith.subf %21, %52 : vector<8x128xf32>
    %54 = arith.mulf %45, %53 : vector<8x128xf32>
    %55 = arith.addf %52, %54 : vector<8x128xf32>
    %56 = arith.truncf %55 : vector<8x128xf32> to vector<8x128xbf16>
    %cst_33 = arith.constant dense<0.000000e+00> : vector<8x768xf32>
    %57 = tpu.matmul %56, %16, %cst_33 {dimension_numbers = #tpu.dot_dimension_numbers<[1], [0], [0], [1], [0, 0, 1, 1], [], []>} : vector<8x128xbf16>, vector<128x768xbf16>, vector<8x768xf32> -> vector<8x768xf32>
    %58 = vector.extract_strided_slice %57 {offsets = [0, 0], sizes = [8, 384], strides = [1, 1]} : vector<8x768xf32> to vector<8x384xf32>
    %59 = vector.extract_strided_slice %57 {offsets = [0, 384], sizes = [8, 384], strides = [1, 1]} : vector<8x768xf32> to vector<8x384xf32>
    %60 = vector.broadcast %18 : vector<1x384xf32> to vector<8x384xf32>
    %61 = arith.addf %59, %60 : vector<8x384xf32>
    %62 = vector.extract_strided_slice %61 {offsets = [0, 0], sizes = [8, 128], strides = [1, 1]} : vector<8x384xf32> to vector<8x128xf32>
    %63 = vector.extract_strided_slice %24 {offsets = [0, 0], sizes = [8, 128], strides = [1, 1]} : vector<8x384xf32> to vector<8x128xf32>
    %64 = arith.addf %62, %63 : vector<8x128xf32>
    %cst_34 = arith.constant 5.000000e-01 : f32
    %65 = vector.broadcast %cst_34 : f32 to vector<8x128xf32>
    %66 = arith.mulf %65, %64 : vector<8x128xf32>
    %67 = math.tanh %66 : vector<8x128xf32>
    %cst_35 = arith.constant 5.000000e-01 : f32
    %68 = vector.broadcast %cst_35 : f32 to vector<8x128xf32>
    %69 = arith.mulf %68, %67 : vector<8x128xf32>
    %cst_36 = arith.constant 5.000000e-01 : f32
    %70 = vector.broadcast %cst_36 : f32 to vector<8x128xf32>
    %71 = arith.addf %69, %70 : vector<8x128xf32>
    %72 = vector.extract_strided_slice %61 {offsets = [0, 128], sizes = [8, 128], strides = [1, 1]} : vector<8x384xf32> to vector<8x128xf32>
    %73 = vector.extract_strided_slice %24 {offsets = [0, 128], sizes = [8, 128], strides = [1, 1]} : vector<8x384xf32> to vector<8x128xf32>
    %74 = arith.addf %72, %73 : vector<8x128xf32>
    %cst_37 = arith.constant 5.000000e-01 : f32
    %75 = vector.broadcast %cst_37 : f32 to vector<8x128xf32>
    %76 = arith.mulf %75, %74 : vector<8x128xf32>
    %77 = math.tanh %76 : vector<8x128xf32>
    %cst_38 = arith.constant 5.000000e-01 : f32
    %78 = vector.broadcast %cst_38 : f32 to vector<8x128xf32>
    %79 = arith.mulf %78, %77 : vector<8x128xf32>
    %cst_39 = arith.constant 5.000000e-01 : f32
    %80 = vector.broadcast %cst_39 : f32 to vector<8x128xf32>
    %81 = arith.addf %79, %80 : vector<8x128xf32>
    %82 = vector.extract_strided_slice %61 {offsets = [0, 256], sizes = [8, 128], strides = [1, 1]} : vector<8x384xf32> to vector<8x128xf32>
    %83 = vector.extract_strided_slice %24 {offsets = [0, 256], sizes = [8, 128], strides = [1, 1]} : vector<8x384xf32> to vector<8x128xf32>
    %84 = vector.broadcast %20 : vector<1x128xf32> to vector<8x128xf32>
    %85 = arith.addf %83, %84 : vector<8x128xf32>
    %86 = arith.mulf %71, %85 : vector<8x128xf32>
    %87 = arith.addf %82, %86 : vector<8x128xf32>
    %88 = math.tanh %87 : vector<8x128xf32>
    %89 = arith.subf %22, %88 : vector<8x128xf32>
    %90 = arith.mulf %81, %89 : vector<8x128xf32>
    %91 = arith.addf %88, %90 : vector<8x128xf32>
    %92 = arith.truncf %91 : vector<8x128xf32> to vector<8x128xbf16>
    %cst_40 = arith.constant dense<0.000000e+00> : vector<8x384xf32>
    %93 = tpu.matmul %92, %17, %cst_40 {dimension_numbers = #tpu.dot_dimension_numbers<[1], [0], [0], [1], [0, 0, 1, 1], [], []>} : vector<8x128xbf16>, vector<128x384xbf16>, vector<8x384xf32> -> vector<8x384xf32>
    %c8_41 = arith.constant 8 : index
    %c0_42 = arith.constant 0 : index
    %94 = vector.load %arg12[%c8_41, %c0_42] : memref<64x384xf32, #tpu.memory_space<vmem>>, vector<8x384xf32>
    %95 = vector.extract_strided_slice %94 {offsets = [0, 0], sizes = [8, 128], strides = [1, 1]} : vector<8x384xf32> to vector<8x128xf32>
    %96 = vector.extract_strided_slice %58 {offsets = [0, 0], sizes = [8, 128], strides = [1, 1]} : vector<8x384xf32> to vector<8x128xf32>
    %97 = arith.addf %95, %96 : vector<8x128xf32>
    %cst_43 = arith.constant 5.000000e-01 : f32
    %98 = vector.broadcast %cst_43 : f32 to vector<8x128xf32>
    %99 = arith.mulf %98, %97 : vector<8x128xf32>
    %100 = math.tanh %99 : vector<8x128xf32>
    %cst_44 = arith.constant 5.000000e-01 : f32
    %101 = vector.broadcast %cst_44 : f32 to vector<8x128xf32>
    %102 = arith.mulf %101, %100 : vector<8x128xf32>
    %cst_45 = arith.constant 5.000000e-01 : f32
    %103 = vector.broadcast %cst_45 : f32 to vector<8x128xf32>
    %104 = arith.addf %102, %103 : vector<8x128xf32>
    %105 = vector.extract_strided_slice %94 {offsets = [0, 128], sizes = [8, 128], strides = [1, 1]} : vector<8x384xf32> to vector<8x128xf32>
    %106 = vector.extract_strided_slice %58 {offsets = [0, 128], sizes = [8, 128], strides = [1, 1]} : vector<8x384xf32> to vector<8x128xf32>
    %107 = arith.addf %105, %106 : vector<8x128xf32>
    %cst_46 = arith.constant 5.000000e-01 : f32
    %108 = vector.broadcast %cst_46 : f32 to vector<8x128xf32>
    %109 = arith.mulf %108, %107 : vector<8x128xf32>
    %110 = math.tanh %109 : vector<8x128xf32>
    %cst_47 = arith.constant 5.000000e-01 : f32
    %111 = vector.broadcast %cst_47 : f32 to vector<8x128xf32>
    %112 = arith.mulf %111, %110 : vector<8x128xf32>
    %cst_48 = arith.constant 5.000000e-01 : f32
    %113 = vector.broadcast %cst_48 : f32 to vector<8x128xf32>
    %114 = arith.addf %112, %113 : vector<8x128xf32>
    %115 = vector.extract_strided_slice %94 {offsets = [0, 256], sizes = [8, 128], strides = [1, 1]} : vector<8x384xf32> to vector<8x128xf32>
    %116 = vector.extract_strided_slice %58 {offsets = [0, 256], sizes = [8, 128], strides = [1, 1]} : vector<8x384xf32> to vector<8x128xf32>
    %117 = vector.broadcast %19 : vector<1x128xf32> to vector<8x128xf32>
    %118 = arith.addf %116, %117 : vector<8x128xf32>
    %119 = arith.mulf %104, %118 : vector<8x128xf32>
    %120 = arith.addf %115, %119 : vector<8x128xf32>
    %121 = math.tanh %120 : vector<8x128xf32>
    %122 = arith.subf %55, %121 : vector<8x128xf32>
    %123 = arith.mulf %114, %122 : vector<8x128xf32>
    %124 = arith.addf %121, %123 : vector<8x128xf32>
    %125 = arith.truncf %124 : vector<8x128xf32> to vector<8x128xbf16>
    %cst_49 = arith.constant dense<0.000000e+00> : vector<8x768xf32>
    %126 = tpu.matmul %125, %16, %cst_49 {dimension_numbers = #tpu.dot_dimension_numbers<[1], [0], [0], [1], [0, 0, 1, 1], [], []>} : vector<8x128xbf16>, vector<128x768xbf16>, vector<8x768xf32> -> vector<8x768xf32>
    %127 = vector.extract_strided_slice %126 {offsets = [0, 0], sizes = [8, 384], strides = [1, 1]} : vector<8x768xf32> to vector<8x384xf32>
    %128 = vector.extract_strided_slice %126 {offsets = [0, 384], sizes = [8, 384], strides = [1, 1]} : vector<8x768xf32> to vector<8x384xf32>
    %129 = vector.broadcast %18 : vector<1x384xf32> to vector<8x384xf32>
    %130 = arith.addf %128, %129 : vector<8x384xf32>
    %131 = vector.extract_strided_slice %130 {offsets = [0, 0], sizes = [8, 128], strides = [1, 1]} : vector<8x384xf32> to vector<8x128xf32>
    %132 = vector.extract_strided_slice %93 {offsets = [0, 0], sizes = [8, 128], strides = [1, 1]} : vector<8x384xf32> to vector<8x128xf32>
    %133 = arith.addf %131, %132 : vector<8x128xf32>
    %cst_50 = arith.constant 5.000000e-01 : f32
    %134 = vector.broadcast %cst_50 : f32 to vector<8x128xf32>
    %135 = arith.mulf %134, %133 : vector<8x128xf32>
    %136 = math.tanh %135 : vector<8x128xf32>
    %cst_51 = arith.constant 5.000000e-01 : f32
    %137 = vector.broadcast %cst_51 : f32 to vector<8x128xf32>
    %138 = arith.mulf %137, %136 : vector<8x128xf32>
    %cst_52 = arith.constant 5.000000e-01 : f32
    %139 = vector.broadcast %cst_52 : f32 to vector<8x128xf32>
    %140 = arith.addf %138, %139 : vector<8x128xf32>
    %141 = vector.extract_strided_slice %130 {offsets = [0, 128], sizes = [8, 128], strides = [1, 1]} : vector<8x384xf32> to vector<8x128xf32>
    %142 = vector.extract_strided_slice %93 {offsets = [0, 128], sizes = [8, 128], strides = [1, 1]} : vector<8x384xf32> to vector<8x128xf32>
    %143 = arith.addf %141, %142 : vector<8x128xf32>
    %cst_53 = arith.constant 5.000000e-01 : f32
    %144 = vector.broadcast %cst_53 : f32 to vector<8x128xf32>
    %145 = arith.mulf %144, %143 : vector<8x128xf32>
    %146 = math.tanh %145 : vector<8x128xf32>
    %cst_54 = arith.constant 5.000000e-01 : f32
    %147 = vector.broadcast %cst_54 : f32 to vector<8x128xf32>
    %148 = arith.mulf %147, %146 : vector<8x128xf32>
    %cst_55 = arith.constant 5.000000e-01 : f32
    %149 = vector.broadcast %cst_55 : f32 to vector<8x128xf32>
    %150 = arith.addf %148, %149 : vector<8x128xf32>
    %151 = vector.extract_strided_slice %130 {offsets = [0, 256], sizes = [8, 128], strides = [1, 1]} : vector<8x384xf32> to vector<8x128xf32>
    %152 = vector.extract_strided_slice %93 {offsets = [0, 256], sizes = [8, 128], strides = [1, 1]} : vector<8x384xf32> to vector<8x128xf32>
    %153 = vector.broadcast %20 : vector<1x128xf32> to vector<8x128xf32>
    %154 = arith.addf %152, %153 : vector<8x128xf32>
    %155 = arith.mulf %140, %154 : vector<8x128xf32>
    %156 = arith.addf %151, %155 : vector<8x128xf32>
    %157 = math.tanh %156 : vector<8x128xf32>
    %158 = arith.subf %91, %157 : vector<8x128xf32>
    %159 = arith.mulf %150, %158 : vector<8x128xf32>
    %160 = arith.addf %157, %159 : vector<8x128xf32>
    %161 = arith.truncf %160 : vector<8x128xf32> to vector<8x128xbf16>
    %cst_56 = arith.constant dense<0.000000e+00> : vector<8x384xf32>
    %162 = tpu.matmul %161, %17, %cst_56 {dimension_numbers = #tpu.dot_dimension_numbers<[1], [0], [0], [1], [0, 0, 1, 1], [], []>} : vector<8x128xbf16>, vector<128x384xbf16>, vector<8x384xf32> -> vector<8x384xf32>
    %c16 = arith.constant 16 : index
    %c0_57 = arith.constant 0 : index
    %163 = vector.load %arg12[%c16, %c0_57] : memref<64x384xf32, #tpu.memory_space<vmem>>, vector<8x384xf32>
    %164 = vector.extract_strided_slice %163 {offsets = [0, 0], sizes = [8, 128], strides = [1, 1]} : vector<8x384xf32> to vector<8x128xf32>
    %165 = vector.extract_strided_slice %127 {offsets = [0, 0], sizes = [8, 128], strides = [1, 1]} : vector<8x384xf32> to vector<8x128xf32>
    %166 = arith.addf %164, %165 : vector<8x128xf32>
    %cst_58 = arith.constant 5.000000e-01 : f32
    %167 = vector.broadcast %cst_58 : f32 to vector<8x128xf32>
    %168 = arith.mulf %167, %166 : vector<8x128xf32>
    %169 = math.tanh %168 : vector<8x128xf32>
    %cst_59 = arith.constant 5.000000e-01 : f32
    %170 = vector.broadcast %cst_59 : f32 to vector<8x128xf32>
    %171 = arith.mulf %170, %169 : vector<8x128xf32>
    %cst_60 = arith.constant 5.000000e-01 : f32
    %172 = vector.broadcast %cst_60 : f32 to vector<8x128xf32>
    %173 = arith.addf %171, %172 : vector<8x128xf32>
    %174 = vector.extract_strided_slice %163 {offsets = [0, 128], sizes = [8, 128], strides = [1, 1]} : vector<8x384xf32> to vector<8x128xf32>
    %175 = vector.extract_strided_slice %127 {offsets = [0, 128], sizes = [8, 128], strides = [1, 1]} : vector<8x384xf32> to vector<8x128xf32>
    %176 = arith.addf %174, %175 : vector<8x128xf32>
    %cst_61 = arith.constant 5.000000e-01 : f32
    %177 = vector.broadcast %cst_61 : f32 to vector<8x128xf32>
    %178 = arith.mulf %177, %176 : vector<8x128xf32>
    %179 = math.tanh %178 : vector<8x128xf32>
    %cst_62 = arith.constant 5.000000e-01 : f32
    %180 = vector.broadcast %cst_62 : f32 to vector<8x128xf32>
    %181 = arith.mulf %180, %179 : vector<8x128xf32>
    %cst_63 = arith.constant 5.000000e-01 : f32
    %182 = vector.broadcast %cst_63 : f32 to vector<8x128xf32>
    %183 = arith.addf %181, %182 : vector<8x128xf32>
    %184 = vector.extract_strided_slice %163 {offsets = [0, 256], sizes = [8, 128], strides = [1, 1]} : vector<8x384xf32> to vector<8x128xf32>
    %185 = vector.extract_strided_slice %127 {offsets = [0, 256], sizes = [8, 128], strides = [1, 1]} : vector<8x384xf32> to vector<8x128xf32>
    %186 = vector.broadcast %19 : vector<1x128xf32> to vector<8x128xf32>
    %187 = arith.addf %185, %186 : vector<8x128xf32>
    %188 = arith.mulf %173, %187 : vector<8x128xf32>
    %189 = arith.addf %184, %188 : vector<8x128xf32>
    %190 = math.tanh %189 : vector<8x128xf32>
    %191 = arith.subf %124, %190 : vector<8x128xf32>
    %192 = arith.mulf %183, %191 : vector<8x128xf32>
    %193 = arith.addf %190, %192 : vector<8x128xf32>
    %194 = arith.truncf %193 : vector<8x128xf32> to vector<8x128xbf16>
    %cst_64 = arith.constant dense<0.000000e+00> : vector<8x768xf32>
    %195 = tpu.matmul %194, %16, %cst_64 {dimension_numbers = #tpu.dot_dimension_numbers<[1], [0], [0], [1], [0, 0, 1, 1], [], []>} : vector<8x128xbf16>, vector<128x768xbf16>, vector<8x768xf32> -> vector<8x768xf32>
    %196 = vector.extract_strided_slice %195 {offsets = [0, 0], sizes = [8, 384], strides = [1, 1]} : vector<8x768xf32> to vector<8x384xf32>
    %197 = vector.extract_strided_slice %195 {offsets = [0, 384], sizes = [8, 384], strides = [1, 1]} : vector<8x768xf32> to vector<8x384xf32>
    %198 = vector.broadcast %18 : vector<1x384xf32> to vector<8x384xf32>
    %199 = arith.addf %197, %198 : vector<8x384xf32>
    %200 = vector.extract_strided_slice %199 {offsets = [0, 0], sizes = [8, 128], strides = [1, 1]} : vector<8x384xf32> to vector<8x128xf32>
    %201 = vector.extract_strided_slice %162 {offsets = [0, 0], sizes = [8, 128], strides = [1, 1]} : vector<8x384xf32> to vector<8x128xf32>
    %202 = arith.addf %200, %201 : vector<8x128xf32>
    %cst_65 = arith.constant 5.000000e-01 : f32
    %203 = vector.broadcast %cst_65 : f32 to vector<8x128xf32>
    %204 = arith.mulf %203, %202 : vector<8x128xf32>
    %205 = math.tanh %204 : vector<8x128xf32>
    %cst_66 = arith.constant 5.000000e-01 : f32
    %206 = vector.broadcast %cst_66 : f32 to vector<8x128xf32>
    %207 = arith.mulf %206, %205 : vector<8x128xf32>
    %cst_67 = arith.constant 5.000000e-01 : f32
    %208 = vector.broadcast %cst_67 : f32 to vector<8x128xf32>
    %209 = arith.addf %207, %208 : vector<8x128xf32>
    %210 = vector.extract_strided_slice %199 {offsets = [0, 128], sizes = [8, 128], strides = [1, 1]} : vector<8x384xf32> to vector<8x128xf32>
    %211 = vector.extract_strided_slice %162 {offsets = [0, 128], sizes = [8, 128], strides = [1, 1]} : vector<8x384xf32> to vector<8x128xf32>
    %212 = arith.addf %210, %211 : vector<8x128xf32>
    %cst_68 = arith.constant 5.000000e-01 : f32
    %213 = vector.broadcast %cst_68 : f32 to vector<8x128xf32>
    %214 = arith.mulf %213, %212 : vector<8x128xf32>
    %215 = math.tanh %214 : vector<8x128xf32>
    %cst_69 = arith.constant 5.000000e-01 : f32
    %216 = vector.broadcast %cst_69 : f32 to vector<8x128xf32>
    %217 = arith.mulf %216, %215 : vector<8x128xf32>
    %cst_70 = arith.constant 5.000000e-01 : f32
    %218 = vector.broadcast %cst_70 : f32 to vector<8x128xf32>
    %219 = arith.addf %217, %218 : vector<8x128xf32>
    %220 = vector.extract_strided_slice %199 {offsets = [0, 256], sizes = [8, 128], strides = [1, 1]} : vector<8x384xf32> to vector<8x128xf32>
    %221 = vector.extract_strided_slice %162 {offsets = [0, 256], sizes = [8, 128], strides = [1, 1]} : vector<8x384xf32> to vector<8x128xf32>
    %222 = vector.broadcast %20 : vector<1x128xf32> to vector<8x128xf32>
    %223 = arith.addf %221, %222 : vector<8x128xf32>
    %224 = arith.mulf %209, %223 : vector<8x128xf32>
    %225 = arith.addf %220, %224 : vector<8x128xf32>
    %226 = math.tanh %225 : vector<8x128xf32>
    %227 = arith.subf %160, %226 : vector<8x128xf32>
    %228 = arith.mulf %219, %227 : vector<8x128xf32>
    %229 = arith.addf %226, %228 : vector<8x128xf32>
    %230 = arith.truncf %229 : vector<8x128xf32> to vector<8x128xbf16>
    %cst_71 = arith.constant dense<0.000000e+00> : vector<8x384xf32>
    %231 = tpu.matmul %230, %17, %cst_71 {dimension_numbers = #tpu.dot_dimension_numbers<[1], [0], [0], [1], [0, 0, 1, 1], [], []>} : vector<8x128xbf16>, vector<128x384xbf16>, vector<8x384xf32> -> vector<8x384xf32>
    %c24 = arith.constant 24 : index
    %c0_72 = arith.constant 0 : index
    %232 = vector.load %arg12[%c24, %c0_72] : memref<64x384xf32, #tpu.memory_space<vmem>>, vector<8x384xf32>
    %233 = vector.extract_strided_slice %232 {offsets = [0, 0], sizes = [8, 128], strides = [1, 1]} : vector<8x384xf32> to vector<8x128xf32>
    %234 = vector.extract_strided_slice %196 {offsets = [0, 0], sizes = [8, 128], strides = [1, 1]} : vector<8x384xf32> to vector<8x128xf32>
    %235 = arith.addf %233, %234 : vector<8x128xf32>
    %cst_73 = arith.constant 5.000000e-01 : f32
    %236 = vector.broadcast %cst_73 : f32 to vector<8x128xf32>
    %237 = arith.mulf %236, %235 : vector<8x128xf32>
    %238 = math.tanh %237 : vector<8x128xf32>
    %cst_74 = arith.constant 5.000000e-01 : f32
    %239 = vector.broadcast %cst_74 : f32 to vector<8x128xf32>
    %240 = arith.mulf %239, %238 : vector<8x128xf32>
    %cst_75 = arith.constant 5.000000e-01 : f32
    %241 = vector.broadcast %cst_75 : f32 to vector<8x128xf32>
    %242 = arith.addf %240, %241 : vector<8x128xf32>
    %243 = vector.extract_strided_slice %232 {offsets = [0, 128], sizes = [8, 128], strides = [1, 1]} : vector<8x384xf32> to vector<8x128xf32>
    %244 = vector.extract_strided_slice %196 {offsets = [0, 128], sizes = [8, 128], strides = [1, 1]} : vector<8x384xf32> to vector<8x128xf32>
    %245 = arith.addf %243, %244 : vector<8x128xf32>
    %cst_76 = arith.constant 5.000000e-01 : f32
    %246 = vector.broadcast %cst_76 : f32 to vector<8x128xf32>
    %247 = arith.mulf %246, %245 : vector<8x128xf32>
    %248 = math.tanh %247 : vector<8x128xf32>
    %cst_77 = arith.constant 5.000000e-01 : f32
    %249 = vector.broadcast %cst_77 : f32 to vector<8x128xf32>
    %250 = arith.mulf %249, %248 : vector<8x128xf32>
    %cst_78 = arith.constant 5.000000e-01 : f32
    %251 = vector.broadcast %cst_78 : f32 to vector<8x128xf32>
    %252 = arith.addf %250, %251 : vector<8x128xf32>
    %253 = vector.extract_strided_slice %232 {offsets = [0, 256], sizes = [8, 128], strides = [1, 1]} : vector<8x384xf32> to vector<8x128xf32>
    %254 = vector.extract_strided_slice %196 {offsets = [0, 256], sizes = [8, 128], strides = [1, 1]} : vector<8x384xf32> to vector<8x128xf32>
    %255 = vector.broadcast %19 : vector<1x128xf32> to vector<8x128xf32>
    %256 = arith.addf %254, %255 : vector<8x128xf32>
    %257 = arith.mulf %242, %256 : vector<8x128xf32>
    %258 = arith.addf %253, %257 : vector<8x128xf32>
    %259 = math.tanh %258 : vector<8x128xf32>
    %260 = arith.subf %193, %259 : vector<8x128xf32>
    %261 = arith.mulf %252, %260 : vector<8x128xf32>
    %262 = arith.addf %259, %261 : vector<8x128xf32>
    %263 = arith.truncf %262 : vector<8x128xf32> to vector<8x128xbf16>
    %cst_79 = arith.constant dense<0.000000e+00> : vector<8x768xf32>
    %264 = tpu.matmul %263, %16, %cst_79 {dimension_numbers = #tpu.dot_dimension_numbers<[1], [0], [0], [1], [0, 0, 1, 1], [], []>} : vector<8x128xbf16>, vector<128x768xbf16>, vector<8x768xf32> -> vector<8x768xf32>
    %265 = vector.extract_strided_slice %264 {offsets = [0, 0], sizes = [8, 384], strides = [1, 1]} : vector<8x768xf32> to vector<8x384xf32>
    %266 = vector.extract_strided_slice %264 {offsets = [0, 384], sizes = [8, 384], strides = [1, 1]} : vector<8x768xf32> to vector<8x384xf32>
    %267 = vector.broadcast %18 : vector<1x384xf32> to vector<8x384xf32>
    %268 = arith.addf %266, %267 : vector<8x384xf32>
    %269 = vector.extract_strided_slice %268 {offsets = [0, 0], sizes = [8, 128], strides = [1, 1]} : vector<8x384xf32> to vector<8x128xf32>
    %270 = vector.extract_strided_slice %231 {offsets = [0, 0], sizes = [8, 128], strides = [1, 1]} : vector<8x384xf32> to vector<8x128xf32>
    %271 = arith.addf %269, %270 : vector<8x128xf32>
    %cst_80 = arith.constant 5.000000e-01 : f32
    %272 = vector.broadcast %cst_80 : f32 to vector<8x128xf32>
    %273 = arith.mulf %272, %271 : vector<8x128xf32>
    %274 = math.tanh %273 : vector<8x128xf32>
    %cst_81 = arith.constant 5.000000e-01 : f32
    %275 = vector.broadcast %cst_81 : f32 to vector<8x128xf32>
    %276 = arith.mulf %275, %274 : vector<8x128xf32>
    %cst_82 = arith.constant 5.000000e-01 : f32
    %277 = vector.broadcast %cst_82 : f32 to vector<8x128xf32>
    %278 = arith.addf %276, %277 : vector<8x128xf32>
    %279 = vector.extract_strided_slice %268 {offsets = [0, 128], sizes = [8, 128], strides = [1, 1]} : vector<8x384xf32> to vector<8x128xf32>
    %280 = vector.extract_strided_slice %231 {offsets = [0, 128], sizes = [8, 128], strides = [1, 1]} : vector<8x384xf32> to vector<8x128xf32>
    %281 = arith.addf %279, %280 : vector<8x128xf32>
    %cst_83 = arith.constant 5.000000e-01 : f32
    %282 = vector.broadcast %cst_83 : f32 to vector<8x128xf32>
    %283 = arith.mulf %282, %281 : vector<8x128xf32>
    %284 = math.tanh %283 : vector<8x128xf32>
    %cst_84 = arith.constant 5.000000e-01 : f32
    %285 = vector.broadcast %cst_84 : f32 to vector<8x128xf32>
    %286 = arith.mulf %285, %284 : vector<8x128xf32>
    %cst_85 = arith.constant 5.000000e-01 : f32
    %287 = vector.broadcast %cst_85 : f32 to vector<8x128xf32>
    %288 = arith.addf %286, %287 : vector<8x128xf32>
    %289 = vector.extract_strided_slice %268 {offsets = [0, 256], sizes = [8, 128], strides = [1, 1]} : vector<8x384xf32> to vector<8x128xf32>
    %290 = vector.extract_strided_slice %231 {offsets = [0, 256], sizes = [8, 128], strides = [1, 1]} : vector<8x384xf32> to vector<8x128xf32>
    %291 = vector.broadcast %20 : vector<1x128xf32> to vector<8x128xf32>
    %292 = arith.addf %290, %291 : vector<8x128xf32>
    %293 = arith.mulf %278, %292 : vector<8x128xf32>
    %294 = arith.addf %289, %293 : vector<8x128xf32>
    %295 = math.tanh %294 : vector<8x128xf32>
    %296 = arith.subf %229, %295 : vector<8x128xf32>
    %297 = arith.mulf %288, %296 : vector<8x128xf32>
    %298 = arith.addf %295, %297 : vector<8x128xf32>
    %299 = arith.truncf %298 : vector<8x128xf32> to vector<8x128xbf16>
    %cst_86 = arith.constant dense<0.000000e+00> : vector<8x384xf32>
    %300 = tpu.matmul %299, %17, %cst_86 {dimension_numbers = #tpu.dot_dimension_numbers<[1], [0], [0], [1], [0, 0, 1, 1], [], []>} : vector<8x128xbf16>, vector<128x384xbf16>, vector<8x384xf32> -> vector<8x384xf32>
    %c32 = arith.constant 32 : index
    %c0_87 = arith.constant 0 : index
    %301 = vector.load %arg12[%c32, %c0_87] : memref<64x384xf32, #tpu.memory_space<vmem>>, vector<8x384xf32>
    %302 = vector.extract_strided_slice %301 {offsets = [0, 0], sizes = [8, 128], strides = [1, 1]} : vector<8x384xf32> to vector<8x128xf32>
    %303 = vector.extract_strided_slice %265 {offsets = [0, 0], sizes = [8, 128], strides = [1, 1]} : vector<8x384xf32> to vector<8x128xf32>
    %304 = arith.addf %302, %303 : vector<8x128xf32>
    %cst_88 = arith.constant 5.000000e-01 : f32
    %305 = vector.broadcast %cst_88 : f32 to vector<8x128xf32>
    %306 = arith.mulf %305, %304 : vector<8x128xf32>
    %307 = math.tanh %306 : vector<8x128xf32>
    %cst_89 = arith.constant 5.000000e-01 : f32
    %308 = vector.broadcast %cst_89 : f32 to vector<8x128xf32>
    %309 = arith.mulf %308, %307 : vector<8x128xf32>
    %cst_90 = arith.constant 5.000000e-01 : f32
    %310 = vector.broadcast %cst_90 : f32 to vector<8x128xf32>
    %311 = arith.addf %309, %310 : vector<8x128xf32>
    %312 = vector.extract_strided_slice %301 {offsets = [0, 128], sizes = [8, 128], strides = [1, 1]} : vector<8x384xf32> to vector<8x128xf32>
    %313 = vector.extract_strided_slice %265 {offsets = [0, 128], sizes = [8, 128], strides = [1, 1]} : vector<8x384xf32> to vector<8x128xf32>
    %314 = arith.addf %312, %313 : vector<8x128xf32>
    %cst_91 = arith.constant 5.000000e-01 : f32
    %315 = vector.broadcast %cst_91 : f32 to vector<8x128xf32>
    %316 = arith.mulf %315, %314 : vector<8x128xf32>
    %317 = math.tanh %316 : vector<8x128xf32>
    %cst_92 = arith.constant 5.000000e-01 : f32
    %318 = vector.broadcast %cst_92 : f32 to vector<8x128xf32>
    %319 = arith.mulf %318, %317 : vector<8x128xf32>
    %cst_93 = arith.constant 5.000000e-01 : f32
    %320 = vector.broadcast %cst_93 : f32 to vector<8x128xf32>
    %321 = arith.addf %319, %320 : vector<8x128xf32>
    %322 = vector.extract_strided_slice %301 {offsets = [0, 256], sizes = [8, 128], strides = [1, 1]} : vector<8x384xf32> to vector<8x128xf32>
    %323 = vector.extract_strided_slice %265 {offsets = [0, 256], sizes = [8, 128], strides = [1, 1]} : vector<8x384xf32> to vector<8x128xf32>
    %324 = vector.broadcast %19 : vector<1x128xf32> to vector<8x128xf32>
    %325 = arith.addf %323, %324 : vector<8x128xf32>
    %326 = arith.mulf %311, %325 : vector<8x128xf32>
    %327 = arith.addf %322, %326 : vector<8x128xf32>
    %328 = math.tanh %327 : vector<8x128xf32>
    %329 = arith.subf %262, %328 : vector<8x128xf32>
    %330 = arith.mulf %321, %329 : vector<8x128xf32>
    %331 = arith.addf %328, %330 : vector<8x128xf32>
    %332 = arith.truncf %331 : vector<8x128xf32> to vector<8x128xbf16>
    %cst_94 = arith.constant dense<0.000000e+00> : vector<8x768xf32>
    %333 = tpu.matmul %332, %16, %cst_94 {dimension_numbers = #tpu.dot_dimension_numbers<[1], [0], [0], [1], [0, 0, 1, 1], [], []>} : vector<8x128xbf16>, vector<128x768xbf16>, vector<8x768xf32> -> vector<8x768xf32>
    %334 = vector.extract_strided_slice %333 {offsets = [0, 0], sizes = [8, 384], strides = [1, 1]} : vector<8x768xf32> to vector<8x384xf32>
    %335 = vector.extract_strided_slice %333 {offsets = [0, 384], sizes = [8, 384], strides = [1, 1]} : vector<8x768xf32> to vector<8x384xf32>
    %336 = vector.broadcast %18 : vector<1x384xf32> to vector<8x384xf32>
    %337 = arith.addf %335, %336 : vector<8x384xf32>
    %338 = vector.extract_strided_slice %337 {offsets = [0, 0], sizes = [8, 128], strides = [1, 1]} : vector<8x384xf32> to vector<8x128xf32>
    %339 = vector.extract_strided_slice %300 {offsets = [0, 0], sizes = [8, 128], strides = [1, 1]} : vector<8x384xf32> to vector<8x128xf32>
    %340 = arith.addf %338, %339 : vector<8x128xf32>
    %cst_95 = arith.constant 5.000000e-01 : f32
    %341 = vector.broadcast %cst_95 : f32 to vector<8x128xf32>
    %342 = arith.mulf %341, %340 : vector<8x128xf32>
    %343 = math.tanh %342 : vector<8x128xf32>
    %cst_96 = arith.constant 5.000000e-01 : f32
    %344 = vector.broadcast %cst_96 : f32 to vector<8x128xf32>
    %345 = arith.mulf %344, %343 : vector<8x128xf32>
    %cst_97 = arith.constant 5.000000e-01 : f32
    %346 = vector.broadcast %cst_97 : f32 to vector<8x128xf32>
    %347 = arith.addf %345, %346 : vector<8x128xf32>
    %348 = vector.extract_strided_slice %337 {offsets = [0, 128], sizes = [8, 128], strides = [1, 1]} : vector<8x384xf32> to vector<8x128xf32>
    %349 = vector.extract_strided_slice %300 {offsets = [0, 128], sizes = [8, 128], strides = [1, 1]} : vector<8x384xf32> to vector<8x128xf32>
    %350 = arith.addf %348, %349 : vector<8x128xf32>
    %cst_98 = arith.constant 5.000000e-01 : f32
    %351 = vector.broadcast %cst_98 : f32 to vector<8x128xf32>
    %352 = arith.mulf %351, %350 : vector<8x128xf32>
    %353 = math.tanh %352 : vector<8x128xf32>
    %cst_99 = arith.constant 5.000000e-01 : f32
    %354 = vector.broadcast %cst_99 : f32 to vector<8x128xf32>
    %355 = arith.mulf %354, %353 : vector<8x128xf32>
    %cst_100 = arith.constant 5.000000e-01 : f32
    %356 = vector.broadcast %cst_100 : f32 to vector<8x128xf32>
    %357 = arith.addf %355, %356 : vector<8x128xf32>
    %358 = vector.extract_strided_slice %337 {offsets = [0, 256], sizes = [8, 128], strides = [1, 1]} : vector<8x384xf32> to vector<8x128xf32>
    %359 = vector.extract_strided_slice %300 {offsets = [0, 256], sizes = [8, 128], strides = [1, 1]} : vector<8x384xf32> to vector<8x128xf32>
    %360 = vector.broadcast %20 : vector<1x128xf32> to vector<8x128xf32>
    %361 = arith.addf %359, %360 : vector<8x128xf32>
    %362 = arith.mulf %347, %361 : vector<8x128xf32>
    %363 = arith.addf %358, %362 : vector<8x128xf32>
    %364 = math.tanh %363 : vector<8x128xf32>
    %365 = arith.subf %298, %364 : vector<8x128xf32>
    %366 = arith.mulf %357, %365 : vector<8x128xf32>
    %367 = arith.addf %364, %366 : vector<8x128xf32>
    %368 = arith.truncf %367 : vector<8x128xf32> to vector<8x128xbf16>
    %cst_101 = arith.constant dense<0.000000e+00> : vector<8x384xf32>
    %369 = tpu.matmul %368, %17, %cst_101 {dimension_numbers = #tpu.dot_dimension_numbers<[1], [0], [0], [1], [0, 0, 1, 1], [], []>} : vector<8x128xbf16>, vector<128x384xbf16>, vector<8x384xf32> -> vector<8x384xf32>
    %c40 = arith.constant 40 : index
    %c0_102 = arith.constant 0 : index
    %370 = vector.load %arg12[%c40, %c0_102] : memref<64x384xf32, #tpu.memory_space<vmem>>, vector<8x384xf32>
    %371 = vector.extract_strided_slice %370 {offsets = [0, 0], sizes = [8, 128], strides = [1, 1]} : vector<8x384xf32> to vector<8x128xf32>
    %372 = vector.extract_strided_slice %334 {offsets = [0, 0], sizes = [8, 128], strides = [1, 1]} : vector<8x384xf32> to vector<8x128xf32>
    %373 = arith.addf %371, %372 : vector<8x128xf32>
    %cst_103 = arith.constant 5.000000e-01 : f32
    %374 = vector.broadcast %cst_103 : f32 to vector<8x128xf32>
    %375 = arith.mulf %374, %373 : vector<8x128xf32>
    %376 = math.tanh %375 : vector<8x128xf32>
    %cst_104 = arith.constant 5.000000e-01 : f32
    %377 = vector.broadcast %cst_104 : f32 to vector<8x128xf32>
    %378 = arith.mulf %377, %376 : vector<8x128xf32>
    %cst_105 = arith.constant 5.000000e-01 : f32
    %379 = vector.broadcast %cst_105 : f32 to vector<8x128xf32>
    %380 = arith.addf %378, %379 : vector<8x128xf32>
    %381 = vector.extract_strided_slice %370 {offsets = [0, 128], sizes = [8, 128], strides = [1, 1]} : vector<8x384xf32> to vector<8x128xf32>
    %382 = vector.extract_strided_slice %334 {offsets = [0, 128], sizes = [8, 128], strides = [1, 1]} : vector<8x384xf32> to vector<8x128xf32>
    %383 = arith.addf %381, %382 : vector<8x128xf32>
    %cst_106 = arith.constant 5.000000e-01 : f32
    %384 = vector.broadcast %cst_106 : f32 to vector<8x128xf32>
    %385 = arith.mulf %384, %383 : vector<8x128xf32>
    %386 = math.tanh %385 : vector<8x128xf32>
    %cst_107 = arith.constant 5.000000e-01 : f32
    %387 = vector.broadcast %cst_107 : f32 to vector<8x128xf32>
    %388 = arith.mulf %387, %386 : vector<8x128xf32>
    %cst_108 = arith.constant 5.000000e-01 : f32
    %389 = vector.broadcast %cst_108 : f32 to vector<8x128xf32>
    %390 = arith.addf %388, %389 : vector<8x128xf32>
    %391 = vector.extract_strided_slice %370 {offsets = [0, 256], sizes = [8, 128], strides = [1, 1]} : vector<8x384xf32> to vector<8x128xf32>
    %392 = vector.extract_strided_slice %334 {offsets = [0, 256], sizes = [8, 128], strides = [1, 1]} : vector<8x384xf32> to vector<8x128xf32>
    %393 = vector.broadcast %19 : vector<1x128xf32> to vector<8x128xf32>
    %394 = arith.addf %392, %393 : vector<8x128xf32>
    %395 = arith.mulf %380, %394 : vector<8x128xf32>
    %396 = arith.addf %391, %395 : vector<8x128xf32>
    %397 = math.tanh %396 : vector<8x128xf32>
    %398 = arith.subf %331, %397 : vector<8x128xf32>
    %399 = arith.mulf %390, %398 : vector<8x128xf32>
    %400 = arith.addf %397, %399 : vector<8x128xf32>
    %401 = arith.truncf %400 : vector<8x128xf32> to vector<8x128xbf16>
    %cst_109 = arith.constant dense<0.000000e+00> : vector<8x768xf32>
    %402 = tpu.matmul %401, %16, %cst_109 {dimension_numbers = #tpu.dot_dimension_numbers<[1], [0], [0], [1], [0, 0, 1, 1], [], []>} : vector<8x128xbf16>, vector<128x768xbf16>, vector<8x768xf32> -> vector<8x768xf32>
    %403 = vector.extract_strided_slice %402 {offsets = [0, 0], sizes = [8, 384], strides = [1, 1]} : vector<8x768xf32> to vector<8x384xf32>
    %404 = vector.extract_strided_slice %402 {offsets = [0, 384], sizes = [8, 384], strides = [1, 1]} : vector<8x768xf32> to vector<8x384xf32>
    %405 = vector.broadcast %18 : vector<1x384xf32> to vector<8x384xf32>
    %406 = arith.addf %404, %405 : vector<8x384xf32>
    %407 = vector.extract_strided_slice %406 {offsets = [0, 0], sizes = [8, 128], strides = [1, 1]} : vector<8x384xf32> to vector<8x128xf32>
    %408 = vector.extract_strided_slice %369 {offsets = [0, 0], sizes = [8, 128], strides = [1, 1]} : vector<8x384xf32> to vector<8x128xf32>
    %409 = arith.addf %407, %408 : vector<8x128xf32>
    %cst_110 = arith.constant 5.000000e-01 : f32
    %410 = vector.broadcast %cst_110 : f32 to vector<8x128xf32>
    %411 = arith.mulf %410, %409 : vector<8x128xf32>
    %412 = math.tanh %411 : vector<8x128xf32>
    %cst_111 = arith.constant 5.000000e-01 : f32
    %413 = vector.broadcast %cst_111 : f32 to vector<8x128xf32>
    %414 = arith.mulf %413, %412 : vector<8x128xf32>
    %cst_112 = arith.constant 5.000000e-01 : f32
    %415 = vector.broadcast %cst_112 : f32 to vector<8x128xf32>
    %416 = arith.addf %414, %415 : vector<8x128xf32>
    %417 = vector.extract_strided_slice %406 {offsets = [0, 128], sizes = [8, 128], strides = [1, 1]} : vector<8x384xf32> to vector<8x128xf32>
    %418 = vector.extract_strided_slice %369 {offsets = [0, 128], sizes = [8, 128], strides = [1, 1]} : vector<8x384xf32> to vector<8x128xf32>
    %419 = arith.addf %417, %418 : vector<8x128xf32>
    %cst_113 = arith.constant 5.000000e-01 : f32
    %420 = vector.broadcast %cst_113 : f32 to vector<8x128xf32>
    %421 = arith.mulf %420, %419 : vector<8x128xf32>
    %422 = math.tanh %421 : vector<8x128xf32>
    %cst_114 = arith.constant 5.000000e-01 : f32
    %423 = vector.broadcast %cst_114 : f32 to vector<8x128xf32>
    %424 = arith.mulf %423, %422 : vector<8x128xf32>
    %cst_115 = arith.constant 5.000000e-01 : f32
    %425 = vector.broadcast %cst_115 : f32 to vector<8x128xf32>
    %426 = arith.addf %424, %425 : vector<8x128xf32>
    %427 = vector.extract_strided_slice %406 {offsets = [0, 256], sizes = [8, 128], strides = [1, 1]} : vector<8x384xf32> to vector<8x128xf32>
    %428 = vector.extract_strided_slice %369 {offsets = [0, 256], sizes = [8, 128], strides = [1, 1]} : vector<8x384xf32> to vector<8x128xf32>
    %429 = vector.broadcast %20 : vector<1x128xf32> to vector<8x128xf32>
    %430 = arith.addf %428, %429 : vector<8x128xf32>
    %431 = arith.mulf %416, %430 : vector<8x128xf32>
    %432 = arith.addf %427, %431 : vector<8x128xf32>
    %433 = math.tanh %432 : vector<8x128xf32>
    %434 = arith.subf %367, %433 : vector<8x128xf32>
    %435 = arith.mulf %426, %434 : vector<8x128xf32>
    %436 = arith.addf %433, %435 : vector<8x128xf32>
    %437 = arith.truncf %436 : vector<8x128xf32> to vector<8x128xbf16>
    %cst_116 = arith.constant dense<0.000000e+00> : vector<8x384xf32>
    %438 = tpu.matmul %437, %17, %cst_116 {dimension_numbers = #tpu.dot_dimension_numbers<[1], [0], [0], [1], [0, 0, 1, 1], [], []>} : vector<8x128xbf16>, vector<128x384xbf16>, vector<8x384xf32> -> vector<8x384xf32>
    %c48 = arith.constant 48 : index
    %c0_117 = arith.constant 0 : index
    %439 = vector.load %arg12[%c48, %c0_117] : memref<64x384xf32, #tpu.memory_space<vmem>>, vector<8x384xf32>
    %440 = vector.extract_strided_slice %439 {offsets = [0, 0], sizes = [8, 128], strides = [1, 1]} : vector<8x384xf32> to vector<8x128xf32>
    %441 = vector.extract_strided_slice %403 {offsets = [0, 0], sizes = [8, 128], strides = [1, 1]} : vector<8x384xf32> to vector<8x128xf32>
    %442 = arith.addf %440, %441 : vector<8x128xf32>
    %cst_118 = arith.constant 5.000000e-01 : f32
    %443 = vector.broadcast %cst_118 : f32 to vector<8x128xf32>
    %444 = arith.mulf %443, %442 : vector<8x128xf32>
    %445 = math.tanh %444 : vector<8x128xf32>
    %cst_119 = arith.constant 5.000000e-01 : f32
    %446 = vector.broadcast %cst_119 : f32 to vector<8x128xf32>
    %447 = arith.mulf %446, %445 : vector<8x128xf32>
    %cst_120 = arith.constant 5.000000e-01 : f32
    %448 = vector.broadcast %cst_120 : f32 to vector<8x128xf32>
    %449 = arith.addf %447, %448 : vector<8x128xf32>
    %450 = vector.extract_strided_slice %439 {offsets = [0, 128], sizes = [8, 128], strides = [1, 1]} : vector<8x384xf32> to vector<8x128xf32>
    %451 = vector.extract_strided_slice %403 {offsets = [0, 128], sizes = [8, 128], strides = [1, 1]} : vector<8x384xf32> to vector<8x128xf32>
    %452 = arith.addf %450, %451 : vector<8x128xf32>
    %cst_121 = arith.constant 5.000000e-01 : f32
    %453 = vector.broadcast %cst_121 : f32 to vector<8x128xf32>
    %454 = arith.mulf %453, %452 : vector<8x128xf32>
    %455 = math.tanh %454 : vector<8x128xf32>
    %cst_122 = arith.constant 5.000000e-01 : f32
    %456 = vector.broadcast %cst_122 : f32 to vector<8x128xf32>
    %457 = arith.mulf %456, %455 : vector<8x128xf32>
    %cst_123 = arith.constant 5.000000e-01 : f32
    %458 = vector.broadcast %cst_123 : f32 to vector<8x128xf32>
    %459 = arith.addf %457, %458 : vector<8x128xf32>
    %460 = vector.extract_strided_slice %439 {offsets = [0, 256], sizes = [8, 128], strides = [1, 1]} : vector<8x384xf32> to vector<8x128xf32>
    %461 = vector.extract_strided_slice %403 {offsets = [0, 256], sizes = [8, 128], strides = [1, 1]} : vector<8x384xf32> to vector<8x128xf32>
    %462 = vector.broadcast %19 : vector<1x128xf32> to vector<8x128xf32>
    %463 = arith.addf %461, %462 : vector<8x128xf32>
    %464 = arith.mulf %449, %463 : vector<8x128xf32>
    %465 = arith.addf %460, %464 : vector<8x128xf32>
    %466 = math.tanh %465 : vector<8x128xf32>
    %467 = arith.subf %400, %466 : vector<8x128xf32>
    %468 = arith.mulf %459, %467 : vector<8x128xf32>
    %469 = arith.addf %466, %468 : vector<8x128xf32>
    %470 = arith.truncf %469 : vector<8x128xf32> to vector<8x128xbf16>
    %cst_124 = arith.constant dense<0.000000e+00> : vector<8x768xf32>
    %471 = tpu.matmul %470, %16, %cst_124 {dimension_numbers = #tpu.dot_dimension_numbers<[1], [0], [0], [1], [0, 0, 1, 1], [], []>} : vector<8x128xbf16>, vector<128x768xbf16>, vector<8x768xf32> -> vector<8x768xf32>
    %472 = vector.extract_strided_slice %471 {offsets = [0, 0], sizes = [8, 384], strides = [1, 1]} : vector<8x768xf32> to vector<8x384xf32>
    %473 = vector.extract_strided_slice %471 {offsets = [0, 384], sizes = [8, 384], strides = [1, 1]} : vector<8x768xf32> to vector<8x384xf32>
    %474 = vector.broadcast %18 : vector<1x384xf32> to vector<8x384xf32>
    %475 = arith.addf %473, %474 : vector<8x384xf32>
    %476 = vector.extract_strided_slice %475 {offsets = [0, 0], sizes = [8, 128], strides = [1, 1]} : vector<8x384xf32> to vector<8x128xf32>
    %477 = vector.extract_strided_slice %438 {offsets = [0, 0], sizes = [8, 128], strides = [1, 1]} : vector<8x384xf32> to vector<8x128xf32>
    %478 = arith.addf %476, %477 : vector<8x128xf32>
    %cst_125 = arith.constant 5.000000e-01 : f32
    %479 = vector.broadcast %cst_125 : f32 to vector<8x128xf32>
    %480 = arith.mulf %479, %478 : vector<8x128xf32>
    %481 = math.tanh %480 : vector<8x128xf32>
    %cst_126 = arith.constant 5.000000e-01 : f32
    %482 = vector.broadcast %cst_126 : f32 to vector<8x128xf32>
    %483 = arith.mulf %482, %481 : vector<8x128xf32>
    %cst_127 = arith.constant 5.000000e-01 : f32
    %484 = vector.broadcast %cst_127 : f32 to vector<8x128xf32>
    %485 = arith.addf %483, %484 : vector<8x128xf32>
    %486 = vector.extract_strided_slice %475 {offsets = [0, 128], sizes = [8, 128], strides = [1, 1]} : vector<8x384xf32> to vector<8x128xf32>
    %487 = vector.extract_strided_slice %438 {offsets = [0, 128], sizes = [8, 128], strides = [1, 1]} : vector<8x384xf32> to vector<8x128xf32>
    %488 = arith.addf %486, %487 : vector<8x128xf32>
    %cst_128 = arith.constant 5.000000e-01 : f32
    %489 = vector.broadcast %cst_128 : f32 to vector<8x128xf32>
    %490 = arith.mulf %489, %488 : vector<8x128xf32>
    %491 = math.tanh %490 : vector<8x128xf32>
    %cst_129 = arith.constant 5.000000e-01 : f32
    %492 = vector.broadcast %cst_129 : f32 to vector<8x128xf32>
    %493 = arith.mulf %492, %491 : vector<8x128xf32>
    %cst_130 = arith.constant 5.000000e-01 : f32
    %494 = vector.broadcast %cst_130 : f32 to vector<8x128xf32>
    %495 = arith.addf %493, %494 : vector<8x128xf32>
    %496 = vector.extract_strided_slice %475 {offsets = [0, 256], sizes = [8, 128], strides = [1, 1]} : vector<8x384xf32> to vector<8x128xf32>
    %497 = vector.extract_strided_slice %438 {offsets = [0, 256], sizes = [8, 128], strides = [1, 1]} : vector<8x384xf32> to vector<8x128xf32>
    %498 = vector.broadcast %20 : vector<1x128xf32> to vector<8x128xf32>
    %499 = arith.addf %497, %498 : vector<8x128xf32>
    %500 = arith.mulf %485, %499 : vector<8x128xf32>
    %501 = arith.addf %496, %500 : vector<8x128xf32>
    %502 = math.tanh %501 : vector<8x128xf32>
    %503 = arith.subf %436, %502 : vector<8x128xf32>
    %504 = arith.mulf %495, %503 : vector<8x128xf32>
    %505 = arith.addf %502, %504 : vector<8x128xf32>
    %506 = arith.truncf %505 : vector<8x128xf32> to vector<8x128xbf16>
    %cst_131 = arith.constant dense<0.000000e+00> : vector<8x384xf32>
    %507 = tpu.matmul %506, %17, %cst_131 {dimension_numbers = #tpu.dot_dimension_numbers<[1], [0], [0], [1], [0, 0, 1, 1], [], []>} : vector<8x128xbf16>, vector<128x384xbf16>, vector<8x384xf32> -> vector<8x384xf32>
    %c56 = arith.constant 56 : index
    %c0_132 = arith.constant 0 : index
    %508 = vector.load %arg12[%c56, %c0_132] : memref<64x384xf32, #tpu.memory_space<vmem>>, vector<8x384xf32>
    %509 = vector.extract_strided_slice %508 {offsets = [0, 0], sizes = [8, 128], strides = [1, 1]} : vector<8x384xf32> to vector<8x128xf32>
    %510 = vector.extract_strided_slice %472 {offsets = [0, 0], sizes = [8, 128], strides = [1, 1]} : vector<8x384xf32> to vector<8x128xf32>
    %511 = arith.addf %509, %510 : vector<8x128xf32>
    %cst_133 = arith.constant 5.000000e-01 : f32
    %512 = vector.broadcast %cst_133 : f32 to vector<8x128xf32>
    %513 = arith.mulf %512, %511 : vector<8x128xf32>
    %514 = math.tanh %513 : vector<8x128xf32>
    %cst_134 = arith.constant 5.000000e-01 : f32
    %515 = vector.broadcast %cst_134 : f32 to vector<8x128xf32>
    %516 = arith.mulf %515, %514 : vector<8x128xf32>
    %cst_135 = arith.constant 5.000000e-01 : f32
    %517 = vector.broadcast %cst_135 : f32 to vector<8x128xf32>
    %518 = arith.addf %516, %517 : vector<8x128xf32>
    %519 = vector.extract_strided_slice %508 {offsets = [0, 128], sizes = [8, 128], strides = [1, 1]} : vector<8x384xf32> to vector<8x128xf32>
    %520 = vector.extract_strided_slice %472 {offsets = [0, 128], sizes = [8, 128], strides = [1, 1]} : vector<8x384xf32> to vector<8x128xf32>
    %521 = arith.addf %519, %520 : vector<8x128xf32>
    %cst_136 = arith.constant 5.000000e-01 : f32
    %522 = vector.broadcast %cst_136 : f32 to vector<8x128xf32>
    %523 = arith.mulf %522, %521 : vector<8x128xf32>
    %524 = math.tanh %523 : vector<8x128xf32>
    %cst_137 = arith.constant 5.000000e-01 : f32
    %525 = vector.broadcast %cst_137 : f32 to vector<8x128xf32>
    %526 = arith.mulf %525, %524 : vector<8x128xf32>
    %cst_138 = arith.constant 5.000000e-01 : f32
    %527 = vector.broadcast %cst_138 : f32 to vector<8x128xf32>
    %528 = arith.addf %526, %527 : vector<8x128xf32>
    %529 = vector.extract_strided_slice %508 {offsets = [0, 256], sizes = [8, 128], strides = [1, 1]} : vector<8x384xf32> to vector<8x128xf32>
    %530 = vector.extract_strided_slice %472 {offsets = [0, 256], sizes = [8, 128], strides = [1, 1]} : vector<8x384xf32> to vector<8x128xf32>
    %531 = vector.broadcast %19 : vector<1x128xf32> to vector<8x128xf32>
    %532 = arith.addf %530, %531 : vector<8x128xf32>
    %533 = arith.mulf %518, %532 : vector<8x128xf32>
    %534 = arith.addf %529, %533 : vector<8x128xf32>
    %535 = math.tanh %534 : vector<8x128xf32>
    %536 = arith.subf %469, %535 : vector<8x128xf32>
    %537 = arith.mulf %528, %536 : vector<8x128xf32>
    %538 = arith.addf %535, %537 : vector<8x128xf32>
    %539 = arith.truncf %538 : vector<8x128xf32> to vector<8x128xbf16>
    %540 = vector.extract_strided_slice %16 {offsets = [0, 384], sizes = [128, 384], strides = [1, 1]} : vector<128x768xbf16> to vector<128x384xbf16>
    %cst_139 = arith.constant dense<0.000000e+00> : vector<8x384xf32>
    %541 = tpu.matmul %539, %540, %cst_139 {dimension_numbers = #tpu.dot_dimension_numbers<[1], [0], [0], [1], [0, 0, 1, 1], [], []>} : vector<8x128xbf16>, vector<128x384xbf16>, vector<8x384xf32> -> vector<8x384xf32>
    %542 = vector.broadcast %18 : vector<1x384xf32> to vector<8x384xf32>
    %543 = arith.addf %541, %542 : vector<8x384xf32>
    %544 = vector.extract_strided_slice %543 {offsets = [0, 0], sizes = [8, 128], strides = [1, 1]} : vector<8x384xf32> to vector<8x128xf32>
    %545 = vector.extract_strided_slice %507 {offsets = [0, 0], sizes = [8, 128], strides = [1, 1]} : vector<8x384xf32> to vector<8x128xf32>
    %546 = arith.addf %544, %545 : vector<8x128xf32>
    %cst_140 = arith.constant 5.000000e-01 : f32
    %547 = vector.broadcast %cst_140 : f32 to vector<8x128xf32>
    %548 = arith.mulf %547, %546 : vector<8x128xf32>
    %549 = math.tanh %548 : vector<8x128xf32>
    %cst_141 = arith.constant 5.000000e-01 : f32
    %550 = vector.broadcast %cst_141 : f32 to vector<8x128xf32>
    %551 = arith.mulf %550, %549 : vector<8x128xf32>
    %cst_142 = arith.constant 5.000000e-01 : f32
    %552 = vector.broadcast %cst_142 : f32 to vector<8x128xf32>
    %553 = arith.addf %551, %552 : vector<8x128xf32>
    %554 = vector.extract_strided_slice %543 {offsets = [0, 128], sizes = [8, 128], strides = [1, 1]} : vector<8x384xf32> to vector<8x128xf32>
    %555 = vector.extract_strided_slice %507 {offsets = [0, 128], sizes = [8, 128], strides = [1, 1]} : vector<8x384xf32> to vector<8x128xf32>
    %556 = arith.addf %554, %555 : vector<8x128xf32>
    %cst_143 = arith.constant 5.000000e-01 : f32
    %557 = vector.broadcast %cst_143 : f32 to vector<8x128xf32>
    %558 = arith.mulf %557, %556 : vector<8x128xf32>
    %559 = math.tanh %558 : vector<8x128xf32>
    %cst_144 = arith.constant 5.000000e-01 : f32
    %560 = vector.broadcast %cst_144 : f32 to vector<8x128xf32>
    %561 = arith.mulf %560, %559 : vector<8x128xf32>
    %cst_145 = arith.constant 5.000000e-01 : f32
    %562 = vector.broadcast %cst_145 : f32 to vector<8x128xf32>
    %563 = arith.addf %561, %562 : vector<8x128xf32>
    %564 = vector.extract_strided_slice %543 {offsets = [0, 256], sizes = [8, 128], strides = [1, 1]} : vector<8x384xf32> to vector<8x128xf32>
    %565 = vector.extract_strided_slice %507 {offsets = [0, 256], sizes = [8, 128], strides = [1, 1]} : vector<8x384xf32> to vector<8x128xf32>
    %566 = vector.broadcast %20 : vector<1x128xf32> to vector<8x128xf32>
    %567 = arith.addf %565, %566 : vector<8x128xf32>
    %568 = arith.mulf %553, %567 : vector<8x128xf32>
    %569 = arith.addf %564, %568 : vector<8x128xf32>
    %570 = math.tanh %569 : vector<8x128xf32>
    %571 = arith.subf %505, %570 : vector<8x128xf32>
    %572 = arith.mulf %563, %571 : vector<8x128xf32>
    %573 = arith.addf %570, %572 : vector<8x128xf32>
    %c0_i32_146 = arith.constant 0 : i32
    %574 = tpu.memref_slice %arg15[%c0_i32_146] : memref<2x!tpu.dma_semaphore, #tpu.memory_space<semaphore_mem>> -> memref<1x!tpu.dma_semaphore, #tpu.memory_space<semaphore_mem>>
    %575 = tpu.memref_squeeze %574 : memref<1x!tpu.dma_semaphore, #tpu.memory_space<semaphore_mem>> -> memref<!tpu.dma_semaphore, #tpu.memory_space<semaphore_mem>>
    tpu.wait_dma2 semaphore(%575 : memref<!tpu.dma_semaphore, #tpu.memory_space<semaphore_mem>>) src(%arg9 : memref<144x256xf32, #tpu.memory_space<any>>) dst(%arg13 : memref<144x256xf32, #tpu.memory_space<vmem>>)
    %c1_i32_147 = arith.constant 1 : i32
    %576 = tpu.memref_slice %arg15[%c1_i32_147] : memref<2x!tpu.dma_semaphore, #tpu.memory_space<semaphore_mem>> -> memref<1x!tpu.dma_semaphore, #tpu.memory_space<semaphore_mem>>
    %577 = tpu.memref_squeeze %576 : memref<1x!tpu.dma_semaphore, #tpu.memory_space<semaphore_mem>> -> memref<!tpu.dma_semaphore, #tpu.memory_space<semaphore_mem>>
    tpu.wait_dma2 semaphore(%577 : memref<!tpu.dma_semaphore, #tpu.memory_space<semaphore_mem>>) src(%arg10 : memref<264x128xf32, #tpu.memory_space<any>>) dst(%arg14 : memref<264x128xf32, #tpu.memory_space<vmem>>)
    %c0_148 = arith.constant 0 : index
    %c0_149 = arith.constant 0 : index
    %578 = vector.load %arg13[%c0_148, %c0_149] : memref<144x256xf32, #tpu.memory_space<vmem>>, vector<128x256xf32>
    %c128 = arith.constant 128 : index
    %c0_150 = arith.constant 0 : index
    %579 = vector.load %arg13[%c128, %c0_150] : memref<144x256xf32, #tpu.memory_space<vmem>>, vector<1x256xf32>
    %c136 = arith.constant 136 : index
    %c0_151 = arith.constant 0 : index
    %580 = vector.load %arg13[%c136, %c0_151] : memref<144x256xf32, #tpu.memory_space<vmem>>, vector<1x256xf32>
    %cst_152 = arith.constant dense<0.000000e+00> : vector<8x256xf32>
    %581 = tpu.matmul %573, %578, %cst_152 {dimension_numbers = #tpu.dot_dimension_numbers<[1], [0], [0], [1], [0, 0, 1, 1], [], []>} : vector<8x128xf32>, vector<128x256xf32>, vector<8x256xf32> -> vector<8x256xf32>
    %c0_153 = arith.constant 0 : index
    %c0_154 = arith.constant 0 : index
    %582 = vector.load %arg1[%c0_153, %c0_154] : memref<8x1xf32, #tpu.memory_space<vmem>>, vector<8x1xf32>
    %583 = vector.broadcast %582 : vector<8x1xf32> to vector<8x256xf32>
    %584 = vector.broadcast %579 : vector<1x256xf32> to vector<8x256xf32>
    %585 = arith.mulf %583, %584 : vector<8x256xf32>
    %586 = arith.addf %581, %585 : vector<8x256xf32>
    %587 = vector.broadcast %580 : vector<1x256xf32> to vector<8x256xf32>
    %588 = arith.addf %586, %587 : vector<8x256xf32>
    %cst_155 = arith.constant 0.000000e+00 : f32
    %589 = vector.broadcast %cst_155 : f32 to vector<8x256xf32>
    %590 = arith.maximumf %588, %589 : vector<8x256xf32>
    %c0_156 = arith.constant 0 : index
    %c0_157 = arith.constant 0 : index
    %591 = vector.load %arg14[%c0_156, %c0_157] : memref<264x128xf32, #tpu.memory_space<vmem>>, vector<256x128xf32>
    %c256 = arith.constant 256 : index
    %c0_158 = arith.constant 0 : index
    %592 = vector.load %arg14[%c256, %c0_158] : memref<264x128xf32, #tpu.memory_space<vmem>>, vector<1x128xf32>
    %cst_159 = arith.constant dense<0.000000e+00> : vector<8x128xf32>
    %593 = tpu.matmul %590, %591, %cst_159 {dimension_numbers = #tpu.dot_dimension_numbers<[1], [0], [0], [1], [0, 0, 1, 1], [], []>} : vector<8x256xf32>, vector<256x128xf32>, vector<8x128xf32> -> vector<8x128xf32>
    %594 = vector.broadcast %592 : vector<1x128xf32> to vector<8x128xf32>
    %595 = arith.addf %593, %594 : vector<8x128xf32>
    %596 = math.tanh %595 : vector<8x128xf32>
    %cst_160 = arith.constant 1.000000e+00 : f32
    %597 = vector.broadcast %cst_160 : f32 to vector<8x128xf32>
    %598 = arith.mulf %597, %596 : vector<8x128xf32>
    %c0_161 = arith.constant 0 : index
    %c0_162 = arith.constant 0 : index
    %599 = vector.load %arg11[%c0_161, %c0_162] : memref<8x128xf32, #tpu.memory_space<vmem>>, vector<8x128xf32>
    tpu.vector_store %arg11[%c0_161, %c0_162], %598 {strides = array<i32>} : memref<8x128xf32, #tpu.memory_space<vmem>>, vector<8x128xf32>,
    return
  }
}

</mosaic_0001>

<llo_original>
// kernel: tpu_custom_call.1
$region0: #{tpu_custom_call.1}
  #allocation0 [shape = 'u32[]', space=smem, size = 0x4, offset = 0x4, fixed_abs, tag = 'smem constant byte address 0x4 - core index']
  #allocation1 [shape = 'u32[144,128]{1,0:T(1,128)}', space=vmem, size = 0x12000, scoped, tag = 'internal scratch']
  #allocation2 [shape = 'f32[64,384]{1,0:T(8,128)}', space=vmem, size = 0x18000, scoped, tag = 'scratch operand']
  #allocation3 [shape = 'f32[144,256]{1,0:T(8,128)}', space=vmem, size = 0x24000, scoped, tag = 'scratch operand']
  #allocation4 [shape = 'f32[264,128]{1,0:T(8,128)}', space=vmem, size = 0x21000, scoped, tag = 'scratch operand']
  #allocation5 [shape = 's32[2]{0}', space=sflag, size = 0x8, scoped, tag = 'scratch operand']
  #allocation12 [shape = 's32[]', space=sflag, size = 0x4, offset = 0, fixed_abs, tag = 'sflag constant byte address 0x0 - dummy sync flag']
  #allocation13 [shape = 's32[]', space=sflag, size = 0x4, offset = 0, fixed_abs, tag = 'sflag constant byte address 0x0 - dummy sync flag']
  #allocation14 [shape = 'u32[]', space=smem, size = 0x4, offset = 0x44, fixed_abs, tag = 'smem constant byte address 0x44 - assertion arg 0']
  #allocation15 [shape = 'u32[]', space=smem, size = 0x4, offset = 0x48, fixed_abs, tag = 'smem constant byte address 0x48 - assertion arg 1']
  #allocation16 [shape = 's32[]', space=sflag, size = 0x4, offset = 0, fixed_abs, tag = 'sflag constant byte address 0x0 - dummy sync flag']
  #allocation17 [shape = 's32[]', space=sflag, size = 0x4, offset = 0, fixed_abs, tag = 'sflag constant byte address 0x0 - dummy sync flag']
  %s0 = inlined_call_operand.vmem [shape: f32[64,8], index: 0, kind: input, shape index: {}]
  %s1 = inlined_call_operand.vmem [shape: f32[8,1], index: 1, kind: input, shape index: {}]
  %s2 = inlined_call_operand.vmem [shape: f32[8,384], index: 2, kind: input, shape index: {}]
  %s3 = inlined_call_operand.vmem [shape: f32[1,384], index: 3, kind: input, shape index: {}]
  %s4 = inlined_call_operand.vmem [shape: f32[1,128], index: 4, kind: input, shape index: {}]
  %s5 = inlined_call_operand.hbm [shape: bf16[128,768], index: 5, kind: input, shape index: {}]
  %s6 = inlined_call_operand.vmem [shape: f32[1,384], index: 6, kind: input, shape index: {}]
  %s7 = inlined_call_operand.vmem [shape: f32[1,128], index: 7, kind: input, shape index: {}]
  %s8 = inlined_call_operand.hbm [shape: bf16[128,384], index: 8, kind: input, shape index: {}]
  %s9 = inlined_call_operand.hbm [shape: f32[144,256], index: 9, kind: input, shape index: {}]
  %s10 = inlined_call_operand.hbm [shape: f32[264,128], index: 10, kind: input, shape index: {}]
  %s11 = inlined_call_operand.hbm [shape: f32[8,128], index: 11, kind: output, shape index: {}]
  %s12 = sld [smem:[#allocation0]]
  $region62: #{tpu_custom_call.1} parent=0
    _
  %s14 = ssub.s32 1, %s12
  %s15 = scalar_select 0, %s14, %s12
  $region1: #{tpu_custom_call.1} parent=0
    #allocation6 [shape = 'u8[196608]{0}', space=vmem, size = 0x30000, scoped, tag = 'input window, operand 5, single buffered']
    #allocation7 [shape = 's32[1]{0}', space=sflag, size = 0x4, scoped, tag = 'scoped memory for tpu_custom_call.1']
    #allocation8 [shape = 's32[1]{0}', space=sflag, size = 0x4, scoped, tag = 'scoped memory for tpu_custom_call.1']
    #allocation9 [shape = 'u8[98304]{0}', space=vmem, size = 0x18000, scoped, tag = 'input window, operand 8, single buffered']
    #allocation10 [shape = 's32[1]{0}', space=sflag, size = 0x4, scoped, tag = 'scoped memory for tpu_custom_call.1']
    #allocation11 [shape = 'u8[4096]{0}', space=vmem, size = 0x1000, scoped, tag = 'output window, operand 0, single buffered']
    %16 = vsyncpa [#allocation7], 0
    %17 = vsyncpa [#allocation10], 0
    %18 = vsyncpa [#allocation8], 0
    // Predicated region
    $region2: #{tpu_custom_call.1} parent=1 // pred_check
      _
    $region3: #{tpu_custom_call.1} parent=1 // pred_check_branch
      %20 = sbr.rel (0) target = $region5
    $region4: #{tpu_custom_call.1} parent=1 // pred_region
      _
    $region5: #{tpu_custom_call.1} parent=1 // pred_fallthru
      _
    // Predicated region
    $region6: #{tpu_custom_call.1} parent=1 // pred_check
      _
    $region7: #{tpu_custom_call.1} parent=1 // pred_check_branch
      %22 = sbr.rel (0) target = $region9
    $region8: #{tpu_custom_call.1} parent=1 // pred_region
      _
    $region9: #{tpu_custom_call.1} parent=1 // pred_fallthru
      _
    // Predicated region
    $region10: #{tpu_custom_call.1} parent=1 // pred_check
      _
    $region11: #{tpu_custom_call.1} parent=1 // pred_check_branch
      %24 = sbr.rel (0) target = $region13
    $region12: #{tpu_custom_call.1} parent=1 // pred_region
      _
    $region13: #{tpu_custom_call.1} parent=1 // pred_fallthru
      _
    // Predicated region
    $region14: #{tpu_custom_call.1} parent=1 // pred_check
      _
    $region15: #{tpu_custom_call.1} parent=1 // pred_check_branch
      %26 = sbr.rel (0) target = $region17
    $region16: #{tpu_custom_call.1} parent=1 // pred_region
      _
    $region17: #{tpu_custom_call.1} parent=1 // pred_fallthru
      _
    // Predicated region
    $region18: #{tpu_custom_call.1} parent=1 // pred_check
      _
    $region19: #{tpu_custom_call.1} parent=1 // pred_check_branch
      %28 = sbr.rel (0) target = $region21
    $region20: #{tpu_custom_call.1} parent=1 // pred_region
      _
    $region21: #{tpu_custom_call.1} parent=1 // pred_fallthru
      _
    // Predicated region
    $region22: #{tpu_custom_call.1} parent=1 // pred_check
      _
    $region23: #{tpu_custom_call.1} parent=1 // pred_check_branch
      %30 = sbr.rel (0) target = $region25
    $region24: #{tpu_custom_call.1} parent=1 // pred_region
      %s32 = ssub.s32 6144, 6144
      %33 = vsyncadd [#allocation7], %s32
      %s34 = sshll.u32 [#allocation6], 4
      %s35 = int_to_ptr.vmem [resolvable:$true] %s34
      %40 = dma.hbm_to_vmem [thread:$0]  %s5, 6144, %s35, [#allocation7], 384, 384, 24
    $region25: #{tpu_custom_call.1} parent=1 // pred_fallthru
      _
    // Predicated region
    $region26: #{tpu_custom_call.1} parent=1 // pred_check
      _
    $region27: #{tpu_custom_call.1} parent=1 // pred_check_branch
      %42 = sbr.rel (0) target = $region29
    $region28: #{tpu_custom_call.1} parent=1 // pred_region
      _
    $region29: #{tpu_custom_call.1} parent=1 // pred_fallthru
      _
    // Predicated region
    $region30: #{tpu_custom_call.1} parent=1 // pred_check
      _
    $region31: #{tpu_custom_call.1} parent=1 // pred_check_branch
      %44 = sbr.rel (0) target = $region33
    $region32: #{tpu_custom_call.1} parent=1 // pred_region
      _
    $region33: #{tpu_custom_call.1} parent=1 // pred_fallthru
      _
    // Predicated region
    $region34: #{tpu_custom_call.1} parent=1 // pred_check
      _
    $region35: #{tpu_custom_call.1} parent=1 // pred_check_branch
      %46 = sbr.rel (0) target = $region37
    $region36: #{tpu_custom_call.1} parent=1 // pred_region
      %s48 = ssub.s32 3072, 3072
      %49 = vsyncadd [#allocation10], %s48
      %s50 = sshll.u32 [#allocation9], 4
      %s51 = int_to_ptr.vmem [resolvable:$true] %s50
      %56 = dma.hbm_to_vmem [thread:$0]  %s8, 3072, %s51, [#allocation10], 192, 192, 12
    $region37: #{tpu_custom_call.1} parent=1 // pred_fallthru
      _
    // Predicated region
    $region38: #{tpu_custom_call.1} parent=1 // pred_check
      _
    $region39: #{tpu_custom_call.1} parent=1 // pred_check_branch
      %58 = sbr.rel (0) target = $region41
    $region40: #{tpu_custom_call.1} parent=1 // pred_region
      %59 = dma.done [#allocation7], 6144
    $region41: #{tpu_custom_call.1} parent=1 // pred_fallthru
      _
    // Predicated region
    $region42: #{tpu_custom_call.1} parent=1 // pred_check
      _
    $region43: #{tpu_custom_call.1} parent=1 // pred_check_branch
      %61 = sbr.rel (0) target = $region45
    $region44: #{tpu_custom_call.1} parent=1 // pred_region
      %62 = dma.done [#allocation10], 3072
    $region45: #{tpu_custom_call.1} parent=1 // pred_fallthru
      _
    // Predicated region
    $region46: #{tpu_custom_call.1} parent=1 // pred_check
      _
    $region47: #{tpu_custom_call.1} parent=1 // pred_check_branch
      %65 = sbr.rel target = $region49
    $region48: #{tpu_custom_call.1} parent=1 // pred_region
      %66 = sst [smem:[#allocation14]] [#allocation13]
      %67 = sst [smem:[#allocation15]] [#allocation12]
    $region49: #{tpu_custom_call.1} parent=1 // pred_fallthru
      _
    %69 = shalt.err (0)
    %s71 = sshll.u32 [#allocation3], 4
    %s72 = int_to_ptr.vmem [resolvable:$true] %s71
    %74 = dma.hbm_to_vmem [thread:$0]  %s9, 4608, %s72, [#allocation5]
    %s75 = scalar_lea.sflag [#allocation5], 1
    // Predicated region
    $region50: #{tpu_custom_call.1} parent=1 // pred_check
      _
    $region51: #{tpu_custom_call.1} parent=1 // pred_check_branch
      %77 = sbr.rel target = $region53
    $region52: #{tpu_custom_call.1} parent=1 // pred_region
      %78 = sst [smem:[#allocation14]] [#allocation17]
      %79 = sst [smem:[#allocation15]] [#allocation16]
    $region53: #{tpu_custom_call.1} parent=1 // pred_fallthru
      _
    %81 = shalt.err (0)
    %s83 = sshll.u32 [#allocation4], 4
    %s84 = int_to_ptr.vmem [resolvable:$true] %s83
    %86 = dma.hbm_to_vmem [thread:$0]  %s10, 4224, %s84, %s75
    %v87 = vld [vmem:[%s2] sm:$0xff]
    %v88 = vld [vmem:[%s2 + $0x8] sm:$0xff]
    %v89 = vld [vmem:[%s2 + $0x10] sm:$0xff]
    %v90 = vld [vmem:[%s3] sm:$0x7]
    %v91 = vld [vmem:[%s0] sm:$0xff]
    %v93 = vlaneseq
    %v94 = vshrl.u32 %v93, 7
    %v95 = vsub.s32 0, %v94
    %v96 = vrot.slane %v90, %v95
    %v97 = vlaneseq
    %v98 = vshrl.u32 %v97, 7
    %v99 = vsub.s32 1, %v98
    %v100 = vrot.slane %v90, %v99
    %v101 = vlaneseq
    %v102 = vshrl.u32 %v101, 7
    %v103 = vsub.s32 2, %v102
    %v104 = vrot.slane %v90, %v103
    %vm108 = vcmask 64512
    %v110 = vsel %vm108, %v91, 0
    %112 = vmatprep.subr.mxu0 0.0
    %113 = vmatpush1.msra.mxu0 0.0
    %114 = vmatprep.subr.mxu0 0.0
    %115 = vmatpush1.msra.mxu0 0.0
    %116 = vmatprep.subr.mxu0 0.0
    %117 = vmatpush1.msra.mxu0 0.0
    %118 = vmatprep.subr.mxu0 0.0
    %119 = vmatpush1.msra.mxu0 0.0
    %120 = vmatprep.subr.mxu0 0.0
    %121 = vmatpush1.msra.mxu0 0.0
    %122 = vmatprep.subr.mxu0 0.0
    %123 = vmatpush1.msra.mxu0 0.0
    %124 = vmatprep.subr.mxu0 0.0
    %125 = vmatpush1.msra.mxu0 0.0
    %126 = vmatprep.subr.mxu0 0.0
    %127 = vmatpush1.msra.mxu0 0.0
    %128 = vmatprep.subr.mxu0 0.0
    %129 = vmatpush1.msra.mxu0 0.0
    %130 = vmatprep.subr.mxu0 0.0
    %131 = vmatpush1.msra.mxu0 0.0
    %132 = vmatprep.subr.mxu0 0.0
    %133 = vmatpush1.msra.mxu0 0.0
    %134 = vmatprep.subr.mxu0 0.0
    %135 = vmatpush1.msra.mxu0 0.0
    %136 = vmatprep.subr.mxu0 0.0
    %137 = vmatpush1.msra.mxu0 0.0
    %138 = vmatprep.subr.mxu0 0.0
    %139 = vmatpush1.msra.mxu0 0.0
    %140 = vmatprep.subr.mxu0 0.0
    %141 = vmatpush1.msra.mxu0 0.0
    %142 = vmatprep.subr.mxu0 %v88
    %143 = vmatpush1.msra.mxu0 %v87
    %144 = vmatprep.subr.mxu0 0.0
    %145 = vmatpush2.msra.mxu0 0.0
    %146 = vmatprep.subr.mxu0 0.0
    %147 = vmatpush2.msra.mxu0 0.0
    %148 = vmatprep.subr.mxu0 0.0
    %149 = vmatpush2.msra.mxu0 0.0
    %150 = vmatprep.subr.mxu0 0.0
    %151 = vmatpush2.msra.mxu0 0.0
    %152 = vmatprep.subr.mxu0 0.0
    %153 = vmatpush2.msra.mxu0 0.0
    %154 = vmatprep.subr.mxu0 0.0
    %155 = vmatpush2.msra.mxu0 0.0
    %156 = vmatprep.subr.mxu0 0.0
    %157 = vmatpush2.msra.mxu0 0.0
    %158 = vmatprep.subr.mxu0 0.0
    %159 = vmatpush2.msra.mxu0 0.0
    %160 = vmatprep.subr.mxu0 0.0
    %161 = vmatpush2.msra.mxu0 0.0
    %162 = vmatprep.subr.mxu0 0.0
    %163 = vmatpush2.msra.mxu0 0.0
    %164 = vmatprep.subr.mxu0 0.0
    %165 = vmatpush2.msra.mxu0 0.0
    %166 = vmatprep.subr.mxu0 0.0
    %167 = vmatpush2.msra.mxu0 0.0
    %168 = vmatprep.subr.mxu0 0.0
    %169 = vmatpush2.msra.mxu0 0.0
    %170 = vmatprep.subr.mxu0 0.0
    %171 = vmatpush2.msra.mxu0 0.0
    %172 = vmatprep.subr.mxu0 0.0
    %173 = vmatpush2.msra.mxu0 0.0
    %174 = vmatprep.subr.mxu0 0.0
    %175 = vmatpush2.msra.mxu0 0.0
    %176 = vmatprep.mubr.f32.mxu0 0.0
    %177 = vmatmul.mubr.f32.gmra.mxu0 %v110
    %v178 = vpop.f32.mrf.mxu0
    %v179 = vadd.f32 %v96, %v178
    %v180 = vpop.f32.mrf.mxu0
    %v181 = vadd.f32 %v100, %v180
    %182 = vdwg.mxu0
    %183 = vmatprep.subr.mxu0 0.0
    %184 = vmatpush1.msra.mxu0 0.0
    %185 = vmatprep.subr.mxu0 0.0
    %186 = vmatpush1.msra.mxu0 0.0
    %187 = vmatprep.subr.mxu0 0.0
    %188 = vmatpush1.msra.mxu0 0.0
    %189 = vmatprep.subr.mxu0 0.0
    %190 = vmatpush1.msra.mxu0 0.0
    %191 = vmatprep.subr.mxu0 0.0
    %192 = vmatpush1.msra.mxu0 0.0
    %193 = vmatprep.subr.mxu0 0.0
    %194 = vmatpush1.msra.mxu0 0.0
    %195 = vmatprep.subr.mxu0 0.0
    %196 = vmatpush1.msra.mxu0 0.0
    %197 = vmatprep.subr.mxu0 0.0
    %198 = vmatpush1.msra.mxu0 0.0
    %199 = vmatprep.subr.mxu0 0.0
    %200 = vmatpush1.msra.mxu0 0.0
    %201 = vmatprep.subr.mxu0 0.0
    %202 = vmatpush1.msra.mxu0 0.0
    %203 = vmatprep.subr.mxu0 0.0
    %204 = vmatpush1.msra.mxu0 0.0
    %205 = vmatprep.subr.mxu0 0.0
    %206 = vmatpush1.msra.mxu0 0.0
    %207 = vmatprep.subr.mxu0 0.0
    %208 = vmatpush1.msra.mxu0 0.0
    %209 = vmatprep.subr.mxu0 0.0
    %210 = vmatpush1.msra.mxu0 0.0
    %211 = vmatprep.subr.mxu0 0.0
    %212 = vmatpush1.msra.mxu0 0.0
    %213 = vmatprep.subr.mxu0 0.0
    %214 = vmatpush1.msra.mxu0 %v89
    %215 = vmatprep.subr.mxu0 0.0
    %216 = vmatpush2.msra.mxu0 0.0
    %217 = vmatprep.subr.mxu0 0.0
    %218 = vmatpush2.msra.mxu0 0.0
    %219 = vmatprep.subr.mxu0 0.0
    %220 = vmatpush2.msra.mxu0 0.0
    %221 = vmatprep.subr.mxu0 0.0
    %222 = vmatpush2.msra.mxu0 0.0
    %223 = vmatprep.subr.mxu0 0.0
    %224 = vmatpush2.msra.mxu0 0.0
    %225 = vmatprep.subr.mxu0 0.0
    %226 = vmatpush2.msra.mxu0 0.0
    %227 = vmatprep.subr.mxu0 0.0
    %228 = vmatpush2.msra.mxu0 0.0
    %229 = vmatprep.subr.mxu0 0.0
    %230 = vmatpush2.msra.mxu0 0.0
    %231 = vmatprep.subr.mxu0 0.0
    %232 = vmatpush2.msra.mxu0 0.0
    %233 = vmatprep.subr.mxu0 0.0
    %234 = vmatpush2.msra.mxu0 0.0
    %235 = vmatprep.subr.mxu0 0.0
    %236 = vmatpush2.msra.mxu0 0.0
    %237 = vmatprep.subr.mxu0 0.0
    %238 = vmatpush2.msra.mxu0 0.0
    %239 = vmatprep.subr.mxu0 0.0
    %240 = vmatpush2.msra.mxu0 0.0
    %241 = vmatprep.subr.mxu0 0.0
    %242 = vmatpush2.msra.mxu0 0.0
    %243 = vmatprep.subr.mxu0 0.0
    %244 = vmatpush2.msra.mxu0 0.0
    %245 = vmatprep.subr.mxu0 0.0
    %246 = vmatpush2.msra.mxu0 0.0
    %247 = vmatprep.mubr.f32.mxu0 0.0
    %248 = vmatmul.mubr.f32.gmra.mxu0 %v110
    %v249 = vpop.f32.mrf.mxu0
    %v250 = vadd.f32 %v104, %v249
    %v251 = vpop.f32.mrf.mxu0
    %252 = vdwg.mxu0
    %253 = vst [vmem:[#allocation2] sm:$0xff] %v179
    %254 = vst [vmem:[#allocation2 + $0x8] sm:$0xff] %v181
    %255 = vst [vmem:[#allocation2 + $0x10] sm:$0xff] %v250
    %v256 = vld [vmem:[%s0 + $0x8] sm:$0xff]
    %v257 = vld [vmem:[%s0 + $0x10] sm:$0xff]
    %v258 = vld [vmem:[%s0 + $0x18] sm:$0xff]
    %v259 = vld [vmem:[%s0 + $0x20] sm:$0xff]
    %v260 = vld [vmem:[%s0 + $0x28] sm:$0xff]
    %v261 = vld [vmem:[%s0 + $0x30] sm:$0xff]
    %v262 = vld [vmem:[%s0 + $0x38] sm:$0xff]
    %v264 = vsel %vm108, %v256, 0
    %v267 = vsel %vm108, %v257, 0
    %v270 = vsel %vm108, %v258, 0
    %v273 = vsel %vm108, %v259, 0
    %v276 = vsel %vm108, %v260, 0
    %v279 = vsel %vm108, %v261, 0
    %v282 = vsel %vm108, %v262, 0
    %284 = vmatprep.subr.mxu0 0.0
    %285 = vmatpush1.msra.mxu0 0.0
    %286 = vmatprep.subr.mxu0 0.0
    %287 = vmatpush1.msra.mxu0 0.0
    %288 = vmatprep.subr.mxu0 0.0
    %289 = vmatpush1.msra.mxu0 0.0
    %290 = vmatprep.subr.mxu0 0.0
    %291 = vmatpush1.msra.mxu0 0.0
    %292 = vmatprep.subr.mxu0 0.0
    %293 = vmatpush1.msra.mxu0 0.0
    %294 = vmatprep.subr.mxu0 0.0
    %295 = vmatpush1.msra.mxu0 0.0
    %296 = vmatprep.subr.mxu0 0.0
    %297 = vmatpush1.msra.mxu0 0.0
    %298 = vmatprep.subr.mxu0 0.0
    %299 = vmatpush1.msra.mxu0 0.0
    %300 = vmatprep.subr.mxu0 0.0
    %301 = vmatpush1.msra.mxu0 0.0
    %302 = vmatprep.subr.mxu0 0.0
    %303 = vmatpush1.msra.mxu0 0.0
    %304 = vmatprep.subr.mxu0 0.0
    %305 = vmatpush1.msra.mxu0 0.0
    %306 = vmatprep.subr.mxu0 0.0
    %307 = vmatpush1.msra.mxu0 0.0
    %308 = vmatprep.subr.mxu0 0.0
    %309 = vmatpush1.msra.mxu0 0.0
    %310 = vmatprep.subr.mxu0 0.0
    %311 = vmatpush1.msra.mxu0 0.0
    %312 = vmatprep.subr.mxu0 0.0
    %313 = vmatpush1.msra.mxu0 0.0
    %314 = vmatprep.subr.mxu0 %v88
    %315 = vmatpush1.msra.mxu0 %v87
    %316 = vmatprep.subr.mxu0 0.0
    %317 = vmatpush2.msra.mxu0 0.0
    %318 = vmatprep.subr.mxu0 0.0
    %319 = vmatpush2.msra.mxu0 0.0
    %320 = vmatprep.subr.mxu0 0.0
    %321 = vmatpush2.msra.mxu0 0.0
    %322 = vmatprep.subr.mxu0 0.0
    %323 = vmatpush2.msra.mxu0 0.0
    %324 = vmatprep.subr.mxu0 0.0
    %325 = vmatpush2.msra.mxu0 0.0
    %326 = vmatprep.subr.mxu0 0.0
    %327 = vmatpush2.msra.mxu0 0.0
    %328 = vmatprep.subr.mxu0 0.0
    %329 = vmatpush2.msra.mxu0 0.0
    %330 = vmatprep.subr.mxu0 0.0
    %331 = vmatpush2.msra.mxu0 0.0
    %332 = vmatprep.subr.mxu0 0.0
    %333 = vmatpush2.msra.mxu0 0.0
    %334 = vmatprep.subr.mxu0 0.0
    %335 = vmatpush2.msra.mxu0 0.0
    %336 = vmatprep.subr.mxu0 0.0
    %337 = vmatpush2.msra.mxu0 0.0
    %338 = vmatprep.subr.mxu0 0.0
    %339 = vmatpush2.msra.mxu0 0.0
    %340 = vmatprep.subr.mxu0 0.0
    %341 = vmatpush2.msra.mxu0 0.0
    %342 = vmatprep.subr.mxu0 0.0
    %343 = vmatpush2.msra.mxu0 0.0
    %344 = vmatprep.subr.mxu0 0.0
    %345 = vmatpush2.msra.mxu0 0.0
    %346 = vmatprep.subr.mxu0 0.0
    %347 = vmatpush2.msra.mxu0 0.0
    %348 = vmatprep.mubr.f32.mxu0 0.0
    %349 = vmatmul.mubr.f32.gmra.mxu0 %v264
    %v350 = vpop.f32.mrf.mxu0
    %v351 = vadd.f32 %v96, %v350
    %v352 = vpop.f32.mrf.mxu0
    %v353 = vadd.f32 %v100, %v352
    %354 = vmatprep.mubr.f32.mxu0 0.0
    %355 = vmatmul.mubr.f32.gmra.mxu0 %v267
    %v356 = vpop.f32.mrf.mxu0
    %v357 = vadd.f32 %v96, %v356
    %v358 = vpop.f32.mrf.mxu0
    %v359 = vadd.f32 %v100, %v358
    %360 = vmatprep.mubr.f32.mxu0 0.0
    %361 = vmatmul.mubr.f32.gmra.mxu0 %v270
    %v362 = vpop.f32.mrf.mxu0
    %v363 = vadd.f32 %v96, %v362
    %v364 = vpop.f32.mrf.mxu0
    %v365 = vadd.f32 %v100, %v364
    %366 = vmatprep.mubr.f32.mxu0 0.0
    %367 = vmatmul.mubr.f32.gmra.mxu0 %v273
    %v368 = vpop.f32.mrf.mxu0
    %v369 = vadd.f32 %v96, %v368
    %v370 = vpop.f32.mrf.mxu0
    %v371 = vadd.f32 %v100, %v370
    %372 = vmatprep.mubr.f32.mxu0 0.0
    %373 = vmatmul.mubr.f32.gmra.mxu0 %v276
    %v374 = vpop.f32.mrf.mxu0
    %v375 = vadd.f32 %v96, %v374
    %v376 = vpop.f32.mrf.mxu0
    %v377 = vadd.f32 %v100, %v376
    %378 = vmatprep.mubr.f32.mxu0 0.0
    %379 = vmatmul.mubr.f32.gmra.mxu0 %v279
    %v380 = vpop.f32.mrf.mxu0
    %v381 = vadd.f32 %v96, %v380
    %v382 = vpop.f32.mrf.mxu0
    %v383 = vadd.f32 %v100, %v382
    %384 = vmatprep.mubr.f32.mxu0 0.0
    %385 = vmatmul.mubr.f32.gmra.mxu0 %v282
    %v386 = vpop.f32.mrf.mxu0
    %v387 = vadd.f32 %v96, %v386
    %v388 = vpop.f32.mrf.mxu0
    %v389 = vadd.f32 %v100, %v388
    %390 = vdwg.mxu0
    %391 = vmatprep.subr.mxu0 0.0
    %392 = vmatpush1.msra.mxu0 0.0
    %393 = vmatprep.subr.mxu0 0.0
    %394 = vmatpush1.msra.mxu0 0.0
    %395 = vmatprep.subr.mxu0 0.0
    %396 = vmatpush1.msra.mxu0 0.0
    %397 = vmatprep.subr.mxu0 0.0
    %398 = vmatpush1.msra.mxu0 0.0
    %399 = vmatprep.subr.mxu0 0.0
    %400 = vmatpush1.msra.mxu0 0.0
    %401 = vmatprep.subr.mxu0 0.0
    %402 = vmatpush1.msra.mxu0 0.0
    %403 = vmatprep.subr.mxu0 0.0
    %404 = vmatpush1.msra.mxu0 0.0
    %405 = vmatprep.subr.mxu0 0.0
    %406 = vmatpush1.msra.mxu0 0.0
    %407 = vmatprep.subr.mxu0 0.0
    %408 = vmatpush1.msra.mxu0 0.0
    %409 = vmatprep.subr.mxu0 0.0
    %410 = vmatpush1.msra.mxu0 0.0
    %411 = vmatprep.subr.mxu0 0.0
    %412 = vmatpush1.msra.mxu0 0.0
    %413 = vmatprep.subr.mxu0 0.0
    %414 = vmatpush1.msra.mxu0 0.0
    %415 = vmatprep.subr.mxu0 0.0
    %416 = vmatpush1.msra.mxu0 0.0
    %417 = vmatprep.subr.mxu0 0.0
    %418 = vmatpush1.msra.mxu0 0.0
    %419 = vmatprep.subr.mxu0 0.0
    %420 = vmatpush1.msra.mxu0 0.0
    %421 = vmatprep.subr.mxu0 0.0
    %422 = vmatpush1.msra.mxu0 %v89
    %423 = vmatprep.subr.mxu0 0.0
    %424 = vmatpush2.msra.mxu0 0.0
    %425 = vmatprep.subr.mxu0 0.0
    %426 = vmatpush2.msra.mxu0 0.0
    %427 = vmatprep.subr.mxu0 0.0
    %428 = vmatpush2.msra.mxu0 0.0
    %429 = vmatprep.subr.mxu0 0.0
    %430 = vmatpush2.msra.mxu0 0.0
    %431 = vmatprep.subr.mxu0 0.0
    %432 = vmatpush2.msra.mxu0 0.0
    %433 = vmatprep.subr.mxu0 0.0
    %434 = vmatpush2.msra.mxu0 0.0
    %435 = vmatprep.subr.mxu0 0.0
    %436 = vmatpush2.msra.mxu0 0.0
    %437 = vmatprep.subr.mxu0 0.0
    %438 = vmatpush2.msra.mxu0 0.0
    %439 = vmatprep.subr.mxu0 0.0
    %440 = vmatpush2.msra.mxu0 0.0
    %441 = vmatprep.subr.mxu0 0.0
    %442 = vmatpush2.msra.mxu0 0.0
    %443 = vmatprep.subr.mxu0 0.0
    %444 = vmatpush2.msra.mxu0 0.0
    %445 = vmatprep.subr.mxu0 0.0
    %446 = vmatpush2.msra.mxu0 0.0
    %447 = vmatprep.subr.mxu0 0.0
    %448 = vmatpush2.msra.mxu0 0.0
    %449 = vmatprep.subr.mxu0 0.0
    %450 = vmatpush2.msra.mxu0 0.0
    %451 = vmatprep.subr.mxu0 0.0
    %452 = vmatpush2.msra.mxu0 0.0
    %453 = vmatprep.subr.mxu0 0.0
    %454 = vmatpush2.msra.mxu0 0.0
    %455 = vmatprep.mubr.f32.mxu0 0.0
    %456 = vmatmul.mubr.f32.gmra.mxu0 %v264
    %v457 = vpop.f32.mrf.mxu0
    %v458 = vadd.f32 %v104, %v457
    %v459 = vpop.f32.mrf.mxu0
    %460 = vmatprep.mubr.f32.mxu0 0.0
    %461 = vmatmul.mubr.f32.gmra.mxu0 %v267
    %v462 = vpop.f32.mrf.mxu0
    %v463 = vadd.f32 %v104, %v462
    %v464 = vpop.f32.mrf.mxu0
    %465 = vmatprep.mubr.f32.mxu0 0.0
    %466 = vmatmul.mubr.f32.gmra.mxu0 %v270
    %v467 = vpop.f32.mrf.mxu0
    %v468 = vadd.f32 %v104, %v467
    %v469 = vpop.f32.mrf.mxu0
    %470 = vmatprep.mubr.f32.mxu0 0.0
    %471 = vmatmul.mubr.f32.gmra.mxu0 %v273
    %v472 = vpop.f32.mrf.mxu0
    %v473 = vadd.f32 %v104, %v472
    %v474 = vpop.f32.mrf.mxu0
    %475 = vmatprep.mubr.f32.mxu0 0.0
    %476 = vmatmul.mubr.f32.gmra.mxu0 %v276
    %v477 = vpop.f32.mrf.mxu0
    %v478 = vadd.f32 %v104, %v477
    %v479 = vpop.f32.mrf.mxu0
    %480 = vmatprep.mubr.f32.mxu0 0.0
    %481 = vmatmul.mubr.f32.gmra.mxu0 %v279
    %v482 = vpop.f32.mrf.mxu0
    %v483 = vadd.f32 %v104, %v482
    %v484 = vpop.f32.mrf.mxu0
    %485 = vmatprep.mubr.f32.mxu0 0.0
    %486 = vmatmul.mubr.f32.gmra.mxu0 %v282
    %v487 = vpop.f32.mrf.mxu0
    %v488 = vadd.f32 %v104, %v487
    %v489 = vpop.f32.mrf.mxu0
    %490 = vdwg.mxu0
    %491 = vst [vmem:[#allocation2 + $0x18] sm:$0xff] %v351
    %492 = vst [vmem:[#allocation2 + $0x20] sm:$0xff] %v353
    %493 = vst [vmem:[#allocation2 + $0x28] sm:$0xff] %v458
    %494 = vst [vmem:[#allocation2 + $0x30] sm:$0xff] %v357
    %495 = vst [vmem:[#allocation2 + $0x38] sm:$0xff] %v359
    %496 = vst [vmem:[#allocation2 + $0x40] sm:$0xff] %v463
    %497 = vst [vmem:[#allocation2 + $0x48] sm:$0xff] %v363
    %498 = vst [vmem:[#allocation2 + $0x50] sm:$0xff] %v365
    %499 = vst [vmem:[#allocation2 + $0x58] sm:$0xff] %v468
    %500 = vst [vmem:[#allocation2 + $0x60] sm:$0xff] %v369
    %501 = vst [vmem:[#allocation2 + $0x68] sm:$0xff] %v371
    %502 = vst [vmem:[#allocation2 + $0x70] sm:$0xff] %v473
    %503 = vst [vmem:[#allocation2 + $0x78] sm:$0xff] %v375
    %504 = vst [vmem:[#allocation2 + $0x80] sm:$0xff] %v377
    %505 = vst [vmem:[#allocation2 + $0x88] sm:$0xff] %v478
    %506 = vst [vmem:[#allocation2 + $0x90] sm:$0xff] %v381
    %507 = vst [vmem:[#allocation2 + $0x98] sm:$0xff] %v383
    %508 = vst [vmem:[#allocation2 + $0xa0] sm:$0xff] %v483
    %509 = vst [vmem:[#allocation2 + $0xa8] sm:$0xff] %v387
    %510 = vst [vmem:[#allocation2 + $0xb0] sm:$0xff] %v389
    %511 = vst [vmem:[#allocation2 + $0xb8] sm:$0xff] %v488
    %v512 = vld [vmem:[#allocation6] sm:$0xff]
    %v513 = vld [vmem:[#allocation6 + $0x8] sm:$0xff]
    %v514 = vld [vmem:[#allocation6 + $0x10] sm:$0xff]
    %v515 = vld [vmem:[#allocation6 + $0x18] sm:$0xff]
    %v516 = vld [vmem:[#allocation6 + $0x20] sm:$0xff]
    %v517 = vld [vmem:[#allocation6 + $0x28] sm:$0xff]
    %v518 = vld [vmem:[#allocation6 + $0x30] sm:$0xff]
    %v519 = vld [vmem:[#allocation6 + $0x38] sm:$0xff]
    %v520 = vld [vmem:[#allocation6 + $0x40] sm:$0xff]
    %v521 = vld [vmem:[#allocation6 + $0x48] sm:$0xff]
    %v522 = vld [vmem:[#allocation6 + $0x50] sm:$0xff]
    %v523 = vld [vmem:[#allocation6 + $0x58] sm:$0xff]
    %v524 = vld [vmem:[#allocation6 + $0x60] sm:$0xff]
    %v525 = vld [vmem:[#allocation6 + $0x68] sm:$0xff]
    %v526 = vld [vmem:[#allocation6 + $0x70] sm:$0xff]
    %v527 = vld [vmem:[#allocation6 + $0x78] sm:$0xff]
    %v528 = vld [vmem:[#allocation6 + $0x80] sm:$0xff]
    %v529 = vld [vmem:[#allocation6 + $0x88] sm:$0xff]
    %v530 = vld [vmem:[#allocation6 + $0x90] sm:$0xff]
    %v531 = vld [vmem:[#allocation6 + $0x98] sm:$0xff]
    %v532 = vld [vmem:[#allocation6 + $0xa0] sm:$0xff]
    %v533 = vld [vmem:[#allocation6 + $0xa8] sm:$0xff]
    %v534 = vld [vmem:[#allocation6 + $0xb0] sm:$0xff]
    %v535 = vld [vmem:[#allocation6 + $0xb8] sm:$0xff]
    %v536 = vld [vmem:[#allocation6 + $0xc0] sm:$0xff]
    %v537 = vld [vmem:[#allocation6 + $0xc8] sm:$0xff]
    %v538 = vld [vmem:[#allocation6 + $0xd0] sm:$0xff]
    %v539 = vld [vmem:[#allocation6 + $0xd8] sm:$0xff]
    %v540 = vld [vmem:[#allocation6 + $0xe0] sm:$0xff]
    %v541 = vld [vmem:[#allocation6 + $0xe8] sm:$0xff]
    %v542 = vld [vmem:[#allocation6 + $0xf0] sm:$0xff]
    %v543 = vld [vmem:[#allocation6 + $0xf8] sm:$0xff]
    %v544 = vld [vmem:[#allocation6 + $0x100] sm:$0xff]
    %v545 = vld [vmem:[#allocation6 + $0x108] sm:$0xff]
    %v546 = vld [vmem:[#allocation6 + $0x110] sm:$0xff]
    %v547 = vld [vmem:[#allocation6 + $0x118] sm:$0xff]
    %v548 = vld [vmem:[#allocation6 + $0x120] sm:$0xff]
    %v549 = vld [vmem:[#allocation6 + $0x128] sm:$0xff]
    %v550 = vld [vmem:[#allocation6 + $0x130] sm:$0xff]
    %v551 = vld [vmem:[#allocation6 + $0x138] sm:$0xff]
    %v552 = vld [vmem:[#allocation6 + $0x140] sm:$0xff]
    %v553 = vld [vmem:[#allocation6 + $0x148] sm:$0xff]
    %v554 = vld [vmem:[#allocation6 + $0x150] sm:$0xff]
    %v555 = vld [vmem:[#allocation6 + $0x158] sm:$0xff]
    %v556 = vld [vmem:[#allocation6 + $0x160] sm:$0xff]
    %v557 = vld [vmem:[#allocation6 + $0x168] sm:$0xff]
    %v558 = vld [vmem:[#allocation6 + $0x170] sm:$0xff]
    %v559 = vld [vmem:[#allocation6 + $0x178] sm:$0xff]
    %v560 = vld [vmem:[#allocation9] sm:$0xff]
    %v561 = vld [vmem:[#allocation9 + $0x8] sm:$0xf]
    %v562 = vld [vmem:[#allocation9 + $0xc] sm:$0xff]
    %v563 = vld [vmem:[#allocation9 + $0x14] sm:$0xf]
    %v564 = vld [vmem:[#allocation9 + $0x18] sm:$0xff]
    %v565 = vld [vmem:[#allocation9 + $0x20] sm:$0xf]
    %v566 = vld [vmem:[#allocation9 + $0x24] sm:$0xff]
    %v567 = vld [vmem:[#allocation9 + $0x2c] sm:$0xf]
    %v568 = vld [vmem:[#allocation9 + $0x30] sm:$0xff]
    %v569 = vld [vmem:[#allocation9 + $0x38] sm:$0xf]
    %v570 = vld [vmem:[#allocation9 + $0x3c] sm:$0xff]
    %v571 = vld [vmem:[#allocation9 + $0x44] sm:$0xf]
    %v572 = vld [vmem:[#allocation9 + $0x48] sm:$0xff]
    %v573 = vld [vmem:[#allocation9 + $0x50] sm:$0xf]
    %v574 = vld [vmem:[#allocation9 + $0x54] sm:$0xff]
    %v575 = vld [vmem:[#allocation9 + $0x5c] sm:$0xf]
    %v576 = vld [vmem:[#allocation9 + $0x60] sm:$0xff]
    %v577 = vld [vmem:[#allocation9 + $0x68] sm:$0xf]
    %v578 = vld [vmem:[#allocation9 + $0x6c] sm:$0xff]
    %v579 = vld [vmem:[#allocation9 + $0x74] sm:$0xf]
    %v580 = vld [vmem:[#allocation9 + $0x78] sm:$0xff]
    %v581 = vld [vmem:[#allocation9 + $0x80] sm:$0xf]
    %v582 = vld [vmem:[#allocation9 + $0x84] sm:$0xff]
    %v583 = vld [vmem:[#allocation9 + $0x8c] sm:$0xf]
    %v584 = vld [vmem:[#allocation9 + $0x90] sm:$0xff]
    %v585 = vld [vmem:[#allocation9 + $0x98] sm:$0xf]
    %v586 = vld [vmem:[#allocation9 + $0x9c] sm:$0xff]
    %v587 = vld [vmem:[#allocation9 + $0xa4] sm:$0xf]
    %v588 = vld [vmem:[#allocation9 + $0xa8] sm:$0xff]
    %v589 = vld [vmem:[#allocation9 + $0xb0] sm:$0xf]
    %v590 = vld [vmem:[#allocation9 + $0xb4] sm:$0xff]
    %v591 = vld [vmem:[#allocation9 + $0xbc] sm:$0xf]
    %v592 = vld [vmem:[%s6] sm:$0x7]
    %v593 = vld [vmem:[%s4] sm:$0x1]
    %v594 = vld [vmem:[%s7] sm:$0x1]
    %v595 = vld [vmem:[#allocation2] sm:$0xff]
    %v596 = vld [vmem:[#allocation2 + $0x8] sm:$0xff]
    %v597 = vld [vmem:[#allocation2 + $0x10] sm:$0xff]
    %v598 = vadd.f32 %v595, 0.0
    %v599 = vmul.f32 %v598, 0.5
    %v600 = vtanh.pop %v599
    %v601 = vmul.f32 %v600, 0.5
    %v602 = vadd.f32 %v601, 0.5
    %v603 = vadd.f32 %v596, 0.0
    %v604 = vmul.f32 %v603, 0.5
    %v605 = vtanh.pop %v604
    %v606 = vmul.f32 %v605, 0.5
    %v607 = vadd.f32 %v606, 0.5
    %v609 = vlaneseq
    %v610 = vshrl.u32 %v609, 7
    %v611 = vsub.s32 0, %v610
    %v612 = vrot.slane %v593, %v611
    %v614 = vadd.f32 %v612, 0.0
    %v615 = vmul.f32 %v602, %v614
    %v616 = vadd.f32 %v597, %v615
    %v617 = vtanh.pop %v616
    %v618 = vsub.f32 0.0, %v617
    %v619 = vmul.f32 %v607, %v618
    %v620 = vadd.f32 %v617, %v619
    %v621 = vpack.c.bf16 %v620, %v620
    %v670 = vunpack.c.l.b16 %v512
    %v671 = vunpack.c.h.b16 %v512
    %v672 = vunpack.c.l.b16 %v513
    %v673 = vunpack.c.h.b16 %v513
    %v674 = vunpack.c.l.b16 %v514
    %v675 = vunpack.c.h.b16 %v514
    %v676 = vunpack.c.l.b16 %v515
    %v677 = vunpack.c.h.b16 %v515
    %v678 = vunpack.c.l.b16 %v516
    %v679 = vunpack.c.h.b16 %v516
    %v680 = vunpack.c.l.b16 %v517
    %v681 = vunpack.c.h.b16 %v517
    %v682 = vunpack.c.l.b16 %v518
    %v683 = vunpack.c.h.b16 %v518
    %v684 = vunpack.c.l.b16 %v519
    %v685 = vunpack.c.h.b16 %v519
    %v686 = vunpack.c.l.b16 %v520
    %v687 = vunpack.c.h.b16 %v520
    %v688 = vunpack.c.l.b16 %v521
    %v689 = vunpack.c.h.b16 %v521
    %v690 = vunpack.c.l.b16 %v522
    %v691 = vunpack.c.h.b16 %v522
    %v692 = vunpack.c.l.b16 %v523
    %v693 = vunpack.c.h.b16 %v523
    %v694 = vunpack.c.l.b16 %v524
    %v695 = vunpack.c.h.b16 %v524
    %v696 = vunpack.c.l.b16 %v525
    %v697 = vunpack.c.h.b16 %v525
    %v698 = vunpack.c.l.b16 %v526
    %v699 = vunpack.c.h.b16 %v526
    %v700 = vunpack.c.l.b16 %v527
    %v701 = vunpack.c.h.b16 %v527
    %v702 = vunpack.c.l.b16 %v528
    %v703 = vunpack.c.h.b16 %v528
    %v704 = vunpack.c.l.b16 %v529
    %v705 = vunpack.c.h.b16 %v529
    %v706 = vunpack.c.l.b16 %v530
    %v707 = vunpack.c.h.b16 %v530
    %v708 = vunpack.c.l.b16 %v531
    %v709 = vunpack.c.h.b16 %v531
    %v710 = vunpack.c.l.b16 %v532
    %v711 = vunpack.c.h.b16 %v532
    %v712 = vunpack.c.l.b16 %v533
    %v713 = vunpack.c.h.b16 %v533
    %v714 = vunpack.c.l.b16 %v534
    %v715 = vunpack.c.h.b16 %v534
    %v716 = vunpack.c.l.b16 %v535
    %v717 = vunpack.c.h.b16 %v535
    %v718 = vunpack.c.l.b16 %v536
    %v719 = vunpack.c.h.b16 %v536
    %v720 = vunpack.c.l.b16 %v537
    %v721 = vunpack.c.h.b16 %v537
    %v722 = vunpack.c.l.b16 %v538
    %v723 = vunpack.c.h.b16 %v538
    %v724 = vunpack.c.l.b16 %v539
    %v725 = vunpack.c.h.b16 %v539
    %v726 = vunpack.c.l.b16 %v540
    %v727 = vunpack.c.h.b16 %v540
    %v728 = vunpack.c.l.b16 %v541
    %v729 = vunpack.c.h.b16 %v541
    %v730 = vunpack.c.l.b16 %v542
    %v731 = vunpack.c.h.b16 %v542
    %v732 = vunpack.c.l.b16 %v543
    %v733 = vunpack.c.h.b16 %v543
    %v734 = vunpack.c.l.b16 %v544
    %v735 = vunpack.c.h.b16 %v544
    %v736 = vunpack.c.l.b16 %v545
    %v737 = vunpack.c.h.b16 %v545
    %v738 = vunpack.c.l.b16 %v546
    %v739 = vunpack.c.h.b16 %v546
    %v740 = vunpack.c.l.b16 %v547
    %v741 = vunpack.c.h.b16 %v547
    %v742 = vunpack.c.l.b16 %v548
    %v743 = vunpack.c.h.b16 %v548
    %v744 = vunpack.c.l.b16 %v549
    %v745 = vunpack.c.h.b16 %v549
    %v746 = vunpack.c.l.b16 %v550
    %v747 = vunpack.c.h.b16 %v550
    %v748 = vunpack.c.l.b16 %v551
    %v749 = vunpack.c.h.b16 %v551
    %v750 = vunpack.c.l.b16 %v552
    %v751 = vunpack.c.h.b16 %v552
    %v752 = vunpack.c.l.b16 %v553
    %v753 = vunpack.c.h.b16 %v553
    %v754 = vunpack.c.l.b16 %v554
    %v755 = vunpack.c.h.b16 %v554
    %v756 = vunpack.c.l.b16 %v555
    %v757 = vunpack.c.h.b16 %v555
    %v758 = vunpack.c.l.b16 %v556
    %v759 = vunpack.c.h.b16 %v556
    %v760 = vunpack.c.l.b16 %v557
    %v761 = vunpack.c.h.b16 %v557
    %v762 = vunpack.c.l.b16 %v558
    %v763 = vunpack.c.h.b16 %v558
    %v764 = vunpack.c.l.b16 %v559
    %v765 = vunpack.c.h.b16 %v559
    %v766 = vpack.c.b16 %v676, %v670
    %v767 = vpack.c.b16 %v677, %v671
    %v768 = vpack.c.b16 %v678, %v672
    %v769 = vpack.c.b16 %v679, %v673
    %v770 = vpack.c.b16 %v680, %v674
    %v771 = vpack.c.b16 %v681, %v675
    %v772 = vpack.c.b16 %v688, %v682
    %v773 = vpack.c.b16 %v689, %v683
    %v774 = vpack.c.b16 %v690, %v684
    %v775 = vpack.c.b16 %v691, %v685
    %v776 = vpack.c.b16 %v692, %v686
    %v777 = vpack.c.b16 %v693, %v687
    %v778 = vpack.c.b16 %v700, %v694
    %v779 = vpack.c.b16 %v701, %v695
    %v780 = vpack.c.b16 %v702, %v696
    %v781 = vpack.c.b16 %v703, %v697
    %v782 = vpack.c.b16 %v704, %v698
    %v783 = vpack.c.b16 %v705, %v699
    %v784 = vpack.c.b16 %v712, %v706
    %v785 = vpack.c.b16 %v713, %v707
    %v786 = vpack.c.b16 %v714, %v708
    %v787 = vpack.c.b16 %v715, %v709
    %v788 = vpack.c.b16 %v716, %v710
    %v789 = vpack.c.b16 %v717, %v711
    %v790 = vpack.c.b16 %v724, %v718
    %v791 = vpack.c.b16 %v725, %v719
    %v792 = vpack.c.b16 %v726, %v720
    %v793 = vpack.c.b16 %v727, %v721
    %v794 = vpack.c.b16 %v728, %v722
    %v795 = vpack.c.b16 %v729, %v723
    %v796 = vpack.c.b16 %v736, %v730
    %v797 = vpack.c.b16 %v737, %v731
    %v798 = vpack.c.b16 %v738, %v732
    %v799 = vpack.c.b16 %v739, %v733
    %v800 = vpack.c.b16 %v740, %v734
    %v801 = vpack.c.b16 %v741, %v735
    %v802 = vpack.c.b16 %v748, %v742
    %v803 = vpack.c.b16 %v749, %v743
    %v804 = vpack.c.b16 %v750, %v744
    %v805 = vpack.c.b16 %v751, %v745
    %v806 = vpack.c.b16 %v752, %v746
    %v807 = vpack.c.b16 %v753, %v747
    %v808 = vpack.c.b16 %v760, %v754
    %v809 = vpack.c.b16 %v761, %v755
    %v810 = vpack.c.b16 %v762, %v756
    %v811 = vpack.c.b16 %v763, %v757
    %v812 = vpack.c.b16 %v764, %v758
    %v813 = vpack.c.b16 %v765, %v759
    %862 = vmatprep.subr.bf16.mxu0 %v809
    %863 = vmatpush1.bf16.msra.mxu0 %v808
    %864 = vmatprep.subr.bf16.mxu0 %v803
    %865 = vmatpush1.bf16.msra.mxu0 %v802
    %866 = vmatprep.subr.bf16.mxu0 %v797
    %867 = vmatpush1.bf16.msra.mxu0 %v796
    %868 = vmatprep.subr.bf16.mxu0 %v791
    %869 = vmatpush1.bf16.msra.mxu0 %v790
    %870 = vmatprep.subr.bf16.mxu0 %v785
    %871 = vmatpush1.bf16.msra.mxu0 %v784
    %872 = vmatprep.subr.bf16.mxu0 %v779
    %873 = vmatpush1.bf16.msra.mxu0 %v778
    %874 = vmatprep.subr.bf16.mxu0 %v773
    %875 = vmatpush1.bf16.msra.mxu0 %v772
    %876 = vmatprep.subr.bf16.mxu0 %v767
    %877 = vmatpush1.bf16.msra.mxu0 %v766
    %878 = vmatprep.subr.bf16.mxu0 0
    %879 = vmatpush2.bf16.msra.mxu0 0
    %880 = vmatprep.subr.bf16.mxu0 0
    %881 = vmatpush2.bf16.msra.mxu0 0
    %882 = vmatprep.subr.bf16.mxu0 0
    %883 = vmatpush2.bf16.msra.mxu0 0
    %884 = vmatprep.subr.bf16.mxu0 0
    %885 = vmatpush2.bf16.msra.mxu0 0
    %886 = vmatprep.subr.bf16.mxu0 0
    %887 = vmatpush2.bf16.msra.mxu0 0
    %888 = vmatprep.subr.bf16.mxu0 0
    %889 = vmatpush2.bf16.msra.mxu0 0
    %890 = vmatprep.subr.bf16.mxu0 0
    %891 = vmatpush2.bf16.msra.mxu0 0
    %892 = vmatprep.subr.bf16.mxu0 0
    %893 = vmatpush2.bf16.msra.mxu0 0
    %894 = vmatprep.mubr.bf16.mxu0 0
    %895 = vmatmul.mubr.bf16.gmra.mxu0 %v621
    %v896 = vpop.f32.mrf.mxu0
    %v897 = vadd.f32 0.0, %v896
    %v898 = vpop.f32.mrf.mxu0
    %v899 = vadd.f32 0.0, %v898
    %v900 = vpop.f32.mrf.mxu0
    %v901 = vpop.f32.mrf.mxu0
    %902 = vdwg.mxu0
    %903 = vmatprep.subr.bf16.mxu0 %v811
    %904 = vmatpush1.bf16.msra.mxu0 %v810
    %905 = vmatprep.subr.bf16.mxu0 %v805
    %906 = vmatpush1.bf16.msra.mxu0 %v804
    %907 = vmatprep.subr.bf16.mxu0 %v799
    %908 = vmatpush1.bf16.msra.mxu0 %v798
    %909 = vmatprep.subr.bf16.mxu0 %v793
    %910 = vmatpush1.bf16.msra.mxu0 %v792
    %911 = vmatprep.subr.bf16.mxu0 %v787
    %912 = vmatpush1.bf16.msra.mxu0 %v786
    %913 = vmatprep.subr.bf16.mxu0 %v781
    %914 = vmatpush1.bf16.msra.mxu0 %v780
    %915 = vmatprep.subr.bf16.mxu0 %v775
    %916 = vmatpush1.bf16.msra.mxu0 %v774
    %917 = vmatprep.subr.bf16.mxu0 %v769
    %918 = vmatpush1.bf16.msra.mxu0 %v768
    %919 = vmatprep.subr.bf16.mxu0 0
    %920 = vmatpush2.bf16.msra.mxu0 0
    %921 = vmatprep.subr.bf16.mxu0 0
    %922 = vmatpush2.bf16.msra.mxu0 0
    %923 = vmatprep.subr.bf16.mxu0 0
    %924 = vmatpush2.bf16.msra.mxu0 0
    %925 = vmatprep.subr.bf16.mxu0 0
    %926 = vmatpush2.bf16.msra.mxu0 0
    %927 = vmatprep.subr.bf16.mxu0 0
    %928 = vmatpush2.bf16.msra.mxu0 0
    %929 = vmatprep.subr.bf16.mxu0 0
    %930 = vmatpush2.bf16.msra.mxu0 0
    %931 = vmatprep.subr.bf16.mxu0 0
    %932 = vmatpush2.bf16.msra.mxu0 0
    %933 = vmatprep.subr.bf16.mxu0 0
    %934 = vmatpush2.bf16.msra.mxu0 0
    %935 = vmatprep.mubr.bf16.mxu0 0
    %936 = vmatmul.mubr.bf16.gmra.mxu0 %v621
    %v937 = vpop.f32.mrf.mxu0
    %v938 = vadd.f32 0.0, %v937
    %v939 = vpop.f32.mrf.mxu0
    %v940 = vadd.f32 0.0, %v939
    %v941 = vpop.f32.mrf.mxu0
    %v942 = vpop.f32.mrf.mxu0
    %943 = vdwg.mxu0
    %944 = vmatprep.subr.bf16.mxu0 %v813
    %945 = vmatpush1.bf16.msra.mxu0 %v812
    %946 = vmatprep.subr.bf16.mxu0 %v807
    %947 = vmatpush1.bf16.msra.mxu0 %v806
    %948 = vmatprep.subr.bf16.mxu0 %v801
    %949 = vmatpush1.bf16.msra.mxu0 %v800
    %950 = vmatprep.subr.bf16.mxu0 %v795
    %951 = vmatpush1.bf16.msra.mxu0 %v794
    %952 = vmatprep.subr.bf16.mxu0 %v789
    %953 = vmatpush1.bf16.msra.mxu0 %v788
    %954 = vmatprep.subr.bf16.mxu0 %v783
    %955 = vmatpush1.bf16.msra.mxu0 %v782
    %956 = vmatprep.subr.bf16.mxu0 %v777
    %957 = vmatpush1.bf16.msra.mxu0 %v776
    %958 = vmatprep.subr.bf16.mxu0 %v771
    %959 = vmatpush1.bf16.msra.mxu0 %v770
    %960 = vmatprep.subr.bf16.mxu0 0
    %961 = vmatpush2.bf16.msra.mxu0 0
    %962 = vmatprep.subr.bf16.mxu0 0
    %963 = vmatpush2.bf16.msra.mxu0 0
    %964 = vmatprep.subr.bf16.mxu0 0
    %965 = vmatpush2.bf16.msra.mxu0 0
    %966 = vmatprep.subr.bf16.mxu0 0
    %967 = vmatpush2.bf16.msra.mxu0 0
    %968 = vmatprep.subr.bf16.mxu0 0
    %969 = vmatpush2.bf16.msra.mxu0 0
    %970 = vmatprep.subr.bf16.mxu0 0
    %971 = vmatpush2.bf16.msra.mxu0 0
    %972 = vmatprep.subr.bf16.mxu0 0
    %973 = vmatpush2.bf16.msra.mxu0 0
    %974 = vmatprep.subr.bf16.mxu0 0
    %975 = vmatpush2.bf16.msra.mxu0 0
    %976 = vmatprep.mubr.bf16.mxu0 0
    %977 = vmatmul.mubr.bf16.gmra.mxu0 %v621
    %v978 = vpop.f32.mrf.mxu0
    %v979 = vadd.f32 0.0, %v978
    %v980 = vpop.f32.mrf.mxu0
    %v981 = vadd.f32 0.0, %v980
    %v982 = vpop.f32.mrf.mxu0
    %v983 = vpop.f32.mrf.mxu0
    %984 = vdwg.mxu0
    %v986 = vlaneseq
    %v987 = vshrl.u32 %v986, 7
    %v988 = vsub.s32 0, %v987
    %v989 = vrot.slane %v592, %v988
    %v990 = vlaneseq
    %v991 = vshrl.u32 %v990, 7
    %v992 = vsub.s32 1, %v991
    %v993 = vrot.slane %v592, %v992
    %v994 = vlaneseq
    %v995 = vshrl.u32 %v994, 7
    %v996 = vsub.s32 2, %v995
    %v997 = vrot.slane %v592, %v996
    %v1001 = vadd.f32 %v940, %v989
    %v1002 = vadd.f32 %v979, %v993
    %v1003 = vadd.f32 %v981, %v997
    %v1004 = vadd.f32 %v1001, 0.0
    %v1005 = vmul.f32 %v1004, 0.5
    %v1006 = vtanh.pop %v1005
    %v1007 = vmul.f32 %v1006, 0.5
    %v1008 = vadd.f32 %v1007, 0.5
    %v1009 = vadd.f32 %v1002, 0.0
    %v1010 = vmul.f32 %v1009, 0.5
    %v1011 = vtanh.pop %v1010
    %v1012 = vmul.f32 %v1011, 0.5
    %v1013 = vadd.f32 %v1012, 0.5
    %v1015 = vlaneseq
    %v1016 = vshrl.u32 %v1015, 7
    %v1017 = vsub.s32 0, %v1016
    %v1018 = vrot.slane %v594, %v1017
    %v1020 = vadd.f32 %v1018, 0.0
    %v1021 = vmul.f32 %v1008, %v1020
    %v1022 = vadd.f32 %v1003, %v1021
    %v1023 = vtanh.pop %v1022
    %v1024 = vsub.f32 0.0, %v1023
    %v1025 = vmul.f32 %v1013, %v1024
    %v1026 = vadd.f32 %v1023, %v1025
    %v1027 = vpack.c.bf16 %v1026, %v1026
    %v1060 = vunpack.c.l.b16 %v560
    %v1061 = vunpack.c.h.b16 %v560
    %v1062 = vunpack.c.l.b16 %v561
    %v1063 = vunpack.c.l.b16 %v562
    %v1064 = vunpack.c.h.b16 %v562
    %v1065 = vunpack.c.l.b16 %v563
    %v1066 = vunpack.c.l.b16 %v564
    %v1067 = vunpack.c.h.b16 %v564
    %v1068 = vunpack.c.l.b16 %v565
    %v1069 = vunpack.c.l.b16 %v566
    %v1070 = vunpack.c.h.b16 %v566
    %v1071 = vunpack.c.l.b16 %v567
    %v1072 = vunpack.c.l.b16 %v568
    %v1073 = vunpack.c.h.b16 %v568
    %v1074 = vunpack.c.l.b16 %v569
    %v1075 = vunpack.c.l.b16 %v570
    %v1076 = vunpack.c.h.b16 %v570
    %v1077 = vunpack.c.l.b16 %v571
    %v1078 = vunpack.c.l.b16 %v572
    %v1079 = vunpack.c.h.b16 %v572
    %v1080 = vunpack.c.l.b16 %v573
    %v1081 = vunpack.c.l.b16 %v574
    %v1082 = vunpack.c.h.b16 %v574
    %v1083 = vunpack.c.l.b16 %v575
    %v1084 = vunpack.c.l.b16 %v576
    %v1085 = vunpack.c.h.b16 %v576
    %v1086 = vunpack.c.l.b16 %v577
    %v1087 = vunpack.c.l.b16 %v578
    %v1088 = vunpack.c.h.b16 %v578
    %v1089 = vunpack.c.l.b16 %v579
    %v1090 = vunpack.c.l.b16 %v580
    %v1091 = vunpack.c.h.b16 %v580
    %v1092 = vunpack.c.l.b16 %v581
    %v1093 = vunpack.c.l.b16 %v582
    %v1094 = vunpack.c.h.b16 %v582
    %v1095 = vunpack.c.l.b16 %v583
    %v1096 = vunpack.c.l.b16 %v584
    %v1097 = vunpack.c.h.b16 %v584
    %v1098 = vunpack.c.l.b16 %v585
    %v1099 = vunpack.c.l.b16 %v586
    %v1100 = vunpack.c.h.b16 %v586
    %v1101 = vunpack.c.l.b16 %v587
    %v1102 = vunpack.c.l.b16 %v588
    %v1103 = vunpack.c.h.b16 %v588
    %v1104 = vunpack.c.l.b16 %v589
    %v1105 = vunpack.c.l.b16 %v590
    %v1106 = vunpack.c.h.b16 %v590
    %v1107 = vunpack.c.l.b16 %v591
    %v1108 = vpack.c.b16 %v1063, %v1060
    %v1109 = vpack.c.b16 %v1064, %v1061
    %v1110 = vpack.c.b16 %v1065, %v1062
    %v1111 = vpack.c.b16 %v1069, %v1066
    %v1112 = vpack.c.b16 %v1070, %v1067
    %v1113 = vpack.c.b16 %v1071, %v1068
    %v1114 = vpack.c.b16 %v1075, %v1072
    %v1115 = vpack.c.b16 %v1076, %v1073
    %v1116 = vpack.c.b16 %v1077, %v1074
    %v1117 = vpack.c.b16 %v1081, %v1078
    %v1118 = vpack.c.b16 %v1082, %v1079
    %v1119 = vpack.c.b16 %v1083, %v1080
    %v1120 = vpack.c.b16 %v1087, %v1084
    %v1121 = vpack.c.b16 %v1088, %v1085
    %v1122 = vpack.c.b16 %v1089, %v1086
    %v1123 = vpack.c.b16 %v1093, %v1090
    %v1124 = vpack.c.b16 %v1094, %v1091
    %v1125 = vpack.c.b16 %v1095, %v1092
    %v1126 = vpack.c.b16 %v1099, %v1096
    %v1127 = vpack.c.b16 %v1100, %v1097
    %v1128 = vpack.c.b16 %v1101, %v1098
    %v1129 = vpack.c.b16 %v1105, %v1102
    %v1130 = vpack.c.b16 %v1106, %v1103
    %v1131 = vpack.c.b16 %v1107, %v1104
    %1156 = vmatprep.subr.bf16.mxu0 %v1130
    %1157 = vmatpush1.bf16.msra.mxu0 %v1129
    %1158 = vmatprep.subr.bf16.mxu0 %v1127
    %1159 = vmatpush1.bf16.msra.mxu0 %v1126
    %1160 = vmatprep.subr.bf16.mxu0 %v1124
    %1161 = vmatpush1.bf16.msra.mxu0 %v1123
    %1162 = vmatprep.subr.bf16.mxu0 %v1121
    %1163 = vmatpush1.bf16.msra.mxu0 %v1120
    %1164 = vmatprep.subr.bf16.mxu0 %v1118
    %1165 = vmatpush1.bf16.msra.mxu0 %v1117
    %1166 = vmatprep.subr.bf16.mxu0 %v1115
    %1167 = vmatpush1.bf16.msra.mxu0 %v1114
    %1168 = vmatprep.subr.bf16.mxu0 %v1112
    %1169 = vmatpush1.bf16.msra.mxu0 %v1111
    %1170 = vmatprep.subr.bf16.mxu0 %v1109
    %1171 = vmatpush1.bf16.msra.mxu0 %v1108
    %1172 = vmatprep.subr.bf16.mxu0 0
    %1173 = vmatpush2.bf16.msra.mxu0 0
    %1174 = vmatprep.subr.bf16.mxu0 0
    %1175 = vmatpush2.bf16.msra.mxu0 0
    %1176 = vmatprep.subr.bf16.mxu0 0
    %1177 = vmatpush2.bf16.msra.mxu0 0
    %1178 = vmatprep.subr.bf16.mxu0 0
    %1179 = vmatpush2.bf16.msra.mxu0 0
    %1180 = vmatprep.subr.bf16.mxu0 0
    %1181 = vmatpush2.bf16.msra.mxu0 0
    %1182 = vmatprep.subr.bf16.mxu0 0
    %1183 = vmatpush2.bf16.msra.mxu0 0
    %1184 = vmatprep.subr.bf16.mxu0 0
    %1185 = vmatpush2.bf16.msra.mxu0 0
    %1186 = vmatprep.subr.bf16.mxu0 0
    %1187 = vmatpush2.bf16.msra.mxu0 0
    %1188 = vmatprep.mubr.bf16.mxu0 0
    %1189 = vmatmul.mubr.bf16.gmra.mxu0 %v1027
    %v1190 = vpop.f32.mrf.mxu0
    %v1191 = vadd.f32 0.0, %v1190
    %v1192 = vpop.f32.mrf.mxu0
    %v1193 = vadd.f32 0.0, %v1192
    %v1194 = vpop.f32.mrf.mxu0
    %v1195 = vpop.f32.mrf.mxu0
    %1196 = vdwg.mxu0
    %1197 = vmatprep.subr.bf16.mxu0 0
    %1198 = vmatpush1.bf16.msra.mxu0 %v1131
    %1199 = vmatprep.subr.bf16.mxu0 0
    %1200 = vmatpush1.bf16.msra.mxu0 %v1128
    %1201 = vmatprep.subr.bf16.mxu0 0
    %1202 = vmatpush1.bf16.msra.mxu0 %v1125
    %1203 = vmatprep.subr.bf16.mxu0 0
    %1204 = vmatpush1.bf16.msra.mxu0 %v1122
    %1205 = vmatprep.subr.bf16.mxu0 0
    %1206 = vmatpush1.bf16.msra.mxu0 %v1119
    %1207 = vmatprep.subr.bf16.mxu0 0
    %1208 = vmatpush1.bf16.msra.mxu0 %v1116
    %1209 = vmatprep.subr.bf16.mxu0 0
    %1210 = vmatpush1.bf16.msra.mxu0 %v1113
    %1211 = vmatprep.subr.bf16.mxu0 0
    %1212 = vmatpush1.bf16.msra.mxu0 %v1110
    %1213 = vmatprep.subr.bf16.mxu0 0
    %1214 = vmatpush2.bf16.msra.mxu0 0
    %1215 = vmatprep.subr.bf16.mxu0 0
    %1216 = vmatpush2.bf16.msra.mxu0 0
    %1217 = vmatprep.subr.bf16.mxu0 0
    %1218 = vmatpush2.bf16.msra.mxu0 0
    %1219 = vmatprep.subr.bf16.mxu0 0
    %1220 = vmatpush2.bf16.msra.mxu0 0
    %1221 = vmatprep.subr.bf16.mxu0 0
    %1222 = vmatpush2.bf16.msra.mxu0 0
    %1223 = vmatprep.subr.bf16.mxu0 0
    %1224 = vmatpush2.bf16.msra.mxu0 0
    %1225 = vmatprep.subr.bf16.mxu0 0
    %1226 = vmatpush2.bf16.msra.mxu0 0
    %1227 = vmatprep.subr.bf16.mxu0 0
    %1228 = vmatpush2.bf16.msra.mxu0 0
    %1229 = vmatprep.mubr.bf16.mxu0 0
    %1230 = vmatmul.mubr.bf16.gmra.mxu0 %v1027
    %v1231 = vpop.f32.mrf.mxu0
    %v1232 = vadd.f32 0.0, %v1231
    %v1233 = vpop.f32.mrf.mxu0
    %v1234 = vpop.f32.mrf.mxu0
    %v1235 = vpop.f32.mrf.mxu0
    %1236 = vdwg.mxu0
    %v1237 = vld [vmem:[#allocation2 + $0x18] sm:$0xff]
    %v1238 = vld [vmem:[#allocation2 + $0x20] sm:$0xff]
    %v1239 = vld [vmem:[#allocation2 + $0x28] sm:$0xff]
    %v1240 = vadd.f32 %v1237, %v897
    %v1241 = vmul.f32 %v1240, 0.5
    %v1242 = vtanh.pop %v1241
    %v1243 = vmul.f32 %v1242, 0.5
    %v1244 = vadd.f32 %v1243, 0.5
    %v1245 = vadd.f32 %v1238, %v899
    %v1246 = vmul.f32 %v1245, 0.5
    %v1247 = vtanh.pop %v1246
    %v1248 = vmul.f32 %v1247, 0.5
    %v1249 = vadd.f32 %v1248, 0.5
    %v1250 = vadd.f32 %v938, %v612
    %v1251 = vmul.f32 %v1244, %v1250
    %v1252 = vadd.f32 %v1239, %v1251
    %v1253 = vtanh.pop %v1252
    %v1254 = vsub.f32 %v620, %v1253
    %v1255 = vmul.f32 %v1249, %v1254
    %v1256 = vadd.f32 %v1253, %v1255
    %v1257 = vpack.c.bf16 %v1256, %v1256
    %1258 = vmatprep.subr.bf16.mxu0 %v809
    %1259 = vmatpush1.bf16.msra.mxu0 %v808
    %1260 = vmatprep.subr.bf16.mxu0 %v803
    %1261 = vmatpush1.bf16.msra.mxu0 %v802
    %1262 = vmatprep.subr.bf16.mxu0 %v797
    %1263 = vmatpush1.bf16.msra.mxu0 %v796
    %1264 = vmatprep.subr.bf16.mxu0 %v791
    %1265 = vmatpush1.bf16.msra.mxu0 %v790
    %1266 = vmatprep.subr.bf16.mxu0 %v785
    %1267 = vmatpush1.bf16.msra.mxu0 %v784
    %1268 = vmatprep.subr.bf16.mxu0 %v779
    %1269 = vmatpush1.bf16.msra.mxu0 %v778
    %1270 = vmatprep.subr.bf16.mxu0 %v773
    %1271 = vmatpush1.bf16.msra.mxu0 %v772
    %1272 = vmatprep.subr.bf16.mxu0 %v767
    %1273 = vmatpush1.bf16.msra.mxu0 %v766
    %1274 = vmatprep.subr.bf16.mxu0 0
    %1275 = vmatpush2.bf16.msra.mxu0 0
    %1276 = vmatprep.subr.bf16.mxu0 0
    %1277 = vmatpush2.bf16.msra.mxu0 0
    %1278 = vmatprep.subr.bf16.mxu0 0
    %1279 = vmatpush2.bf16.msra.mxu0 0
    %1280 = vmatprep.subr.bf16.mxu0 0
    %1281 = vmatpush2.bf16.msra.mxu0 0
    %1282 = vmatprep.subr.bf16.mxu0 0
    %1283 = vmatpush2.bf16.msra.mxu0 0
    %1284 = vmatprep.subr.bf16.mxu0 0
    %1285 = vmatpush2.bf16.msra.mxu0 0
    %1286 = vmatprep.subr.bf16.mxu0 0
    %1287 = vmatpush2.bf16.msra.mxu0 0
    %1288 = vmatprep.subr.bf16.mxu0 0
    %1289 = vmatpush2.bf16.msra.mxu0 0
    %1290 = vmatprep.mubr.bf16.mxu0 0
    %1291 = vmatmul.mubr.bf16.gmra.mxu0 %v1257
    %v1292 = vpop.f32.mrf.mxu0
    %v1293 = vadd.f32 0.0, %v1292
    %v1294 = vpop.f32.mrf.mxu0
    %v1295 = vadd.f32 0.0, %v1294
    %v1296 = vpop.f32.mrf.mxu0
    %v1297 = vpop.f32.mrf.mxu0
    %1298 = vdwg.mxu0
    %1299 = vmatprep.subr.bf16.mxu0 %v811
    %1300 = vmatpush1.bf16.msra.mxu0 %v810
    %1301 = vmatprep.subr.bf16.mxu0 %v805
    %1302 = vmatpush1.bf16.msra.mxu0 %v804
    %1303 = vmatprep.subr.bf16.mxu0 %v799
    %1304 = vmatpush1.bf16.msra.mxu0 %v798
    %1305 = vmatprep.subr.bf16.mxu0 %v793
    %1306 = vmatpush1.bf16.msra.mxu0 %v792
    %1307 = vmatprep.subr.bf16.mxu0 %v787
    %1308 = vmatpush1.bf16.msra.mxu0 %v786
    %1309 = vmatprep.subr.bf16.mxu0 %v781
    %1310 = vmatpush1.bf16.msra.mxu0 %v780
    %1311 = vmatprep.subr.bf16.mxu0 %v775
    %1312 = vmatpush1.bf16.msra.mxu0 %v774
    %1313 = vmatprep.subr.bf16.mxu0 %v769
    %1314 = vmatpush1.bf16.msra.mxu0 %v768
    %1315 = vmatprep.subr.bf16.mxu0 0
    %1316 = vmatpush2.bf16.msra.mxu0 0
    %1317 = vmatprep.subr.bf16.mxu0 0
    %1318 = vmatpush2.bf16.msra.mxu0 0
    %1319 = vmatprep.subr.bf16.mxu0 0
    %1320 = vmatpush2.bf16.msra.mxu0 0
    %1321 = vmatprep.subr.bf16.mxu0 0
    %1322 = vmatpush2.bf16.msra.mxu0 0
    %1323 = vmatprep.subr.bf16.mxu0 0
    %1324 = vmatpush2.bf16.msra.mxu0 0
    %1325 = vmatprep.subr.bf16.mxu0 0
    %1326 = vmatpush2.bf16.msra.mxu0 0
    %1327 = vmatprep.subr.bf16.mxu0 0
    %1328 = vmatpush2.bf16.msra.mxu0 0
    %1329 = vmatprep.subr.bf16.mxu0 0
    %1330 = vmatpush2.bf16.msra.mxu0 0
    %1331 = vmatprep.mubr.bf16.mxu0 0
    %1332 = vmatmul.mubr.bf16.gmra.mxu0 %v1257
    %v1333 = vpop.f32.mrf.mxu0
    %v1334 = vadd.f32 0.0, %v1333
    %v1335 = vpop.f32.mrf.mxu0
    %v1336 = vadd.f32 0.0, %v1335
    %v1337 = vpop.f32.mrf.mxu0
    %v1338 = vpop.f32.mrf.mxu0
    %1339 = vdwg.mxu0
    %1340 = vmatprep.subr.bf16.mxu0 %v813
    %1341 = vmatpush1.bf16.msra.mxu0 %v812
    %1342 = vmatprep.subr.bf16.mxu0 %v807
    %1343 = vmatpush1.bf16.msra.mxu0 %v806
    %1344 = vmatprep.subr.bf16.mxu0 %v801
    %1345 = vmatpush1.bf16.msra.mxu0 %v800
    %1346 = vmatprep.subr.bf16.mxu0 %v795
    %1347 = vmatpush1.bf16.msra.mxu0 %v794
    %1348 = vmatprep.subr.bf16.mxu0 %v789
    %1349 = vmatpush1.bf16.msra.mxu0 %v788
    %1350 = vmatprep.subr.bf16.mxu0 %v783
    %1351 = vmatpush1.bf16.msra.mxu0 %v782
    %1352 = vmatprep.subr.bf16.mxu0 %v777
    %1353 = vmatpush1.bf16.msra.mxu0 %v776
    %1354 = vmatprep.subr.bf16.mxu0 %v771
    %1355 = vmatpush1.bf16.msra.mxu0 %v770
    %1356 = vmatprep.subr.bf16.mxu0 0
    %1357 = vmatpush2.bf16.msra.mxu0 0
    %1358 = vmatprep.subr.bf16.mxu0 0
    %1359 = vmatpush2.bf16.msra.mxu0 0
    %1360 = vmatprep.subr.bf16.mxu0 0
    %1361 = vmatpush2.bf16.msra.mxu0 0
    %1362 = vmatprep.subr.bf16.mxu0 0
    %1363 = vmatpush2.bf16.msra.mxu0 0
    %1364 = vmatprep.subr.bf16.mxu0 0
    %1365 = vmatpush2.bf16.msra.mxu0 0
    %1366 = vmatprep.subr.bf16.mxu0 0
    %1367 = vmatpush2.bf16.msra.mxu0 0
    %1368 = vmatprep.subr.bf16.mxu0 0
    %1369 = vmatpush2.bf16.msra.mxu0 0
    %1370 = vmatprep.subr.bf16.mxu0 0
    %1371 = vmatpush2.bf16.msra.mxu0 0
    %1372 = vmatprep.mubr.bf16.mxu0 0
    %1373 = vmatmul.mubr.bf16.gmra.mxu0 %v1257
    %v1374 = vpop.f32.mrf.mxu0
    %v1375 = vadd.f32 0.0, %v1374
    %v1376 = vpop.f32.mrf.mxu0
    %v1377 = vadd.f32 0.0, %v1376
    %v1378 = vpop.f32.mrf.mxu0
    %v1379 = vpop.f32.mrf.mxu0
    %1380 = vdwg.mxu0
    %v1381 = vadd.f32 %v1336, %v989
    %v1382 = vadd.f32 %v1375, %v993
    %v1383 = vadd.f32 %v1377, %v997
    %v1384 = vadd.f32 %v1381, %v1191
    %v1385 = vmul.f32 %v1384, 0.5
    %v1386 = vtanh.pop %v1385
    %v1387 = vmul.f32 %v1386, 0.5
    %v1388 = vadd.f32 %v1387, 0.5
    %v1389 = vadd.f32 %v1382, %v1193
    %v1390 = vmul.f32 %v1389, 0.5
    %v1391 = vtanh.pop %v1390
    %v1392 = vmul.f32 %v1391, 0.5
    %v1393 = vadd.f32 %v1392, 0.5
    %v1394 = vadd.f32 %v1232, %v1018
    %v1395 = vmul.f32 %v1388, %v1394
    %v1396 = vadd.f32 %v1383, %v1395
    %v1397 = vtanh.pop %v1396
    %v1398 = vsub.f32 %v1026, %v1397
    %v1399 = vmul.f32 %v1393, %v1398
    %v1400 = vadd.f32 %v1397, %v1399
    %v1401 = vpack.c.bf16 %v1400, %v1400
    %1402 = vmatprep.subr.bf16.mxu0 %v1130
    %1403 = vmatpush1.bf16.msra.mxu0 %v1129
    %1404 = vmatprep.subr.bf16.mxu0 %v1127
    %1405 = vmatpush1.bf16.msra.mxu0 %v1126
    %1406 = vmatprep.subr.bf16.mxu0 %v1124
    %1407 = vmatpush1.bf16.msra.mxu0 %v1123
    %1408 = vmatprep.subr.bf16.mxu0 %v1121
    %1409 = vmatpush1.bf16.msra.mxu0 %v1120
    %1410 = vmatprep.subr.bf16.mxu0 %v1118
    %1411 = vmatpush1.bf16.msra.mxu0 %v1117
    %1412 = vmatprep.subr.bf16.mxu0 %v1115
    %1413 = vmatpush1.bf16.msra.mxu0 %v1114
    %1414 = vmatprep.subr.bf16.mxu0 %v1112
    %1415 = vmatpush1.bf16.msra.mxu0 %v1111
    %1416 = vmatprep.subr.bf16.mxu0 %v1109
    %1417 = vmatpush1.bf16.msra.mxu0 %v1108
    %1418 = vmatprep.subr.bf16.mxu0 0
    %1419 = vmatpush2.bf16.msra.mxu0 0
    %1420 = vmatprep.subr.bf16.mxu0 0
    %1421 = vmatpush2.bf16.msra.mxu0 0
    %1422 = vmatprep.subr.bf16.mxu0 0
    %1423 = vmatpush2.bf16.msra.mxu0 0
    %1424 = vmatprep.subr.bf16.mxu0 0
    %1425 = vmatpush2.bf16.msra.mxu0 0
    %1426 = vmatprep.subr.bf16.mxu0 0
    %1427 = vmatpush2.bf16.msra.mxu0 0
    %1428 = vmatprep.subr.bf16.mxu0 0
    %1429 = vmatpush2.bf16.msra.mxu0 0
    %1430 = vmatprep.subr.bf16.mxu0 0
    %1431 = vmatpush2.bf16.msra.mxu0 0
    %1432 = vmatprep.subr.bf16.mxu0 0
    %1433 = vmatpush2.bf16.msra.mxu0 0
    %1434 = vmatprep.mubr.bf16.mxu0 0
    %1435 = vmatmul.mubr.bf16.gmra.mxu0 %v1401
    %v1436 = vpop.f32.mrf.mxu0
    %v1437 = vadd.f32 0.0, %v1436
    %v1438 = vpop.f32.mrf.mxu0
    %v1439 = vadd.f32 0.0, %v1438
    %v1440 = vpop.f32.mrf.mxu0
    %v1441 = vpop.f32.mrf.mxu0
    %1442 = vdwg.mxu0
    %1443 = vmatprep.subr.bf16.mxu0 0
    %1444 = vmatpush1.bf16.msra.mxu0 %v1131
    %1445 = vmatprep.subr.bf16.mxu0 0
    %1446 = vmatpush1.bf16.msra.mxu0 %v1128
    %1447 = vmatprep.subr.bf16.mxu0 0
    %1448 = vmatpush1.bf16.msra.mxu0 %v1125
    %1449 = vmatprep.subr.bf16.mxu0 0
    %1450 = vmatpush1.bf16.msra.mxu0 %v1122
    %1451 = vmatprep.subr.bf16.mxu0 0
    %1452 = vmatpush1.bf16.msra.mxu0 %v1119
    %1453 = vmatprep.subr.bf16.mxu0 0
    %1454 = vmatpush1.bf16.msra.mxu0 %v1116
    %1455 = vmatprep.subr.bf16.mxu0 0
    %1456 = vmatpush1.bf16.msra.mxu0 %v1113
    %1457 = vmatprep.subr.bf16.mxu0 0
    %1458 = vmatpush1.bf16.msra.mxu0 %v1110
    %1459 = vmatprep.subr.bf16.mxu0 0
    %1460 = vmatpush2.bf16.msra.mxu0 0
    %1461 = vmatprep.subr.bf16.mxu0 0
    %1462 = vmatpush2.bf16.msra.mxu0 0
    %1463 = vmatprep.subr.bf16.mxu0 0
    %1464 = vmatpush2.bf16.msra.mxu0 0
    %1465 = vmatprep.subr.bf16.mxu0 0
    %1466 = vmatpush2.bf16.msra.mxu0 0
    %1467 = vmatprep.subr.bf16.mxu0 0
    %1468 = vmatpush2.bf16.msra.mxu0 0
    %1469 = vmatprep.subr.bf16.mxu0 0
    %1470 = vmatpush2.bf16.msra.mxu0 0
    %1471 = vmatprep.subr.bf16.mxu0 0
    %1472 = vmatpush2.bf16.msra.mxu0 0
    %1473 = vmatprep.subr.bf16.mxu0 0
    %1474 = vmatpush2.bf16.msra.mxu0 0
    %1475 = vmatprep.mubr.bf16.mxu0 0
    %1476 = vmatmul.mubr.bf16.gmra.mxu0 %v1401
    %v1477 = vpop.f32.mrf.mxu0
    %v1478 = vadd.f32 0.0, %v1477
    %v1479 = vpop.f32.mrf.mxu0
    %v1480 = vpop.f32.mrf.mxu0
    %v1481 = vpop.f32.mrf.mxu0
    %1482 = vdwg.mxu0
    %v1483 = vld [vmem:[#allocation2 + $0x30] sm:$0xff]
    %v1484 = vld [vmem:[#allocation2 + $0x38] sm:$0xff]
    %v1485 = vld [vmem:[#allocation2 + $0x40] sm:$0xff]
    %v1486 = vadd.f32 %v1483, %v1293
    %v1487 = vmul.f32 %v1486, 0.5
    %v1488 = vtanh.pop %v1487
    %v1489 = vmul.f32 %v1488, 0.5
    %v1490 = vadd.f32 %v1489, 0.5
    %v1491 = vadd.f32 %v1484, %v1295
    %v1492 = vmul.f32 %v1491, 0.5
    %v1493 = vtanh.pop %v1492
    %v1494 = vmul.f32 %v1493, 0.5
    %v1495 = vadd.f32 %v1494, 0.5
    %v1496 = vadd.f32 %v1334, %v612
    %v1497 = vmul.f32 %v1490, %v1496
    %v1498 = vadd.f32 %v1485, %v1497
    %v1499 = vtanh.pop %v1498
    %v1500 = vsub.f32 %v1256, %v1499
    %v1501 = vmul.f32 %v1495, %v1500
    %v1502 = vadd.f32 %v1499, %v1501
    %v1503 = vpack.c.bf16 %v1502, %v1502
    %1504 = vmatprep.subr.bf16.mxu0 %v809
    %1505 = vmatpush1.bf16.msra.mxu0 %v808
    %1506 = vmatprep.subr.bf16.mxu0 %v803
    %1507 = vmatpush1.bf16.msra.mxu0 %v802
    %1508 = vmatprep.subr.bf16.mxu0 %v797
    %1509 = vmatpush1.bf16.msra.mxu0 %v796
    %1510 = vmatprep.subr.bf16.mxu0 %v791
    %1511 = vmatpush1.bf16.msra.mxu0 %v790
    %1512 = vmatprep.subr.bf16.mxu0 %v785
    %1513 = vmatpush1.bf16.msra.mxu0 %v784
    %1514 = vmatprep.subr.bf16.mxu0 %v779
    %1515 = vmatpush1.bf16.msra.mxu0 %v778
    %1516 = vmatprep.subr.bf16.mxu0 %v773
    %1517 = vmatpush1.bf16.msra.mxu0 %v772
    %1518 = vmatprep.subr.bf16.mxu0 %v767
    %1519 = vmatpush1.bf16.msra.mxu0 %v766
    %1520 = vmatprep.subr.bf16.mxu0 0
    %1521 = vmatpush2.bf16.msra.mxu0 0
    %1522 = vmatprep.subr.bf16.mxu0 0
    %1523 = vmatpush2.bf16.msra.mxu0 0
    %1524 = vmatprep.subr.bf16.mxu0 0
    %1525 = vmatpush2.bf16.msra.mxu0 0
    %1526 = vmatprep.subr.bf16.mxu0 0
    %1527 = vmatpush2.bf16.msra.mxu0 0
    %1528 = vmatprep.subr.bf16.mxu0 0
    %1529 = vmatpush2.bf16.msra.mxu0 0
    %1530 = vmatprep.subr.bf16.mxu0 0
    %1531 = vmatpush2.bf16.msra.mxu0 0
    %1532 = vmatprep.subr.bf16.mxu0 0
    %1533 = vmatpush2.bf16.msra.mxu0 0
    %1534 = vmatprep.subr.bf16.mxu0 0
    %1535 = vmatpush2.bf16.msra.mxu0 0
    %1536 = vmatprep.mubr.bf16.mxu0 0
    %1537 = vmatmul.mubr.bf16.gmra.mxu0 %v1503
    %v1538 = vpop.f32.mrf.mxu0
    %v1539 = vadd.f32 0.0, %v1538
    %v1540 = vpop.f32.mrf.mxu0
    %v1541 = vadd.f32 0.0, %v1540
    %v1542 = vpop.f32.mrf.mxu0
    %v1543 = vpop.f32.mrf.mxu0
    %1544 = vdwg.mxu0
    %1545 = vmatprep.subr.bf16.mxu0 %v811
    %1546 = vmatpush1.bf16.msra.mxu0 %v810
    %1547 = vmatprep.subr.bf16.mxu0 %v805
    %1548 = vmatpush1.bf16.msra.mxu0 %v804
    %1549 = vmatprep.subr.bf16.mxu0 %v799
    %1550 = vmatpush1.bf16.msra.mxu0 %v798
    %1551 = vmatprep.subr.bf16.mxu0 %v793
    %1552 = vmatpush1.bf16.msra.mxu0 %v792
    %1553 = vmatprep.subr.bf16.mxu0 %v787
    %1554 = vmatpush1.bf16.msra.mxu0 %v786
    %1555 = vmatprep.subr.bf16.mxu0 %v781
    %1556 = vmatpush1.bf16.msra.mxu0 %v780
    %1557 = vmatprep.subr.bf16.mxu0 %v775
    %1558 = vmatpush1.bf16.msra.mxu0 %v774
    %1559 = vmatprep.subr.bf16.mxu0 %v769
    %1560 = vmatpush1.bf16.msra.mxu0 %v768
    %1561 = vmatprep.subr.bf16.mxu0 0
    %1562 = vmatpush2.bf16.msra.mxu0 0
    %1563 = vmatprep.subr.bf16.mxu0 0
    %1564 = vmatpush2.bf16.msra.mxu0 0
    %1565 = vmatprep.subr.bf16.mxu0 0
    %1566 = vmatpush2.bf16.msra.mxu0 0
    %1567 = vmatprep.subr.bf16.mxu0 0
    %1568 = vmatpush2.bf16.msra.mxu0 0
    %1569 = vmatprep.subr.bf16.mxu0 0
    %1570 = vmatpush2.bf16.msra.mxu0 0
    %1571 = vmatprep.subr.bf16.mxu0 0
    %1572 = vmatpush2.bf16.msra.mxu0 0
    %1573 = vmatprep.subr.bf16.mxu0 0
    %1574 = vmatpush2.bf16.msra.mxu0 0
    %1575 = vmatprep.subr.bf16.mxu0 0
    %1576 = vmatpush2.bf16.msra.mxu0 0
    %1577 = vmatprep.mubr.bf16.mxu0 0
    %1578 = vmatmul.mubr.bf16.gmra.mxu0 %v1503
    %v1579 = vpop.f32.mrf.mxu0
    %v1580 = vadd.f32 0.0, %v1579
    %v1581 = vpop.f32.mrf.mxu0
    %v1582 = vadd.f32 0.0, %v1581
    %v1583 = vpop.f32.mrf.mxu0
    %v1584 = vpop.f32.mrf.mxu0
    %1585 = vdwg.mxu0
    %1586 = vmatprep.subr.bf16.mxu0 %v813
    %1587 = vmatpush1.bf16.msra.mxu0 %v812
    %1588 = vmatprep.subr.bf16.mxu0 %v807
    %1589 = vmatpush1.bf16.msra.mxu0 %v806
    %1590 = vmatprep.subr.bf16.mxu0 %v801
    %1591 = vmatpush1.bf16.msra.mxu0 %v800
    %1592 = vmatprep.subr.bf16.mxu0 %v795
    %1593 = vmatpush1.bf16.msra.mxu0 %v794
    %1594 = vmatprep.subr.bf16.mxu0 %v789
    %1595 = vmatpush1.bf16.msra.mxu0 %v788
    %1596 = vmatprep.subr.bf16.mxu0 %v783
    %1597 = vmatpush1.bf16.msra.mxu0 %v782
    %1598 = vmatprep.subr.bf16.mxu0 %v777
    %1599 = vmatpush1.bf16.msra.mxu0 %v776
    %1600 = vmatprep.subr.bf16.mxu0 %v771
    %1601 = vmatpush1.bf16.msra.mxu0 %v770
    %1602 = vmatprep.subr.bf16.mxu0 0
    %1603 = vmatpush2.bf16.msra.mxu0 0
    %1604 = vmatprep.subr.bf16.mxu0 0
    %1605 = vmatpush2.bf16.msra.mxu0 0
    %1606 = vmatprep.subr.bf16.mxu0 0
    %1607 = vmatpush2.bf16.msra.mxu0 0
    %1608 = vmatprep.subr.bf16.mxu0 0
    %1609 = vmatpush2.bf16.msra.mxu0 0
    %1610 = vmatprep.subr.bf16.mxu0 0
    %1611 = vmatpush2.bf16.msra.mxu0 0
    %1612 = vmatprep.subr.bf16.mxu0 0
    %1613 = vmatpush2.bf16.msra.mxu0 0
    %1614 = vmatprep.subr.bf16.mxu0 0
    %1615 = vmatpush2.bf16.msra.mxu0 0
    %1616 = vmatprep.subr.bf16.mxu0 0
    %1617 = vmatpush2.bf16.msra.mxu0 0
    %1618 = vmatprep.mubr.bf16.mxu0 0
    %1619 = vmatmul.mubr.bf16.gmra.mxu0 %v1503
    %v1620 = vpop.f32.mrf.mxu0
    %v1621 = vadd.f32 0.0, %v1620
    %v1622 = vpop.f32.mrf.mxu0
    %v1623 = vadd.f32 0.0, %v1622
    %v1624 = vpop.f32.mrf.mxu0
    %v1625 = vpop.f32.mrf.mxu0
    %1626 = vdwg.mxu0
    %v1627 = vadd.f32 %v1582, %v989
    %v1628 = vadd.f32 %v1621, %v993
    %v1629 = vadd.f32 %v1623, %v997
    %v1630 = vadd.f32 %v1627, %v1437
    %v1631 = vmul.f32 %v1630, 0.5
    %v1632 = vtanh.pop %v1631
    %v1633 = vmul.f32 %v1632, 0.5
    %v1634 = vadd.f32 %v1633, 0.5
    %v1635 = vadd.f32 %v1628, %v1439
    %v1636 = vmul.f32 %v1635, 0.5
    %v1637 = vtanh.pop %v1636
    %v1638 = vmul.f32 %v1637, 0.5
    %v1639 = vadd.f32 %v1638, 0.5
    %v1640 = vadd.f32 %v1478, %v1018
    %v1641 = vmul.f32 %v1634, %v1640
    %v1642 = vadd.f32 %v1629, %v1641
    %v1643 = vtanh.pop %v1642
    %v1644 = vsub.f32 %v1400, %v1643
    %v1645 = vmul.f32 %v1639, %v1644
    %v1646 = vadd.f32 %v1643, %v1645
    %v1647 = vpack.c.bf16 %v1646, %v1646
    %1648 = vmatprep.subr.bf16.mxu0 %v1130
    %1649 = vmatpush1.bf16.msra.mxu0 %v1129
    %1650 = vmatprep.subr.bf16.mxu0 %v1127
    %1651 = vmatpush1.bf16.msra.mxu0 %v1126
    %1652 = vmatprep.subr.bf16.mxu0 %v1124
    %1653 = vmatpush1.bf16.msra.mxu0 %v1123
    %1654 = vmatprep.subr.bf16.mxu0 %v1121
    %1655 = vmatpush1.bf16.msra.mxu0 %v1120
    %1656 = vmatprep.subr.bf16.mxu0 %v1118
    %1657 = vmatpush1.bf16.msra.mxu0 %v1117
    %1658 = vmatprep.subr.bf16.mxu0 %v1115
    %1659 = vmatpush1.bf16.msra.mxu0 %v1114
    %1660 = vmatprep.subr.bf16.mxu0 %v1112
    %1661 = vmatpush1.bf16.msra.mxu0 %v1111
    %1662 = vmatprep.subr.bf16.mxu0 %v1109
    %1663 = vmatpush1.bf16.msra.mxu0 %v1108
    %1664 = vmatprep.subr.bf16.mxu0 0
    %1665 = vmatpush2.bf16.msra.mxu0 0
    %1666 = vmatprep.subr.bf16.mxu0 0
    %1667 = vmatpush2.bf16.msra.mxu0 0
    %1668 = vmatprep.subr.bf16.mxu0 0
    %1669 = vmatpush2.bf16.msra.mxu0 0
    %1670 = vmatprep.subr.bf16.mxu0 0
    %1671 = vmatpush2.bf16.msra.mxu0 0
    %1672 = vmatprep.subr.bf16.mxu0 0
    %1673 = vmatpush2.bf16.msra.mxu0 0
    %1674 = vmatprep.subr.bf16.mxu0 0
    %1675 = vmatpush2.bf16.msra.mxu0 0
    %1676 = vmatprep.subr.bf16.mxu0 0
    %1677 = vmatpush2.bf16.msra.mxu0 0
    %1678 = vmatprep.subr.bf16.mxu0 0
    %1679 = vmatpush2.bf16.msra.mxu0 0
    %1680 = vmatprep.mubr.bf16.mxu0 0
    %1681 = vmatmul.mubr.bf16.gmra.mxu0 %v1647
    %v1682 = vpop.f32.mrf.mxu0
    %v1683 = vadd.f32 0.0, %v1682
    %v1684 = vpop.f32.mrf.mxu0
    %v1685 = vadd.f32 0.0, %v1684
    %v1686 = vpop.f32.mrf.mxu0
    %v1687 = vpop.f32.mrf.mxu0
    %1688 = vdwg.mxu0
    %1689 = vmatprep.subr.bf16.mxu0 0
    %1690 = vmatpush1.bf16.msra.mxu0 %v1131
    %1691 = vmatprep.subr.bf16.mxu0 0
    %1692 = vmatpush1.bf16.msra.mxu0 %v1128
    %1693 = vmatprep.subr.bf16.mxu0 0
    %1694 = vmatpush1.bf16.msra.mxu0 %v1125
    %1695 = vmatprep.subr.bf16.mxu0 0
    %1696 = vmatpush1.bf16.msra.mxu0 %v1122
    %1697 = vmatprep.subr.bf16.mxu0 0
    %1698 = vmatpush1.bf16.msra.mxu0 %v1119
    %1699 = vmatprep.subr.bf16.mxu0 0
    %1700 = vmatpush1.bf16.msra.mxu0 %v1116
    %1701 = vmatprep.subr.bf16.mxu0 0
    %1702 = vmatpush1.bf16.msra.mxu0 %v1113
    %1703 = vmatprep.subr.bf16.mxu0 0
    %1704 = vmatpush1.bf16.msra.mxu0 %v1110
    %1705 = vmatprep.subr.bf16.mxu0 0
    %1706 = vmatpush2.bf16.msra.mxu0 0
    %1707 = vmatprep.subr.bf16.mxu0 0
    %1708 = vmatpush2.bf16.msra.mxu0 0
    %1709 = vmatprep.subr.bf16.mxu0 0
    %1710 = vmatpush2.bf16.msra.mxu0 0
    %1711 = vmatprep.subr.bf16.mxu0 0
    %1712 = vmatpush2.bf16.msra.mxu0 0
    %1713 = vmatprep.subr.bf16.mxu0 0
    %1714 = vmatpush2.bf16.msra.mxu0 0
    %1715 = vmatprep.subr.bf16.mxu0 0
    %1716 = vmatpush2.bf16.msra.mxu0 0
    %1717 = vmatprep.subr.bf16.mxu0 0
    %1718 = vmatpush2.bf16.msra.mxu0 0
    %1719 = vmatprep.subr.bf16.mxu0 0
    %1720 = vmatpush2.bf16.msra.mxu0 0
    %1721 = vmatprep.mubr.bf16.mxu0 0
    %1722 = vmatmul.mubr.bf16.gmra.mxu0 %v1647
    %v1723 = vpop.f32.mrf.mxu0
    %v1724 = vadd.f32 0.0, %v1723
    %v1725 = vpop.f32.mrf.mxu0
    %v1726 = vpop.f32.mrf.mxu0
    %v1727 = vpop.f32.mrf.mxu0
    %1728 = vdwg.mxu0
    %v1729 = vld [vmem:[#allocation2 + $0x48] sm:$0xff]
    %v1730 = vld [vmem:[#allocation2 + $0x50] sm:$0xff]
    %v1731 = vld [vmem:[#allocation2 + $0x58] sm:$0xff]
    %v1732 = vadd.f32 %v1729, %v1539
    %v1733 = vmul.f32 %v1732, 0.5
    %v1734 = vtanh.pop %v1733
    %v1735 = vmul.f32 %v1734, 0.5
    %v1736 = vadd.f32 %v1735, 0.5
    %v1737 = vadd.f32 %v1730, %v1541
    %v1738 = vmul.f32 %v1737, 0.5
    %v1739 = vtanh.pop %v1738
    %v1740 = vmul.f32 %v1739, 0.5
    %v1741 = vadd.f32 %v1740, 0.5
    %v1742 = vadd.f32 %v1580, %v612
    %v1743 = vmul.f32 %v1736, %v1742
    %v1744 = vadd.f32 %v1731, %v1743
    %v1745 = vtanh.pop %v1744
    %v1746 = vsub.f32 %v1502, %v1745
    %v1747 = vmul.f32 %v1741, %v1746
    %v1748 = vadd.f32 %v1745, %v1747
    %v1749 = vpack.c.bf16 %v1748, %v1748
    %1750 = vmatprep.subr.bf16.mxu0 %v809
    %1751 = vmatpush1.bf16.msra.mxu0 %v808
    %1752 = vmatprep.subr.bf16.mxu0 %v803
    %1753 = vmatpush1.bf16.msra.mxu0 %v802
    %1754 = vmatprep.subr.bf16.mxu0 %v797
    %1755 = vmatpush1.bf16.msra.mxu0 %v796
    %1756 = vmatprep.subr.bf16.mxu0 %v791
    %1757 = vmatpush1.bf16.msra.mxu0 %v790
    %1758 = vmatprep.subr.bf16.mxu0 %v785
    %1759 = vmatpush1.bf16.msra.mxu0 %v784
    %1760 = vmatprep.subr.bf16.mxu0 %v779
    %1761 = vmatpush1.bf16.msra.mxu0 %v778
    %1762 = vmatprep.subr.bf16.mxu0 %v773
    %1763 = vmatpush1.bf16.msra.mxu0 %v772
    %1764 = vmatprep.subr.bf16.mxu0 %v767
    %1765 = vmatpush1.bf16.msra.mxu0 %v766
    %1766 = vmatprep.subr.bf16.mxu0 0
    %1767 = vmatpush2.bf16.msra.mxu0 0
    %1768 = vmatprep.subr.bf16.mxu0 0
    %1769 = vmatpush2.bf16.msra.mxu0 0
    %1770 = vmatprep.subr.bf16.mxu0 0
    %1771 = vmatpush2.bf16.msra.mxu0 0
    %1772 = vmatprep.subr.bf16.mxu0 0
    %1773 = vmatpush2.bf16.msra.mxu0 0
    %1774 = vmatprep.subr.bf16.mxu0 0
    %1775 = vmatpush2.bf16.msra.mxu0 0
    %1776 = vmatprep.subr.bf16.mxu0 0
    %1777 = vmatpush2.bf16.msra.mxu0 0
    %1778 = vmatprep.subr.bf16.mxu0 0
    %1779 = vmatpush2.bf16.msra.mxu0 0
    %1780 = vmatprep.subr.bf16.mxu0 0
    %1781 = vmatpush2.bf16.msra.mxu0 0
    %1782 = vmatprep.mubr.bf16.mxu0 0
    %1783 = vmatmul.mubr.bf16.gmra.mxu0 %v1749
    %v1784 = vpop.f32.mrf.mxu0
    %v1785 = vadd.f32 0.0, %v1784
    %v1786 = vpop.f32.mrf.mxu0
    %v1787 = vadd.f32 0.0, %v1786
    %v1788 = vpop.f32.mrf.mxu0
    %v1789 = vpop.f32.mrf.mxu0
    %1790 = vdwg.mxu0
    %1791 = vmatprep.subr.bf16.mxu0 %v811
    %1792 = vmatpush1.bf16.msra.mxu0 %v810
    %1793 = vmatprep.subr.bf16.mxu0 %v805
    %1794 = vmatpush1.bf16.msra.mxu0 %v804
    %1795 = vmatprep.subr.bf16.mxu0 %v799
    %1796 = vmatpush1.bf16.msra.mxu0 %v798
    %1797 = vmatprep.subr.bf16.mxu0 %v793
    %1798 = vmatpush1.bf16.msra.mxu0 %v792
    %1799 = vmatprep.subr.bf16.mxu0 %v787
    %1800 = vmatpush1.bf16.msra.mxu0 %v786
    %1801 = vmatprep.subr.bf16.mxu0 %v781
    %1802 = vmatpush1.bf16.msra.mxu0 %v780
    %1803 = vmatprep.subr.bf16.mxu0 %v775
    %1804 = vmatpush1.bf16.msra.mxu0 %v774
    %1805 = vmatprep.subr.bf16.mxu0 %v769
    %1806 = vmatpush1.bf16.msra.mxu0 %v768
    %1807 = vmatprep.subr.bf16.mxu0 0
    %1808 = vmatpush2.bf16.msra.mxu0 0
    %1809 = vmatprep.subr.bf16.mxu0 0
    %1810 = vmatpush2.bf16.msra.mxu0 0
    %1811 = vmatprep.subr.bf16.mxu0 0
    %1812 = vmatpush2.bf16.msra.mxu0 0
    %1813 = vmatprep.subr.bf16.mxu0 0
    %1814 = vmatpush2.bf16.msra.mxu0 0
    %1815 = vmatprep.subr.bf16.mxu0 0
    %1816 = vmatpush2.bf16.msra.mxu0 0
    %1817 = vmatprep.subr.bf16.mxu0 0
    %1818 = vmatpush2.bf16.msra.mxu0 0
    %1819 = vmatprep.subr.bf16.mxu0 0
    %1820 = vmatpush2.bf16.msra.mxu0 0
    %1821 = vmatprep.subr.bf16.mxu0 0
    %1822 = vmatpush2.bf16.msra.mxu0 0
    %1823 = vmatprep.mubr.bf16.mxu0 0
    %1824 = vmatmul.mubr.bf16.gmra.mxu0 %v1749
    %v1825 = vpop.f32.mrf.mxu0
    %v1826 = vadd.f32 0.0, %v1825
    %v1827 = vpop.f32.mrf.mxu0
    %v1828 = vadd.f32 0.0, %v1827
    %v1829 = vpop.f32.mrf.mxu0
    %v1830 = vpop.f32.mrf.mxu0
    %1831 = vdwg.mxu0
    %1832 = vmatprep.subr.bf16.mxu0 %v813
    %1833 = vmatpush1.bf16.msra.mxu0 %v812
    %1834 = vmatprep.subr.bf16.mxu0 %v807
    %1835 = vmatpush1.bf16.msra.mxu0 %v806
    %1836 = vmatprep.subr.bf16.mxu0 %v801
    %1837 = vmatpush1.bf16.msra.mxu0 %v800
    %1838 = vmatprep.subr.bf16.mxu0 %v795
    %1839 = vmatpush1.bf16.msra.mxu0 %v794
    %1840 = vmatprep.subr.bf16.mxu0 %v789
    %1841 = vmatpush1.bf16.msra.mxu0 %v788
    %1842 = vmatprep.subr.bf16.mxu0 %v783
    %1843 = vmatpush1.bf16.msra.mxu0 %v782
    %1844 = vmatprep.subr.bf16.mxu0 %v777
    %1845 = vmatpush1.bf16.msra.mxu0 %v776
    %1846 = vmatprep.subr.bf16.mxu0 %v771
    %1847 = vmatpush1.bf16.msra.mxu0 %v770
    %1848 = vmatprep.subr.bf16.mxu0 0
    %1849 = vmatpush2.bf16.msra.mxu0 0
    %1850 = vmatprep.subr.bf16.mxu0 0
    %1851 = vmatpush2.bf16.msra.mxu0 0
    %1852 = vmatprep.subr.bf16.mxu0 0
    %1853 = vmatpush2.bf16.msra.mxu0 0
    %1854 = vmatprep.subr.bf16.mxu0 0
    %1855 = vmatpush2.bf16.msra.mxu0 0
    %1856 = vmatprep.subr.bf16.mxu0 0
    %1857 = vmatpush2.bf16.msra.mxu0 0
    %1858 = vmatprep.subr.bf16.mxu0 0
    %1859 = vmatpush2.bf16.msra.mxu0 0
    %1860 = vmatprep.subr.bf16.mxu0 0
    %1861 = vmatpush2.bf16.msra.mxu0 0
    %1862 = vmatprep.subr.bf16.mxu0 0
    %1863 = vmatpush2.bf16.msra.mxu0 0
    %1864 = vmatprep.mubr.bf16.mxu0 0
    %1865 = vmatmul.mubr.bf16.gmra.mxu0 %v1749
    %v1866 = vpop.f32.mrf.mxu0
    %v1867 = vadd.f32 0.0, %v1866
    %v1868 = vpop.f32.mrf.mxu0
    %v1869 = vadd.f32 0.0, %v1868
    %v1870 = vpop.f32.mrf.mxu0
    %v1871 = vpop.f32.mrf.mxu0
    %1872 = vdwg.mxu0
    %v1873 = vadd.f32 %v1828, %v989
    %v1874 = vadd.f32 %v1867, %v993
    %v1875 = vadd.f32 %v1869, %v997
    %v1876 = vadd.f32 %v1873, %v1683
    %v1877 = vmul.f32 %v1876, 0.5
    %v1878 = vtanh.pop %v1877
    %v1879 = vmul.f32 %v1878, 0.5
    %v1880 = vadd.f32 %v1879, 0.5
    %v1881 = vadd.f32 %v1874, %v1685
    %v1882 = vmul.f32 %v1881, 0.5
    %v1883 = vtanh.pop %v1882
    %v1884 = vmul.f32 %v1883, 0.5
    %v1885 = vadd.f32 %v1884, 0.5
    %v1886 = vadd.f32 %v1724, %v1018
    %v1887 = vmul.f32 %v1880, %v1886
    %v1888 = vadd.f32 %v1875, %v1887
    %v1889 = vtanh.pop %v1888
    %v1890 = vsub.f32 %v1646, %v1889
    %v1891 = vmul.f32 %v1885, %v1890
    %v1892 = vadd.f32 %v1889, %v1891
    %v1893 = vpack.c.bf16 %v1892, %v1892
    %1894 = vmatprep.subr.bf16.mxu0 %v1130
    %1895 = vmatpush1.bf16.msra.mxu0 %v1129
    %1896 = vmatprep.subr.bf16.mxu0 %v1127
    %1897 = vmatpush1.bf16.msra.mxu0 %v1126
    %1898 = vmatprep.subr.bf16.mxu0 %v1124
    %1899 = vmatpush1.bf16.msra.mxu0 %v1123
    %1900 = vmatprep.subr.bf16.mxu0 %v1121
    %1901 = vmatpush1.bf16.msra.mxu0 %v1120
    %1902 = vmatprep.subr.bf16.mxu0 %v1118
    %1903 = vmatpush1.bf16.msra.mxu0 %v1117
    %1904 = vmatprep.subr.bf16.mxu0 %v1115
    %1905 = vmatpush1.bf16.msra.mxu0 %v1114
    %1906 = vmatprep.subr.bf16.mxu0 %v1112
    %1907 = vmatpush1.bf16.msra.mxu0 %v1111
    %1908 = vmatprep.subr.bf16.mxu0 %v1109
    %1909 = vmatpush1.bf16.msra.mxu0 %v1108
    %1910 = vmatprep.subr.bf16.mxu0 0
    %1911 = vmatpush2.bf16.msra.mxu0 0
    %1912 = vmatprep.subr.bf16.mxu0 0
    %1913 = vmatpush2.bf16.msra.mxu0 0
    %1914 = vmatprep.subr.bf16.mxu0 0
    %1915 = vmatpush2.bf16.msra.mxu0 0
    %1916 = vmatprep.subr.bf16.mxu0 0
    %1917 = vmatpush2.bf16.msra.mxu0 0
    %1918 = vmatprep.subr.bf16.mxu0 0
    %1919 = vmatpush2.bf16.msra.mxu0 0
    %1920 = vmatprep.subr.bf16.mxu0 0
    %1921 = vmatpush2.bf16.msra.mxu0 0
    %1922 = vmatprep.subr.bf16.mxu0 0
    %1923 = vmatpush2.bf16.msra.mxu0 0
    %1924 = vmatprep.subr.bf16.mxu0 0
    %1925 = vmatpush2.bf16.msra.mxu0 0
    %1926 = vmatprep.mubr.bf16.mxu0 0
    %1927 = vmatmul.mubr.bf16.gmra.mxu0 %v1893
    %v1928 = vpop.f32.mrf.mxu0
    %v1929 = vadd.f32 0.0, %v1928
    %v1930 = vpop.f32.mrf.mxu0
    %v1931 = vadd.f32 0.0, %v1930
    %v1932 = vpop.f32.mrf.mxu0
    %v1933 = vpop.f32.mrf.mxu0
    %1934 = vdwg.mxu0
    %1935 = vmatprep.subr.bf16.mxu0 0
    %1936 = vmatpush1.bf16.msra.mxu0 %v1131
    %1937 = vmatprep.subr.bf16.mxu0 0
    %1938 = vmatpush1.bf16.msra.mxu0 %v1128
    %1939 = vmatprep.subr.bf16.mxu0 0
    %1940 = vmatpush1.bf16.msra.mxu0 %v1125
    %1941 = vmatprep.subr.bf16.mxu0 0
    %1942 = vmatpush1.bf16.msra.mxu0 %v1122
    %1943 = vmatprep.subr.bf16.mxu0 0
    %1944 = vmatpush1.bf16.msra.mxu0 %v1119
    %1945 = vmatprep.subr.bf16.mxu0 0
    %1946 = vmatpush1.bf16.msra.mxu0 %v1116
    %1947 = vmatprep.subr.bf16.mxu0 0
    %1948 = vmatpush1.bf16.msra.mxu0 %v1113
    %1949 = vmatprep.subr.bf16.mxu0 0
    %1950 = vmatpush1.bf16.msra.mxu0 %v1110
    %1951 = vmatprep.subr.bf16.mxu0 0
    %1952 = vmatpush2.bf16.msra.mxu0 0
    %1953 = vmatprep.subr.bf16.mxu0 0
    %1954 = vmatpush2.bf16.msra.mxu0 0
    %1955 = vmatprep.subr.bf16.mxu0 0
    %1956 = vmatpush2.bf16.msra.mxu0 0
    %1957 = vmatprep.subr.bf16.mxu0 0
    %1958 = vmatpush2.bf16.msra.mxu0 0
    %1959 = vmatprep.subr.bf16.mxu0 0
    %1960 = vmatpush2.bf16.msra.mxu0 0
    %1961 = vmatprep.subr.bf16.mxu0 0
    %1962 = vmatpush2.bf16.msra.mxu0 0
    %1963 = vmatprep.subr.bf16.mxu0 0
    %1964 = vmatpush2.bf16.msra.mxu0 0
    %1965 = vmatprep.subr.bf16.mxu0 0
    %1966 = vmatpush2.bf16.msra.mxu0 0
    %1967 = vmatprep.mubr.bf16.mxu0 0
    %1968 = vmatmul.mubr.bf16.gmra.mxu0 %v1893
    %v1969 = vpop.f32.mrf.mxu0
    %v1970 = vadd.f32 0.0, %v1969
    %v1971 = vpop.f32.mrf.mxu0
    %v1972 = vpop.f32.mrf.mxu0
    %v1973 = vpop.f32.mrf.mxu0
    %1974 = vdwg.mxu0
    %v1975 = vld [vmem:[#allocation2 + $0x60] sm:$0xff]
    %v1976 = vld [vmem:[#allocation2 + $0x68] sm:$0xff]
    %v1977 = vld [vmem:[#allocation2 + $0x70] sm:$0xff]
    %v1978 = vadd.f32 %v1975, %v1785
    %v1979 = vmul.f32 %v1978, 0.5
    %v1980 = vtanh.pop %v1979
    %v1981 = vmul.f32 %v1980, 0.5
    %v1982 = vadd.f32 %v1981, 0.5
    %v1983 = vadd.f32 %v1976, %v1787
    %v1984 = vmul.f32 %v1983, 0.5
    %v1985 = vtanh.pop %v1984
    %v1986 = vmul.f32 %v1985, 0.5
    %v1987 = vadd.f32 %v1986, 0.5
    %v1988 = vadd.f32 %v1826, %v612
    %v1989 = vmul.f32 %v1982, %v1988
    %v1990 = vadd.f32 %v1977, %v1989
    %v1991 = vtanh.pop %v1990
    %v1992 = vsub.f32 %v1748, %v1991
    %v1993 = vmul.f32 %v1987, %v1992
    %v1994 = vadd.f32 %v1991, %v1993
    %v1995 = vpack.c.bf16 %v1994, %v1994
    %1996 = vmatprep.subr.bf16.mxu0 %v809
    %1997 = vmatpush1.bf16.msra.mxu0 %v808
    %1998 = vmatprep.subr.bf16.mxu0 %v803
    %1999 = vmatpush1.bf16.msra.mxu0 %v802
    %2000 = vmatprep.subr.bf16.mxu0 %v797
    %2001 = vmatpush1.bf16.msra.mxu0 %v796
    %2002 = vmatprep.subr.bf16.mxu0 %v791
    %2003 = vmatpush1.bf16.msra.mxu0 %v790
    %2004 = vmatprep.subr.bf16.mxu0 %v785
    %2005 = vmatpush1.bf16.msra.mxu0 %v784
    %2006 = vmatprep.subr.bf16.mxu0 %v779
    %2007 = vmatpush1.bf16.msra.mxu0 %v778
    %2008 = vmatprep.subr.bf16.mxu0 %v773
    %2009 = vmatpush1.bf16.msra.mxu0 %v772
    %2010 = vmatprep.subr.bf16.mxu0 %v767
    %2011 = vmatpush1.bf16.msra.mxu0 %v766
    %2012 = vmatprep.subr.bf16.mxu0 0
    %2013 = vmatpush2.bf16.msra.mxu0 0
    %2014 = vmatprep.subr.bf16.mxu0 0
    %2015 = vmatpush2.bf16.msra.mxu0 0
    %2016 = vmatprep.subr.bf16.mxu0 0
    %2017 = vmatpush2.bf16.msra.mxu0 0
    %2018 = vmatprep.subr.bf16.mxu0 0
    %2019 = vmatpush2.bf16.msra.mxu0 0
    %2020 = vmatprep.subr.bf16.mxu0 0
    %2021 = vmatpush2.bf16.msra.mxu0 0
    %2022 = vmatprep.subr.bf16.mxu0 0
    %2023 = vmatpush2.bf16.msra.mxu0 0
    %2024 = vmatprep.subr.bf16.mxu0 0
    %2025 = vmatpush2.bf16.msra.mxu0 0
    %2026 = vmatprep.subr.bf16.mxu0 0
    %2027 = vmatpush2.bf16.msra.mxu0 0
    %2028 = vmatprep.mubr.bf16.mxu0 0
    %2029 = vmatmul.mubr.bf16.gmra.mxu0 %v1995
    %v2030 = vpop.f32.mrf.mxu0
    %v2031 = vadd.f32 0.0, %v2030
    %v2032 = vpop.f32.mrf.mxu0
    %v2033 = vadd.f32 0.0, %v2032
    %v2034 = vpop.f32.mrf.mxu0
    %v2035 = vpop.f32.mrf.mxu0
    %2036 = vdwg.mxu0
    %2037 = vmatprep.subr.bf16.mxu0 %v811
    %2038 = vmatpush1.bf16.msra.mxu0 %v810
    %2039 = vmatprep.subr.bf16.mxu0 %v805
    %2040 = vmatpush1.bf16.msra.mxu0 %v804
    %2041 = vmatprep.subr.bf16.mxu0 %v799
    %2042 = vmatpush1.bf16.msra.mxu0 %v798
    %2043 = vmatprep.subr.bf16.mxu0 %v793
    %2044 = vmatpush1.bf16.msra.mxu0 %v792
    %2045 = vmatprep.subr.bf16.mxu0 %v787
    %2046 = vmatpush1.bf16.msra.mxu0 %v786
    %2047 = vmatprep.subr.bf16.mxu0 %v781
    %2048 = vmatpush1.bf16.msra.mxu0 %v780
    %2049 = vmatprep.subr.bf16.mxu0 %v775
    %2050 = vmatpush1.bf16.msra.mxu0 %v774
    %2051 = vmatprep.subr.bf16.mxu0 %v769
    %2052 = vmatpush1.bf16.msra.mxu0 %v768
    %2053 = vmatprep.subr.bf16.mxu0 0
    %2054 = vmatpush2.bf16.msra.mxu0 0
    %2055 = vmatprep.subr.bf16.mxu0 0
    %2056 = vmatpush2.bf16.msra.mxu0 0
    %2057 = vmatprep.subr.bf16.mxu0 0
    %2058 = vmatpush2.bf16.msra.mxu0 0
    %2059 = vmatprep.subr.bf16.mxu0 0
    %2060 = vmatpush2.bf16.msra.mxu0 0
    %2061 = vmatprep.subr.bf16.mxu0 0
    %2062 = vmatpush2.bf16.msra.mxu0 0
    %2063 = vmatprep.subr.bf16.mxu0 0
    %2064 = vmatpush2.bf16.msra.mxu0 0
    %2065 = vmatprep.subr.bf16.mxu0 0
    %2066 = vmatpush2.bf16.msra.mxu0 0
    %2067 = vmatprep.subr.bf16.mxu0 0
    %2068 = vmatpush2.bf16.msra.mxu0 0
    %2069 = vmatprep.mubr.bf16.mxu0 0
    %2070 = vmatmul.mubr.bf16.gmra.mxu0 %v1995
    %v2071 = vpop.f32.mrf.mxu0
    %v2072 = vadd.f32 0.0, %v2071
    %v2073 = vpop.f32.mrf.mxu0
    %v2074 = vadd.f32 0.0, %v2073
    %v2075 = vpop.f32.mrf.mxu0
    %v2076 = vpop.f32.mrf.mxu0
    %2077 = vdwg.mxu0
    %2078 = vmatprep.subr.bf16.mxu0 %v813
    %2079 = vmatpush1.bf16.msra.mxu0 %v812
    %2080 = vmatprep.subr.bf16.mxu0 %v807
    %2081 = vmatpush1.bf16.msra.mxu0 %v806
    %2082 = vmatprep.subr.bf16.mxu0 %v801
    %2083 = vmatpush1.bf16.msra.mxu0 %v800
    %2084 = vmatprep.subr.bf16.mxu0 %v795
    %2085 = vmatpush1.bf16.msra.mxu0 %v794
    %2086 = vmatprep.subr.bf16.mxu0 %v789
    %2087 = vmatpush1.bf16.msra.mxu0 %v788
    %2088 = vmatprep.subr.bf16.mxu0 %v783
    %2089 = vmatpush1.bf16.msra.mxu0 %v782
    %2090 = vmatprep.subr.bf16.mxu0 %v777
    %2091 = vmatpush1.bf16.msra.mxu0 %v776
    %2092 = vmatprep.subr.bf16.mxu0 %v771
    %2093 = vmatpush1.bf16.msra.mxu0 %v770
    %2094 = vmatprep.subr.bf16.mxu0 0
    %2095 = vmatpush2.bf16.msra.mxu0 0
    %2096 = vmatprep.subr.bf16.mxu0 0
    %2097 = vmatpush2.bf16.msra.mxu0 0
    %2098 = vmatprep.subr.bf16.mxu0 0
    %2099 = vmatpush2.bf16.msra.mxu0 0
    %2100 = vmatprep.subr.bf16.mxu0 0
    %2101 = vmatpush2.bf16.msra.mxu0 0
    %2102 = vmatprep.subr.bf16.mxu0 0
    %2103 = vmatpush2.bf16.msra.mxu0 0
    %2104 = vmatprep.subr.bf16.mxu0 0
    %2105 = vmatpush2.bf16.msra.mxu0 0
    %2106 = vmatprep.subr.bf16.mxu0 0
    %2107 = vmatpush2.bf16.msra.mxu0 0
    %2108 = vmatprep.subr.bf16.mxu0 0
    %2109 = vmatpush2.bf16.msra.mxu0 0
    %2110 = vmatprep.mubr.bf16.mxu0 0
    %2111 = vmatmul.mubr.bf16.gmra.mxu0 %v1995
    %v2112 = vpop.f32.mrf.mxu0
    %v2113 = vadd.f32 0.0, %v2112
    %v2114 = vpop.f32.mrf.mxu0
    %v2115 = vadd.f32 0.0, %v2114
    %v2116 = vpop.f32.mrf.mxu0
    %v2117 = vpop.f32.mrf.mxu0
    %2118 = vdwg.mxu0
    %v2119 = vadd.f32 %v2074, %v989
    %v2120 = vadd.f32 %v2113, %v993
    %v2121 = vadd.f32 %v2115, %v997
    %v2122 = vadd.f32 %v2119, %v1929
    %v2123 = vmul.f32 %v2122, 0.5
    %v2124 = vtanh.pop %v2123
    %v2125 = vmul.f32 %v2124, 0.5
    %v2126 = vadd.f32 %v2125, 0.5
    %v2127 = vadd.f32 %v2120, %v1931
    %v2128 = vmul.f32 %v2127, 0.5
    %v2129 = vtanh.pop %v2128
    %v2130 = vmul.f32 %v2129, 0.5
    %v2131 = vadd.f32 %v2130, 0.5
    %v2132 = vadd.f32 %v1970, %v1018
    %v2133 = vmul.f32 %v2126, %v2132
    %v2134 = vadd.f32 %v2121, %v2133
    %v2135 = vtanh.pop %v2134
    %v2136 = vsub.f32 %v1892, %v2135
    %v2137 = vmul.f32 %v2131, %v2136
    %v2138 = vadd.f32 %v2135, %v2137
    %v2139 = vpack.c.bf16 %v2138, %v2138
    %2140 = vmatprep.subr.bf16.mxu0 %v1130
    %2141 = vmatpush1.bf16.msra.mxu0 %v1129
    %2142 = vmatprep.subr.bf16.mxu0 %v1127
    %2143 = vmatpush1.bf16.msra.mxu0 %v1126
    %2144 = vmatprep.subr.bf16.mxu0 %v1124
    %2145 = vmatpush1.bf16.msra.mxu0 %v1123
    %2146 = vmatprep.subr.bf16.mxu0 %v1121
    %2147 = vmatpush1.bf16.msra.mxu0 %v1120
    %2148 = vmatprep.subr.bf16.mxu0 %v1118
    %2149 = vmatpush1.bf16.msra.mxu0 %v1117
    %2150 = vmatprep.subr.bf16.mxu0 %v1115
    %2151 = vmatpush1.bf16.msra.mxu0 %v1114
    %2152 = vmatprep.subr.bf16.mxu0 %v1112
    %2153 = vmatpush1.bf16.msra.mxu0 %v1111
    %2154 = vmatprep.subr.bf16.mxu0 %v1109
    %2155 = vmatpush1.bf16.msra.mxu0 %v1108
    %2156 = vmatprep.subr.bf16.mxu0 0
    %2157 = vmatpush2.bf16.msra.mxu0 0
    %2158 = vmatprep.subr.bf16.mxu0 0
    %2159 = vmatpush2.bf16.msra.mxu0 0
    %2160 = vmatprep.subr.bf16.mxu0 0
    %2161 = vmatpush2.bf16.msra.mxu0 0
    %2162 = vmatprep.subr.bf16.mxu0 0
    %2163 = vmatpush2.bf16.msra.mxu0 0
    %2164 = vmatprep.subr.bf16.mxu0 0
    %2165 = vmatpush2.bf16.msra.mxu0 0
    %2166 = vmatprep.subr.bf16.mxu0 0
    %2167 = vmatpush2.bf16.msra.mxu0 0
    %2168 = vmatprep.subr.bf16.mxu0 0
    %2169 = vmatpush2.bf16.msra.mxu0 0
    %2170 = vmatprep.subr.bf16.mxu0 0
    %2171 = vmatpush2.bf16.msra.mxu0 0
    %2172 = vmatprep.mubr.bf16.mxu0 0
    %2173 = vmatmul.mubr.bf16.gmra.mxu0 %v2139
    %v2174 = vpop.f32.mrf.mxu0
    %v2175 = vadd.f32 0.0, %v2174
    %v2176 = vpop.f32.mrf.mxu0
    %v2177 = vadd.f32 0.0, %v2176
    %v2178 = vpop.f32.mrf.mxu0
    %v2179 = vpop.f32.mrf.mxu0
    %2180 = vdwg.mxu0
    %2181 = vmatprep.subr.bf16.mxu0 0
    %2182 = vmatpush1.bf16.msra.mxu0 %v1131
    %2183 = vmatprep.subr.bf16.mxu0 0
    %2184 = vmatpush1.bf16.msra.mxu0 %v1128
    %2185 = vmatprep.subr.bf16.mxu0 0
    %2186 = vmatpush1.bf16.msra.mxu0 %v1125
    %2187 = vmatprep.subr.bf16.mxu0 0
    %2188 = vmatpush1.bf16.msra.mxu0 %v1122
    %2189 = vmatprep.subr.bf16.mxu0 0
    %2190 = vmatpush1.bf16.msra.mxu0 %v1119
    %2191 = vmatprep.subr.bf16.mxu0 0
    %2192 = vmatpush1.bf16.msra.mxu0 %v1116
    %2193 = vmatprep.subr.bf16.mxu0 0
    %2194 = vmatpush1.bf16.msra.mxu0 %v1113
    %2195 = vmatprep.subr.bf16.mxu0 0
    %2196 = vmatpush1.bf16.msra.mxu0 %v1110
    %2197 = vmatprep.subr.bf16.mxu0 0
    %2198 = vmatpush2.bf16.msra.mxu0 0
    %2199 = vmatprep.subr.bf16.mxu0 0
    %2200 = vmatpush2.bf16.msra.mxu0 0
    %2201 = vmatprep.subr.bf16.mxu0 0
    %2202 = vmatpush2.bf16.msra.mxu0 0
    %2203 = vmatprep.subr.bf16.mxu0 0
    %2204 = vmatpush2.bf16.msra.mxu0 0
    %2205 = vmatprep.subr.bf16.mxu0 0
    %2206 = vmatpush2.bf16.msra.mxu0 0
    %2207 = vmatprep.subr.bf16.mxu0 0
    %2208 = vmatpush2.bf16.msra.mxu0 0
    %2209 = vmatprep.subr.bf16.mxu0 0
    %2210 = vmatpush2.bf16.msra.mxu0 0
    %2211 = vmatprep.subr.bf16.mxu0 0
    %2212 = vmatpush2.bf16.msra.mxu0 0
    %2213 = vmatprep.mubr.bf16.mxu0 0
    %2214 = vmatmul.mubr.bf16.gmra.mxu0 %v2139
    %v2215 = vpop.f32.mrf.mxu0
    %v2216 = vadd.f32 0.0, %v2215
    %v2217 = vpop.f32.mrf.mxu0
    %v2218 = vpop.f32.mrf.mxu0
    %v2219 = vpop.f32.mrf.mxu0
    %2220 = vdwg.mxu0
    %v2221 = vld [vmem:[#allocation2 + $0x78] sm:$0xff]
    %v2222 = vld [vmem:[#allocation2 + $0x80] sm:$0xff]
    %v2223 = vld [vmem:[#allocation2 + $0x88] sm:$0xff]
    %v2224 = vadd.f32 %v2221, %v2031
    %v2225 = vmul.f32 %v2224, 0.5
    %v2226 = vtanh.pop %v2225
    %v2227 = vmul.f32 %v2226, 0.5
    %v2228 = vadd.f32 %v2227, 0.5
    %v2229 = vadd.f32 %v2222, %v2033
    %v2230 = vmul.f32 %v2229, 0.5
    %v2231 = vtanh.pop %v2230
    %v2232 = vmul.f32 %v2231, 0.5
    %v2233 = vadd.f32 %v2232, 0.5
    %v2234 = vadd.f32 %v2072, %v612
    %v2235 = vmul.f32 %v2228, %v2234
    %v2236 = vadd.f32 %v2223, %v2235
    %v2237 = vtanh.pop %v2236
    %v2238 = vsub.f32 %v1994, %v2237
    %v2239 = vmul.f32 %v2233, %v2238
    %v2240 = vadd.f32 %v2237, %v2239
    %v2241 = vpack.c.bf16 %v2240, %v2240
    %2242 = vmatprep.subr.bf16.mxu0 %v809
    %2243 = vmatpush1.bf16.msra.mxu0 %v808
    %2244 = vmatprep.subr.bf16.mxu0 %v803
    %2245 = vmatpush1.bf16.msra.mxu0 %v802
    %2246 = vmatprep.subr.bf16.mxu0 %v797
    %2247 = vmatpush1.bf16.msra.mxu0 %v796
    %2248 = vmatprep.subr.bf16.mxu0 %v791
    %2249 = vmatpush1.bf16.msra.mxu0 %v790
    %2250 = vmatprep.subr.bf16.mxu0 %v785
    %2251 = vmatpush1.bf16.msra.mxu0 %v784
    %2252 = vmatprep.subr.bf16.mxu0 %v779
    %2253 = vmatpush1.bf16.msra.mxu0 %v778
    %2254 = vmatprep.subr.bf16.mxu0 %v773
    %2255 = vmatpush1.bf16.msra.mxu0 %v772
    %2256 = vmatprep.subr.bf16.mxu0 %v767
    %2257 = vmatpush1.bf16.msra.mxu0 %v766
    %2258 = vmatprep.subr.bf16.mxu0 0
    %2259 = vmatpush2.bf16.msra.mxu0 0
    %2260 = vmatprep.subr.bf16.mxu0 0
    %2261 = vmatpush2.bf16.msra.mxu0 0
    %2262 = vmatprep.subr.bf16.mxu0 0
    %2263 = vmatpush2.bf16.msra.mxu0 0
    %2264 = vmatprep.subr.bf16.mxu0 0
    %2265 = vmatpush2.bf16.msra.mxu0 0
    %2266 = vmatprep.subr.bf16.mxu0 0
    %2267 = vmatpush2.bf16.msra.mxu0 0
    %2268 = vmatprep.subr.bf16.mxu0 0
    %2269 = vmatpush2.bf16.msra.mxu0 0
    %2270 = vmatprep.subr.bf16.mxu0 0
    %2271 = vmatpush2.bf16.msra.mxu0 0
    %2272 = vmatprep.subr.bf16.mxu0 0
    %2273 = vmatpush2.bf16.msra.mxu0 0
    %2274 = vmatprep.mubr.bf16.mxu0 0
    %2275 = vmatmul.mubr.bf16.gmra.mxu0 %v2241
    %v2276 = vpop.f32.mrf.mxu0
    %v2277 = vadd.f32 0.0, %v2276
    %v2278 = vpop.f32.mrf.mxu0
    %v2279 = vadd.f32 0.0, %v2278
    %v2280 = vpop.f32.mrf.mxu0
    %v2281 = vpop.f32.mrf.mxu0
    %2282 = vdwg.mxu0
    %2283 = vmatprep.subr.bf16.mxu0 %v811
    %2284 = vmatpush1.bf16.msra.mxu0 %v810
    %2285 = vmatprep.subr.bf16.mxu0 %v805
    %2286 = vmatpush1.bf16.msra.mxu0 %v804
    %2287 = vmatprep.subr.bf16.mxu0 %v799
    %2288 = vmatpush1.bf16.msra.mxu0 %v798
    %2289 = vmatprep.subr.bf16.mxu0 %v793
    %2290 = vmatpush1.bf16.msra.mxu0 %v792
    %2291 = vmatprep.subr.bf16.mxu0 %v787
    %2292 = vmatpush1.bf16.msra.mxu0 %v786
    %2293 = vmatprep.subr.bf16.mxu0 %v781
    %2294 = vmatpush1.bf16.msra.mxu0 %v780
    %2295 = vmatprep.subr.bf16.mxu0 %v775
    %2296 = vmatpush1.bf16.msra.mxu0 %v774
    %2297 = vmatprep.subr.bf16.mxu0 %v769
    %2298 = vmatpush1.bf16.msra.mxu0 %v768
    %2299 = vmatprep.subr.bf16.mxu0 0
    %2300 = vmatpush2.bf16.msra.mxu0 0
    %2301 = vmatprep.subr.bf16.mxu0 0
    %2302 = vmatpush2.bf16.msra.mxu0 0
    %2303 = vmatprep.subr.bf16.mxu0 0
    %2304 = vmatpush2.bf16.msra.mxu0 0
    %2305 = vmatprep.subr.bf16.mxu0 0
    %2306 = vmatpush2.bf16.msra.mxu0 0
    %2307 = vmatprep.subr.bf16.mxu0 0
    %2308 = vmatpush2.bf16.msra.mxu0 0
    %2309 = vmatprep.subr.bf16.mxu0 0
    %2310 = vmatpush2.bf16.msra.mxu0 0
    %2311 = vmatprep.subr.bf16.mxu0 0
    %2312 = vmatpush2.bf16.msra.mxu0 0
    %2313 = vmatprep.subr.bf16.mxu0 0
    %2314 = vmatpush2.bf16.msra.mxu0 0
    %2315 = vmatprep.mubr.bf16.mxu0 0
    %2316 = vmatmul.mubr.bf16.gmra.mxu0 %v2241
    %v2317 = vpop.f32.mrf.mxu0
    %v2318 = vadd.f32 0.0, %v2317
    %v2319 = vpop.f32.mrf.mxu0
    %v2320 = vadd.f32 0.0, %v2319
    %v2321 = vpop.f32.mrf.mxu0
    %v2322 = vpop.f32.mrf.mxu0
    %2323 = vdwg.mxu0
    %2324 = vmatprep.subr.bf16.mxu0 %v813
    %2325 = vmatpush1.bf16.msra.mxu0 %v812
    %2326 = vmatprep.subr.bf16.mxu0 %v807
    %2327 = vmatpush1.bf16.msra.mxu0 %v806
    %2328 = vmatprep.subr.bf16.mxu0 %v801
    %2329 = vmatpush1.bf16.msra.mxu0 %v800
    %2330 = vmatprep.subr.bf16.mxu0 %v795
    %2331 = vmatpush1.bf16.msra.mxu0 %v794
    %2332 = vmatprep.subr.bf16.mxu0 %v789
    %2333 = vmatpush1.bf16.msra.mxu0 %v788
    %2334 = vmatprep.subr.bf16.mxu0 %v783
    %2335 = vmatpush1.bf16.msra.mxu0 %v782
    %2336 = vmatprep.subr.bf16.mxu0 %v777
    %2337 = vmatpush1.bf16.msra.mxu0 %v776
    %2338 = vmatprep.subr.bf16.mxu0 %v771
    %2339 = vmatpush1.bf16.msra.mxu0 %v770
    %2340 = vmatprep.subr.bf16.mxu0 0
    %2341 = vmatpush2.bf16.msra.mxu0 0
    %2342 = vmatprep.subr.bf16.mxu0 0
    %2343 = vmatpush2.bf16.msra.mxu0 0
    %2344 = vmatprep.subr.bf16.mxu0 0
    %2345 = vmatpush2.bf16.msra.mxu0 0
    %2346 = vmatprep.subr.bf16.mxu0 0
    %2347 = vmatpush2.bf16.msra.mxu0 0
    %2348 = vmatprep.subr.bf16.mxu0 0
    %2349 = vmatpush2.bf16.msra.mxu0 0
    %2350 = vmatprep.subr.bf16.mxu0 0
    %2351 = vmatpush2.bf16.msra.mxu0 0
    %2352 = vmatprep.subr.bf16.mxu0 0
    %2353 = vmatpush2.bf16.msra.mxu0 0
    %2354 = vmatprep.subr.bf16.mxu0 0
    %2355 = vmatpush2.bf16.msra.mxu0 0
    %2356 = vmatprep.mubr.bf16.mxu0 0
    %2357 = vmatmul.mubr.bf16.gmra.mxu0 %v2241
    %v2358 = vpop.f32.mrf.mxu0
    %v2359 = vadd.f32 0.0, %v2358
    %v2360 = vpop.f32.mrf.mxu0
    %v2361 = vadd.f32 0.0, %v2360
    %v2362 = vpop.f32.mrf.mxu0
    %v2363 = vpop.f32.mrf.mxu0
    %2364 = vdwg.mxu0
    %v2365 = vadd.f32 %v2320, %v989
    %v2366 = vadd.f32 %v2359, %v993
    %v2367 = vadd.f32 %v2361, %v997
    %v2368 = vadd.f32 %v2365, %v2175
    %v2369 = vmul.f32 %v2368, 0.5
    %v2370 = vtanh.pop %v2369
    %v2371 = vmul.f32 %v2370, 0.5
    %v2372 = vadd.f32 %v2371, 0.5
    %v2373 = vadd.f32 %v2366, %v2177
    %v2374 = vmul.f32 %v2373, 0.5
    %v2375 = vtanh.pop %v2374
    %v2376 = vmul.f32 %v2375, 0.5
    %v2377 = vadd.f32 %v2376, 0.5
    %v2378 = vadd.f32 %v2216, %v1018
    %v2379 = vmul.f32 %v2372, %v2378
    %v2380 = vadd.f32 %v2367, %v2379
    %v2381 = vtanh.pop %v2380
    %v2382 = vsub.f32 %v2138, %v2381
    %v2383 = vmul.f32 %v2377, %v2382
    %v2384 = vadd.f32 %v2381, %v2383
    %v2385 = vpack.c.bf16 %v2384, %v2384
    %2386 = vmatprep.subr.bf16.mxu0 %v1130
    %2387 = vmatpush1.bf16.msra.mxu0 %v1129
    %2388 = vmatprep.subr.bf16.mxu0 %v1127
    %2389 = vmatpush1.bf16.msra.mxu0 %v1126
    %2390 = vmatprep.subr.bf16.mxu0 %v1124
    %2391 = vmatpush1.bf16.msra.mxu0 %v1123
    %2392 = vmatprep.subr.bf16.mxu0 %v1121
    %2393 = vmatpush1.bf16.msra.mxu0 %v1120
    %2394 = vmatprep.subr.bf16.mxu0 %v1118
    %2395 = vmatpush1.bf16.msra.mxu0 %v1117
    %2396 = vmatprep.subr.bf16.mxu0 %v1115
    %2397 = vmatpush1.bf16.msra.mxu0 %v1114
    %2398 = vmatprep.subr.bf16.mxu0 %v1112
    %2399 = vmatpush1.bf16.msra.mxu0 %v1111
    %2400 = vmatprep.subr.bf16.mxu0 %v1109
    %2401 = vmatpush1.bf16.msra.mxu0 %v1108
    %2402 = vmatprep.subr.bf16.mxu0 0
    %2403 = vmatpush2.bf16.msra.mxu0 0
    %2404 = vmatprep.subr.bf16.mxu0 0
    %2405 = vmatpush2.bf16.msra.mxu0 0
    %2406 = vmatprep.subr.bf16.mxu0 0
    %2407 = vmatpush2.bf16.msra.mxu0 0
    %2408 = vmatprep.subr.bf16.mxu0 0
    %2409 = vmatpush2.bf16.msra.mxu0 0
    %2410 = vmatprep.subr.bf16.mxu0 0
    %2411 = vmatpush2.bf16.msra.mxu0 0
    %2412 = vmatprep.subr.bf16.mxu0 0
    %2413 = vmatpush2.bf16.msra.mxu0 0
    %2414 = vmatprep.subr.bf16.mxu0 0
    %2415 = vmatpush2.bf16.msra.mxu0 0
    %2416 = vmatprep.subr.bf16.mxu0 0
    %2417 = vmatpush2.bf16.msra.mxu0 0
    %2418 = vmatprep.mubr.bf16.mxu0 0
    %2419 = vmatmul.mubr.bf16.gmra.mxu0 %v2385
    %v2420 = vpop.f32.mrf.mxu0
    %v2421 = vadd.f32 0.0, %v2420
    %v2422 = vpop.f32.mrf.mxu0
    %v2423 = vadd.f32 0.0, %v2422
    %v2424 = vpop.f32.mrf.mxu0
    %v2425 = vpop.f32.mrf.mxu0
    %2426 = vdwg.mxu0
    %2427 = vmatprep.subr.bf16.mxu0 0
    %2428 = vmatpush1.bf16.msra.mxu0 %v1131
    %2429 = vmatprep.subr.bf16.mxu0 0
    %2430 = vmatpush1.bf16.msra.mxu0 %v1128
    %2431 = vmatprep.subr.bf16.mxu0 0
    %2432 = vmatpush1.bf16.msra.mxu0 %v1125
    %2433 = vmatprep.subr.bf16.mxu0 0
    %2434 = vmatpush1.bf16.msra.mxu0 %v1122
    %2435 = vmatprep.subr.bf16.mxu0 0
    %2436 = vmatpush1.bf16.msra.mxu0 %v1119
    %2437 = vmatprep.subr.bf16.mxu0 0
    %2438 = vmatpush1.bf16.msra.mxu0 %v1116
    %2439 = vmatprep.subr.bf16.mxu0 0
    %2440 = vmatpush1.bf16.msra.mxu0 %v1113
    %2441 = vmatprep.subr.bf16.mxu0 0
    %2442 = vmatpush1.bf16.msra.mxu0 %v1110
    %2443 = vmatprep.subr.bf16.mxu0 0
    %2444 = vmatpush2.bf16.msra.mxu0 0
    %2445 = vmatprep.subr.bf16.mxu0 0
    %2446 = vmatpush2.bf16.msra.mxu0 0
    %2447 = vmatprep.subr.bf16.mxu0 0
    %2448 = vmatpush2.bf16.msra.mxu0 0
    %2449 = vmatprep.subr.bf16.mxu0 0
    %2450 = vmatpush2.bf16.msra.mxu0 0
    %2451 = vmatprep.subr.bf16.mxu0 0
    %2452 = vmatpush2.bf16.msra.mxu0 0
    %2453 = vmatprep.subr.bf16.mxu0 0
    %2454 = vmatpush2.bf16.msra.mxu0 0
    %2455 = vmatprep.subr.bf16.mxu0 0
    %2456 = vmatpush2.bf16.msra.mxu0 0
    %2457 = vmatprep.subr.bf16.mxu0 0
    %2458 = vmatpush2.bf16.msra.mxu0 0
    %2459 = vmatprep.mubr.bf16.mxu0 0
    %2460 = vmatmul.mubr.bf16.gmra.mxu0 %v2385
    %v2461 = vpop.f32.mrf.mxu0
    %v2462 = vadd.f32 0.0, %v2461
    %v2463 = vpop.f32.mrf.mxu0
    %v2464 = vpop.f32.mrf.mxu0
    %v2465 = vpop.f32.mrf.mxu0
    %2466 = vdwg.mxu0
    %v2467 = vld [vmem:[#allocation2 + $0x90] sm:$0xff]
    %v2468 = vld [vmem:[#allocation2 + $0x98] sm:$0xff]
    %v2469 = vld [vmem:[#allocation2 + $0xa0] sm:$0xff]
    %v2470 = vadd.f32 %v2467, %v2277
    %v2471 = vmul.f32 %v2470, 0.5
    %v2472 = vtanh.pop %v2471
    %v2473 = vmul.f32 %v2472, 0.5
    %v2474 = vadd.f32 %v2473, 0.5
    %v2475 = vadd.f32 %v2468, %v2279
    %v2476 = vmul.f32 %v2475, 0.5
    %v2477 = vtanh.pop %v2476
    %v2478 = vmul.f32 %v2477, 0.5
    %v2479 = vadd.f32 %v2478, 0.5
    %v2480 = vadd.f32 %v2318, %v612
    %v2481 = vmul.f32 %v2474, %v2480
    %v2482 = vadd.f32 %v2469, %v2481
    %v2483 = vtanh.pop %v2482
    %v2484 = vsub.f32 %v2240, %v2483
    %v2485 = vmul.f32 %v2479, %v2484
    %v2486 = vadd.f32 %v2483, %v2485
    %v2487 = vpack.c.bf16 %v2486, %v2486
    %2488 = vmatprep.subr.bf16.mxu0 %v809
    %2489 = vmatpush1.bf16.msra.mxu0 %v808
    %2490 = vmatprep.subr.bf16.mxu0 %v803
    %2491 = vmatpush1.bf16.msra.mxu0 %v802
    %2492 = vmatprep.subr.bf16.mxu0 %v797
    %2493 = vmatpush1.bf16.msra.mxu0 %v796
    %2494 = vmatprep.subr.bf16.mxu0 %v791
    %2495 = vmatpush1.bf16.msra.mxu0 %v790
    %2496 = vmatprep.subr.bf16.mxu0 %v785
    %2497 = vmatpush1.bf16.msra.mxu0 %v784
    %2498 = vmatprep.subr.bf16.mxu0 %v779
    %2499 = vmatpush1.bf16.msra.mxu0 %v778
    %2500 = vmatprep.subr.bf16.mxu0 %v773
    %2501 = vmatpush1.bf16.msra.mxu0 %v772
    %2502 = vmatprep.subr.bf16.mxu0 %v767
    %2503 = vmatpush1.bf16.msra.mxu0 %v766
    %2504 = vmatprep.subr.bf16.mxu0 0
    %2505 = vmatpush2.bf16.msra.mxu0 0
    %2506 = vmatprep.subr.bf16.mxu0 0
    %2507 = vmatpush2.bf16.msra.mxu0 0
    %2508 = vmatprep.subr.bf16.mxu0 0
    %2509 = vmatpush2.bf16.msra.mxu0 0
    %2510 = vmatprep.subr.bf16.mxu0 0
    %2511 = vmatpush2.bf16.msra.mxu0 0
    %2512 = vmatprep.subr.bf16.mxu0 0
    %2513 = vmatpush2.bf16.msra.mxu0 0
    %2514 = vmatprep.subr.bf16.mxu0 0
    %2515 = vmatpush2.bf16.msra.mxu0 0
    %2516 = vmatprep.subr.bf16.mxu0 0
    %2517 = vmatpush2.bf16.msra.mxu0 0
    %2518 = vmatprep.subr.bf16.mxu0 0
    %2519 = vmatpush2.bf16.msra.mxu0 0
    %2520 = vmatprep.mubr.bf16.mxu0 0
    %2521 = vmatmul.mubr.bf16.gmra.mxu0 %v2487
    %v2522 = vpop.f32.mrf.mxu0
    %v2523 = vadd.f32 0.0, %v2522
    %v2524 = vpop.f32.mrf.mxu0
    %v2525 = vadd.f32 0.0, %v2524
    %v2526 = vpop.f32.mrf.mxu0
    %v2527 = vpop.f32.mrf.mxu0
    %2528 = vdwg.mxu0
    %2529 = vmatprep.subr.bf16.mxu0 %v811
    %2530 = vmatpush1.bf16.msra.mxu0 %v810
    %2531 = vmatprep.subr.bf16.mxu0 %v805
    %2532 = vmatpush1.bf16.msra.mxu0 %v804
    %2533 = vmatprep.subr.bf16.mxu0 %v799
    %2534 = vmatpush1.bf16.msra.mxu0 %v798
    %2535 = vmatprep.subr.bf16.mxu0 %v793
    %2536 = vmatpush1.bf16.msra.mxu0 %v792
    %2537 = vmatprep.subr.bf16.mxu0 %v787
    %2538 = vmatpush1.bf16.msra.mxu0 %v786
    %2539 = vmatprep.subr.bf16.mxu0 %v781
    %2540 = vmatpush1.bf16.msra.mxu0 %v780
    %2541 = vmatprep.subr.bf16.mxu0 %v775
    %2542 = vmatpush1.bf16.msra.mxu0 %v774
    %2543 = vmatprep.subr.bf16.mxu0 %v769
    %2544 = vmatpush1.bf16.msra.mxu0 %v768
    %2545 = vmatprep.subr.bf16.mxu0 0
    %2546 = vmatpush2.bf16.msra.mxu0 0
    %2547 = vmatprep.subr.bf16.mxu0 0
    %2548 = vmatpush2.bf16.msra.mxu0 0
    %2549 = vmatprep.subr.bf16.mxu0 0
    %2550 = vmatpush2.bf16.msra.mxu0 0
    %2551 = vmatprep.subr.bf16.mxu0 0
    %2552 = vmatpush2.bf16.msra.mxu0 0
    %2553 = vmatprep.subr.bf16.mxu0 0
    %2554 = vmatpush2.bf16.msra.mxu0 0
    %2555 = vmatprep.subr.bf16.mxu0 0
    %2556 = vmatpush2.bf16.msra.mxu0 0
    %2557 = vmatprep.subr.bf16.mxu0 0
    %2558 = vmatpush2.bf16.msra.mxu0 0
    %2559 = vmatprep.subr.bf16.mxu0 0
    %2560 = vmatpush2.bf16.msra.mxu0 0
    %2561 = vmatprep.mubr.bf16.mxu0 0
    %2562 = vmatmul.mubr.bf16.gmra.mxu0 %v2487
    %v2563 = vpop.f32.mrf.mxu0
    %v2564 = vadd.f32 0.0, %v2563
    %v2565 = vpop.f32.mrf.mxu0
    %v2566 = vadd.f32 0.0, %v2565
    %v2567 = vpop.f32.mrf.mxu0
    %v2568 = vpop.f32.mrf.mxu0
    %2569 = vdwg.mxu0
    %2570 = vmatprep.subr.bf16.mxu0 %v813
    %2571 = vmatpush1.bf16.msra.mxu0 %v812
    %2572 = vmatprep.subr.bf16.mxu0 %v807
    %2573 = vmatpush1.bf16.msra.mxu0 %v806
    %2574 = vmatprep.subr.bf16.mxu0 %v801
    %2575 = vmatpush1.bf16.msra.mxu0 %v800
    %2576 = vmatprep.subr.bf16.mxu0 %v795
    %2577 = vmatpush1.bf16.msra.mxu0 %v794
    %2578 = vmatprep.subr.bf16.mxu0 %v789
    %2579 = vmatpush1.bf16.msra.mxu0 %v788
    %2580 = vmatprep.subr.bf16.mxu0 %v783
    %2581 = vmatpush1.bf16.msra.mxu0 %v782
    %2582 = vmatprep.subr.bf16.mxu0 %v777
    %2583 = vmatpush1.bf16.msra.mxu0 %v776
    %2584 = vmatprep.subr.bf16.mxu0 %v771
    %2585 = vmatpush1.bf16.msra.mxu0 %v770
    %2586 = vmatprep.subr.bf16.mxu0 0
    %2587 = vmatpush2.bf16.msra.mxu0 0
    %2588 = vmatprep.subr.bf16.mxu0 0
    %2589 = vmatpush2.bf16.msra.mxu0 0
    %2590 = vmatprep.subr.bf16.mxu0 0
    %2591 = vmatpush2.bf16.msra.mxu0 0
    %2592 = vmatprep.subr.bf16.mxu0 0
    %2593 = vmatpush2.bf16.msra.mxu0 0
    %2594 = vmatprep.subr.bf16.mxu0 0
    %2595 = vmatpush2.bf16.msra.mxu0 0
    %2596 = vmatprep.subr.bf16.mxu0 0
    %2597 = vmatpush2.bf16.msra.mxu0 0
    %2598 = vmatprep.subr.bf16.mxu0 0
    %2599 = vmatpush2.bf16.msra.mxu0 0
    %2600 = vmatprep.subr.bf16.mxu0 0
    %2601 = vmatpush2.bf16.msra.mxu0 0
    %2602 = vmatprep.mubr.bf16.mxu0 0
    %2603 = vmatmul.mubr.bf16.gmra.mxu0 %v2487
    %v2604 = vpop.f32.mrf.mxu0
    %v2605 = vadd.f32 0.0, %v2604
    %v2606 = vpop.f32.mrf.mxu0
    %v2607 = vadd.f32 0.0, %v2606
    %v2608 = vpop.f32.mrf.mxu0
    %v2609 = vpop.f32.mrf.mxu0
    %2610 = vdwg.mxu0
    %v2611 = vadd.f32 %v2566, %v989
    %v2612 = vadd.f32 %v2605, %v993
    %v2613 = vadd.f32 %v2607, %v997
    %v2614 = vadd.f32 %v2611, %v2421
    %v2615 = vmul.f32 %v2614, 0.5
    %v2616 = vtanh.pop %v2615
    %v2617 = vmul.f32 %v2616, 0.5
    %v2618 = vadd.f32 %v2617, 0.5
    %v2619 = vadd.f32 %v2612, %v2423
    %v2620 = vmul.f32 %v2619, 0.5
    %v2621 = vtanh.pop %v2620
    %v2622 = vmul.f32 %v2621, 0.5
    %v2623 = vadd.f32 %v2622, 0.5
    %v2624 = vadd.f32 %v2462, %v1018
    %v2625 = vmul.f32 %v2618, %v2624
    %v2626 = vadd.f32 %v2613, %v2625
    %v2627 = vtanh.pop %v2626
    %v2628 = vsub.f32 %v2384, %v2627
    %v2629 = vmul.f32 %v2623, %v2628
    %v2630 = vadd.f32 %v2627, %v2629
    %v2631 = vpack.c.bf16 %v2630, %v2630
    %2632 = vmatprep.subr.bf16.mxu0 %v1130
    %2633 = vmatpush1.bf16.msra.mxu0 %v1129
    %2634 = vmatprep.subr.bf16.mxu0 %v1127
    %2635 = vmatpush1.bf16.msra.mxu0 %v1126
    %2636 = vmatprep.subr.bf16.mxu0 %v1124
    %2637 = vmatpush1.bf16.msra.mxu0 %v1123
    %2638 = vmatprep.subr.bf16.mxu0 %v1121
    %2639 = vmatpush1.bf16.msra.mxu0 %v1120
    %2640 = vmatprep.subr.bf16.mxu0 %v1118
    %2641 = vmatpush1.bf16.msra.mxu0 %v1117
    %2642 = vmatprep.subr.bf16.mxu0 %v1115
    %2643 = vmatpush1.bf16.msra.mxu0 %v1114
    %2644 = vmatprep.subr.bf16.mxu0 %v1112
    %2645 = vmatpush1.bf16.msra.mxu0 %v1111
    %2646 = vmatprep.subr.bf16.mxu0 %v1109
    %2647 = vmatpush1.bf16.msra.mxu0 %v1108
    %2648 = vmatprep.subr.bf16.mxu0 0
    %2649 = vmatpush2.bf16.msra.mxu0 0
    %2650 = vmatprep.subr.bf16.mxu0 0
    %2651 = vmatpush2.bf16.msra.mxu0 0
    %2652 = vmatprep.subr.bf16.mxu0 0
    %2653 = vmatpush2.bf16.msra.mxu0 0
    %2654 = vmatprep.subr.bf16.mxu0 0
    %2655 = vmatpush2.bf16.msra.mxu0 0
    %2656 = vmatprep.subr.bf16.mxu0 0
    %2657 = vmatpush2.bf16.msra.mxu0 0
    %2658 = vmatprep.subr.bf16.mxu0 0
    %2659 = vmatpush2.bf16.msra.mxu0 0
    %2660 = vmatprep.subr.bf16.mxu0 0
    %2661 = vmatpush2.bf16.msra.mxu0 0
    %2662 = vmatprep.subr.bf16.mxu0 0
    %2663 = vmatpush2.bf16.msra.mxu0 0
    %2664 = vmatprep.mubr.bf16.mxu0 0
    %2665 = vmatmul.mubr.bf16.gmra.mxu0 %v2631
    %v2666 = vpop.f32.mrf.mxu0
    %v2667 = vadd.f32 0.0, %v2666
    %v2668 = vpop.f32.mrf.mxu0
    %v2669 = vadd.f32 0.0, %v2668
    %v2670 = vpop.f32.mrf.mxu0
    %v2671 = vpop.f32.mrf.mxu0
    %2672 = vdwg.mxu0
    %2673 = vmatprep.subr.bf16.mxu0 0
    %2674 = vmatpush1.bf16.msra.mxu0 %v1131
    %2675 = vmatprep.subr.bf16.mxu0 0
    %2676 = vmatpush1.bf16.msra.mxu0 %v1128
    %2677 = vmatprep.subr.bf16.mxu0 0
    %2678 = vmatpush1.bf16.msra.mxu0 %v1125
    %2679 = vmatprep.subr.bf16.mxu0 0
    %2680 = vmatpush1.bf16.msra.mxu0 %v1122
    %2681 = vmatprep.subr.bf16.mxu0 0
    %2682 = vmatpush1.bf16.msra.mxu0 %v1119
    %2683 = vmatprep.subr.bf16.mxu0 0
    %2684 = vmatpush1.bf16.msra.mxu0 %v1116
    %2685 = vmatprep.subr.bf16.mxu0 0
    %2686 = vmatpush1.bf16.msra.mxu0 %v1113
    %2687 = vmatprep.subr.bf16.mxu0 0
    %2688 = vmatpush1.bf16.msra.mxu0 %v1110
    %2689 = vmatprep.subr.bf16.mxu0 0
    %2690 = vmatpush2.bf16.msra.mxu0 0
    %2691 = vmatprep.subr.bf16.mxu0 0
    %2692 = vmatpush2.bf16.msra.mxu0 0
    %2693 = vmatprep.subr.bf16.mxu0 0
    %2694 = vmatpush2.bf16.msra.mxu0 0
    %2695 = vmatprep.subr.bf16.mxu0 0
    %2696 = vmatpush2.bf16.msra.mxu0 0
    %2697 = vmatprep.subr.bf16.mxu0 0
    %2698 = vmatpush2.bf16.msra.mxu0 0
    %2699 = vmatprep.subr.bf16.mxu0 0
    %2700 = vmatpush2.bf16.msra.mxu0 0
    %2701 = vmatprep.subr.bf16.mxu0 0
    %2702 = vmatpush2.bf16.msra.mxu0 0
    %2703 = vmatprep.subr.bf16.mxu0 0
    %2704 = vmatpush2.bf16.msra.mxu0 0
    %2705 = vmatprep.mubr.bf16.mxu0 0
    %2706 = vmatmul.mubr.bf16.gmra.mxu0 %v2631
    %v2707 = vpop.f32.mrf.mxu0
    %v2708 = vadd.f32 0.0, %v2707
    %v2709 = vpop.f32.mrf.mxu0
    %v2710 = vpop.f32.mrf.mxu0
    %v2711 = vpop.f32.mrf.mxu0
    %2712 = vdwg.mxu0
    %v2713 = vld [vmem:[#allocation2 + $0xa8] sm:$0xff]
    %v2714 = vld [vmem:[#allocation2 + $0xb0] sm:$0xff]
    %v2715 = vld [vmem:[#allocation2 + $0xb8] sm:$0xff]
    %v2716 = vadd.f32 %v2713, %v2523
    %v2717 = vmul.f32 %v2716, 0.5
    %v2718 = vtanh.pop %v2717
    %v2719 = vmul.f32 %v2718, 0.5
    %v2720 = vadd.f32 %v2719, 0.5
    %v2721 = vadd.f32 %v2714, %v2525
    %v2722 = vmul.f32 %v2721, 0.5
    %v2723 = vtanh.pop %v2722
    %v2724 = vmul.f32 %v2723, 0.5
    %v2725 = vadd.f32 %v2724, 0.5
    %v2726 = vadd.f32 %v2564, %v612
    %v2727 = vmul.f32 %v2720, %v2726
    %v2728 = vadd.f32 %v2715, %v2727
    %v2729 = vtanh.pop %v2728
    %v2730 = vsub.f32 %v2486, %v2729
    %v2731 = vmul.f32 %v2725, %v2730
    %v2732 = vadd.f32 %v2729, %v2731
    %v2733 = vpack.c.bf16 %v2732, %v2732
    %2734 = vmatprep.subr.bf16.mxu0 %v812
    %2735 = vmatpush1.bf16.msra.mxu0 %v811
    %2736 = vmatprep.subr.bf16.mxu0 %v806
    %2737 = vmatpush1.bf16.msra.mxu0 %v805
    %2738 = vmatprep.subr.bf16.mxu0 %v800
    %2739 = vmatpush1.bf16.msra.mxu0 %v799
    %2740 = vmatprep.subr.bf16.mxu0 %v794
    %2741 = vmatpush1.bf16.msra.mxu0 %v793
    %2742 = vmatprep.subr.bf16.mxu0 %v788
    %2743 = vmatpush1.bf16.msra.mxu0 %v787
    %2744 = vmatprep.subr.bf16.mxu0 %v782
    %2745 = vmatpush1.bf16.msra.mxu0 %v781
    %2746 = vmatprep.subr.bf16.mxu0 %v776
    %2747 = vmatpush1.bf16.msra.mxu0 %v775
    %2748 = vmatprep.subr.bf16.mxu0 %v770
    %2749 = vmatpush1.bf16.msra.mxu0 %v769
    %2750 = vmatprep.subr.bf16.mxu0 0
    %2751 = vmatpush2.bf16.msra.mxu0 0
    %2752 = vmatprep.subr.bf16.mxu0 0
    %2753 = vmatpush2.bf16.msra.mxu0 0
    %2754 = vmatprep.subr.bf16.mxu0 0
    %2755 = vmatpush2.bf16.msra.mxu0 0
    %2756 = vmatprep.subr.bf16.mxu0 0
    %2757 = vmatpush2.bf16.msra.mxu0 0
    %2758 = vmatprep.subr.bf16.mxu0 0
    %2759 = vmatpush2.bf16.msra.mxu0 0
    %2760 = vmatprep.subr.bf16.mxu0 0
    %2761 = vmatpush2.bf16.msra.mxu0 0
    %2762 = vmatprep.subr.bf16.mxu0 0
    %2763 = vmatpush2.bf16.msra.mxu0 0
    %2764 = vmatprep.subr.bf16.mxu0 0
    %2765 = vmatpush2.bf16.msra.mxu0 0
    %2766 = vmatprep.mubr.bf16.mxu0 0
    %2767 = vmatmul.mubr.bf16.gmra.mxu0 %v2733
    %v2768 = vpop.f32.mrf.mxu0
    %v2769 = vadd.f32 %v989, %v2768
    %v2770 = vpop.f32.mrf.mxu0
    %v2771 = vadd.f32 %v993, %v2770
    %v2772 = vpop.f32.mrf.mxu0
    %v2773 = vpop.f32.mrf.mxu0
    %2774 = vdwg.mxu0
    %2775 = vmatprep.subr.bf16.mxu0 0
    %2776 = vmatpush1.bf16.msra.mxu0 %v813
    %2777 = vmatprep.subr.bf16.mxu0 0
    %2778 = vmatpush1.bf16.msra.mxu0 %v807
    %2779 = vmatprep.subr.bf16.mxu0 0
    %2780 = vmatpush1.bf16.msra.mxu0 %v801
    %2781 = vmatprep.subr.bf16.mxu0 0
    %2782 = vmatpush1.bf16.msra.mxu0 %v795
    %2783 = vmatprep.subr.bf16.mxu0 0
    %2784 = vmatpush1.bf16.msra.mxu0 %v789
    %2785 = vmatprep.subr.bf16.mxu0 0
    %2786 = vmatpush1.bf16.msra.mxu0 %v783
    %2787 = vmatprep.subr.bf16.mxu0 0
    %2788 = vmatpush1.bf16.msra.mxu0 %v777
    %2789 = vmatprep.subr.bf16.mxu0 0
    %2790 = vmatpush1.bf16.msra.mxu0 %v771
    %2791 = vmatprep.subr.bf16.mxu0 0
    %2792 = vmatpush2.bf16.msra.mxu0 0
    %2793 = vmatprep.subr.bf16.mxu0 0
    %2794 = vmatpush2.bf16.msra.mxu0 0
    %2795 = vmatprep.subr.bf16.mxu0 0
    %2796 = vmatpush2.bf16.msra.mxu0 0
    %2797 = vmatprep.subr.bf16.mxu0 0
    %2798 = vmatpush2.bf16.msra.mxu0 0
    %2799 = vmatprep.subr.bf16.mxu0 0
    %2800 = vmatpush2.bf16.msra.mxu0 0
    %2801 = vmatprep.subr.bf16.mxu0 0
    %2802 = vmatpush2.bf16.msra.mxu0 0
    %2803 = vmatprep.subr.bf16.mxu0 0
    %2804 = vmatpush2.bf16.msra.mxu0 0
    %2805 = vmatprep.subr.bf16.mxu0 0
    %2806 = vmatpush2.bf16.msra.mxu0 0
    %2807 = vmatprep.mubr.bf16.mxu0 0
    %2808 = vmatmul.mubr.bf16.gmra.mxu0 %v2733
    %v2809 = vpop.f32.mrf.mxu0
    %v2810 = vadd.f32 %v997, %v2809
    %v2811 = vpop.f32.mrf.mxu0
    %v2812 = vpop.f32.mrf.mxu0
    %v2813 = vpop.f32.mrf.mxu0
    %2814 = vdwg.mxu0
    %v2815 = vadd.f32 %v2769, %v2667
    %v2816 = vmul.f32 %v2815, 0.5
    %v2817 = vtanh.pop %v2816
    %v2818 = vmul.f32 %v2817, 0.5
    %v2819 = vadd.f32 %v2818, 0.5
    %v2820 = vadd.f32 %v2771, %v2669
    %v2821 = vmul.f32 %v2820, 0.5
    %v2822 = vtanh.pop %v2821
    %v2823 = vmul.f32 %v2822, 0.5
    %v2824 = vadd.f32 %v2823, 0.5
    %v2825 = vadd.f32 %v2708, %v1018
    %v2826 = vmul.f32 %v2819, %v2825
    %v2827 = vadd.f32 %v2810, %v2826
    %v2828 = vtanh.pop %v2827
    %v2829 = vsub.f32 %v2630, %v2828
    %v2830 = vmul.f32 %v2824, %v2829
    %v2831 = vadd.f32 %v2828, %v2830
    %s2832 = smul.u32 8, 18
    %s2833 = smul.u32 %s2832, 2
    %s2834 = sshll.u32 %s2833, 4
    %2835 = dma.done [#allocation5], %s2834
    %s2836 = smul.u32 264, 1
    %s2837 = sshll.u32 %s2836, 4
    %2838 = dma.done %s75, %s2837
    %v2839 = vld [vmem:[#allocation3] sm:$0xff]
    %v2840 = vld [vmem:[#allocation3 + $0x8] sm:$0xff]
    %v2841 = vld [vmem:[#allocation3 + $0x10] sm:$0xff]
    %v2842 = vld [vmem:[#allocation3 + $0x18] sm:$0xff]
    %v2843 = vld [vmem:[#allocation3 + $0x20] sm:$0xff]
    %v2844 = vld [vmem:[#allocation3 + $0x28] sm:$0xff]
    %v2845 = vld [vmem:[#allocation3 + $0x30] sm:$0xff]
    %v2846 = vld [vmem:[#allocation3 + $0x38] sm:$0xff]
    %v2847 = vld [vmem:[#allocation3 + $0x40] sm:$0xff]
    %v2848 = vld [vmem:[#allocation3 + $0x48] sm:$0xff]
    %v2849 = vld [vmem:[#allocation3 + $0x50] sm:$0xff]
    %v2850 = vld [vmem:[#allocation3 + $0x58] sm:$0xff]
    %v2851 = vld [vmem:[#allocation3 + $0x60] sm:$0xff]
    %v2852 = vld [vmem:[#allocation3 + $0x68] sm:$0xff]
    %v2853 = vld [vmem:[#allocation3 + $0x70] sm:$0xff]
    %v2854 = vld [vmem:[#allocation3 + $0x78] sm:$0xff]
    %v2855 = vld [vmem:[#allocation3 + $0x80] sm:$0xff]
    %v2856 = vld [vmem:[#allocation3 + $0x88] sm:$0xff]
    %v2857 = vld [vmem:[#allocation3 + $0x90] sm:$0xff]
    %v2858 = vld [vmem:[#allocation3 + $0x98] sm:$0xff]
    %v2859 = vld [vmem:[#allocation3 + $0xa0] sm:$0xff]
    %v2860 = vld [vmem:[#allocation3 + $0xa8] sm:$0xff]
    %v2861 = vld [vmem:[#allocation3 + $0xb0] sm:$0xff]
    %v2862 = vld [vmem:[#allocation3 + $0xb8] sm:$0xff]
    %v2863 = vld [vmem:[#allocation3 + $0xc0] sm:$0xff]
    %v2864 = vld [vmem:[#allocation3 + $0xc8] sm:$0xff]
    %v2865 = vld [vmem:[#allocation3 + $0xd0] sm:$0xff]
    %v2866 = vld [vmem:[#allocation3 + $0xd8] sm:$0xff]
    %v2867 = vld [vmem:[#allocation3 + $0xe0] sm:$0xff]
    %v2868 = vld [vmem:[#allocation3 + $0xe8] sm:$0xff]
    %v2869 = vld [vmem:[#allocation3 + $0xf0] sm:$0xff]
    %v2870 = vld [vmem:[#allocation3 + $0xf8] sm:$0xff]
    %s2871 = scalar_lea.vmem [#allocation3], 256
    %v2872 = vld [vmem:[%s2871] ss:$8 sm:$0x3]
    %s2873 = scalar_lea.vmem [#allocation3], 272
    %v2874 = vld [vmem:[%s2873] ss:$8 sm:$0x3]
    %v2875 = vld [vmem:[%s1] sm:$0xff]
    %2877 = vset.pattern.permute.xlu0 0
    %2878 = vperm.xlu0 %2877, %v2875
    %v2879 = vpop.permute.xlu0 %2878
    %v2882 = vlaneseq
    %v2883 = vshrl.u32 %v2882, 7
    %v2884 = vsub.s32 0, %v2883
    %v2885 = vrot.slane %v2872, %v2884
    %v2886 = vlaneseq
    %v2887 = vshrl.u32 %v2886, 7
    %v2888 = vsub.s32 1, %v2887
    %v2889 = vrot.slane %v2872, %v2888
    %v2892 = vmul.f32 %v2879, %v2885
    %v2893 = vmul.f32 %v2879, %v2889
    %2894 = vmatprep.subr.mxu0 %v2870
    %2895 = vmatpush1.msra.mxu0 %v2869
    %2896 = vmatprep.subr.mxu0 %v2868
    %2897 = vmatpush1.msra.mxu0 %v2867
    %2898 = vmatprep.subr.mxu0 %v2866
    %2899 = vmatpush1.msra.mxu0 %v2865
    %2900 = vmatprep.subr.mxu0 %v2864
    %2901 = vmatpush1.msra.mxu0 %v2863
    %2902 = vmatprep.subr.mxu0 %v2862
    %2903 = vmatpush1.msra.mxu0 %v2861
    %2904 = vmatprep.subr.mxu0 %v2860
    %2905 = vmatpush1.msra.mxu0 %v2859
    %2906 = vmatprep.subr.mxu0 %v2858
    %2907 = vmatpush1.msra.mxu0 %v2857
    %2908 = vmatprep.subr.mxu0 %v2856
    %2909 = vmatpush1.msra.mxu0 %v2855
    %2910 = vmatprep.subr.mxu0 %v2854
    %2911 = vmatpush1.msra.mxu0 %v2853
    %2912 = vmatprep.subr.mxu0 %v2852
    %2913 = vmatpush1.msra.mxu0 %v2851
    %2914 = vmatprep.subr.mxu0 %v2850
    %2915 = vmatpush1.msra.mxu0 %v2849
    %2916 = vmatprep.subr.mxu0 %v2848
    %2917 = vmatpush1.msra.mxu0 %v2847
    %2918 = vmatprep.subr.mxu0 %v2846
    %2919 = vmatpush1.msra.mxu0 %v2845
    %2920 = vmatprep.subr.mxu0 %v2844
    %2921 = vmatpush1.msra.mxu0 %v2843
    %2922 = vmatprep.subr.mxu0 %v2842
    %2923 = vmatpush1.msra.mxu0 %v2841
    %2924 = vmatprep.subr.mxu0 %v2840
    %2925 = vmatpush1.msra.mxu0 %v2839
    %2926 = vmatprep.subr.mxu0 0.0
    %2927 = vmatpush2.msra.mxu0 0.0
    %2928 = vmatprep.subr.mxu0 0.0
    %2929 = vmatpush2.msra.mxu0 0.0
    %2930 = vmatprep.subr.mxu0 0.0
    %2931 = vmatpush2.msra.mxu0 0.0
    %2932 = vmatprep.subr.mxu0 0.0
    %2933 = vmatpush2.msra.mxu0 0.0
    %2934 = vmatprep.subr.mxu0 0.0
    %2935 = vmatpush2.msra.mxu0 0.0
    %2936 = vmatprep.subr.mxu0 0.0
    %2937 = vmatpush2.msra.mxu0 0.0
    %2938 = vmatprep.subr.mxu0 0.0
    %2939 = vmatpush2.msra.mxu0 0.0
    %2940 = vmatprep.subr.mxu0 0.0
    %2941 = vmatpush2.msra.mxu0 0.0
    %2942 = vmatprep.subr.mxu0 0.0
    %2943 = vmatpush2.msra.mxu0 0.0
    %2944 = vmatprep.subr.mxu0 0.0
    %2945 = vmatpush2.msra.mxu0 0.0
    %2946 = vmatprep.subr.mxu0 0.0
    %2947 = vmatpush2.msra.mxu0 0.0
    %2948 = vmatprep.subr.mxu0 0.0
    %2949 = vmatpush2.msra.mxu0 0.0
    %2950 = vmatprep.subr.mxu0 0.0
    %2951 = vmatpush2.msra.mxu0 0.0
    %2952 = vmatprep.subr.mxu0 0.0
    %2953 = vmatpush2.msra.mxu0 0.0
    %2954 = vmatprep.subr.mxu0 0.0
    %2955 = vmatpush2.msra.mxu0 0.0
    %2956 = vmatprep.subr.mxu0 0.0
    %2957 = vmatpush2.msra.mxu0 0.0
    %2958 = vmatprep.mubr.f32.mxu0 0.0
    %2959 = vmatmul.mubr.f32.gmra.mxu0 %v2831
    %v2960 = vpop.f32.mrf.mxu0
    %v2961 = vadd.f32 %v2892, %v2960
    %v2962 = vpop.f32.mrf.mxu0
    %v2963 = vadd.f32 %v2893, %v2962
    %2964 = vdwg.mxu0
    %v2966 = vlaneseq
    %v2967 = vshrl.u32 %v2966, 7
    %v2968 = vsub.s32 0, %v2967
    %v2969 = vrot.slane %v2874, %v2968
    %v2970 = vlaneseq
    %v2971 = vshrl.u32 %v2970, 7
    %v2972 = vsub.s32 1, %v2971
    %v2973 = vrot.slane %v2874, %v2972
    %v2976 = vadd.f32 %v2961, %v2969
    %v2977 = vadd.f32 %v2963, %v2973
    %v2978 = vmax.f32 %v2976, 0.0
    %v2979 = vmax.f32 %v2977, 0.0
    %v2980 = vld [vmem:[#allocation4] sm:$0xff]
    %v2981 = vld [vmem:[#allocation4 + $0x8] sm:$0xff]
    %v2982 = vld [vmem:[#allocation4 + $0x10] sm:$0xff]
    %v2983 = vld [vmem:[#allocation4 + $0x18] sm:$0xff]
    %v2984 = vld [vmem:[#allocation4 + $0x20] sm:$0xff]
    %v2985 = vld [vmem:[#allocation4 + $0x28] sm:$0xff]
    %v2986 = vld [vmem:[#allocation4 + $0x30] sm:$0xff]
    %v2987 = vld [vmem:[#allocation4 + $0x38] sm:$0xff]
    %v2988 = vld [vmem:[#allocation4 + $0x40] sm:$0xff]
    %v2989 = vld [vmem:[#allocation4 + $0x48] sm:$0xff]
    %v2990 = vld [vmem:[#allocation4 + $0x50] sm:$0xff]
    %v2991 = vld [vmem:[#allocation4 + $0x58] sm:$0xff]
    %v2992 = vld [vmem:[#allocation4 + $0x60] sm:$0xff]
    %v2993 = vld [vmem:[#allocation4 + $0x68] sm:$0xff]
    %v2994 = vld [vmem:[#allocation4 + $0x70] sm:$0xff]
    %v2995 = vld [vmem:[#allocation4 + $0x78] sm:$0xff]
    %v2996 = vld [vmem:[#allocation4 + $0x80] sm:$0xff]
    %v2997 = vld [vmem:[#allocation4 + $0x88] sm:$0xff]
    %v2998 = vld [vmem:[#allocation4 + $0x90] sm:$0xff]
    %v2999 = vld [vmem:[#allocation4 + $0x98] sm:$0xff]
    %v3000 = vld [vmem:[#allocation4 + $0xa0] sm:$0xff]
    %v3001 = vld [vmem:[#allocation4 + $0xa8] sm:$0xff]
    %v3002 = vld [vmem:[#allocation4 + $0xb0] sm:$0xff]
    %v3003 = vld [vmem:[#allocation4 + $0xb8] sm:$0xff]
    %v3004 = vld [vmem:[#allocation4 + $0xc0] sm:$0xff]
    %v3005 = vld [vmem:[#allocation4 + $0xc8] sm:$0xff]
    %v3006 = vld [vmem:[#allocation4 + $0xd0] sm:$0xff]
    %v3007 = vld [vmem:[#allocation4 + $0xd8] sm:$0xff]
    %v3008 = vld [vmem:[#allocation4 + $0xe0] sm:$0xff]
    %v3009 = vld [vmem:[#allocation4 + $0xe8] sm:$0xff]
    %v3010 = vld [vmem:[#allocation4 + $0xf0] sm:$0xff]
    %v3011 = vld [vmem:[#allocation4 + $0xf8] sm:$0xff]
    %v3012 = vld [vmem:[#allocation4 + $0x100] sm:$0x1]
    %v3013 = vlaneseq
    %v3014 = vshrl.u32 %v3013, 7
    %v3015 = vsub.s32 0, %v3014
    %v3016 = vrot.slane %v3012, %v3015
    %3017 = vmatprep.subr.mxu0 0.0
    %3018 = vmatpush1.msra.mxu0 %v2995
    %3019 = vmatprep.subr.mxu0 0.0
    %3020 = vmatpush1.msra.mxu0 %v2994
    %3021 = vmatprep.subr.mxu0 0.0
    %3022 = vmatpush1.msra.mxu0 %v2993
    %3023 = vmatprep.subr.mxu0 0.0
    %3024 = vmatpush1.msra.mxu0 %v2992
    %3025 = vmatprep.subr.mxu0 0.0
    %3026 = vmatpush1.msra.mxu0 %v2991
    %3027 = vmatprep.subr.mxu0 0.0
    %3028 = vmatpush1.msra.mxu0 %v2990
    %3029 = vmatprep.subr.mxu0 0.0
    %3030 = vmatpush1.msra.mxu0 %v2989
    %3031 = vmatprep.subr.mxu0 0.0
    %3032 = vmatpush1.msra.mxu0 %v2988
    %3033 = vmatprep.subr.mxu0 0.0
    %3034 = vmatpush1.msra.mxu0 %v2987
    %3035 = vmatprep.subr.mxu0 0.0
    %3036 = vmatpush1.msra.mxu0 %v2986
    %3037 = vmatprep.subr.mxu0 0.0
    %3038 = vmatpush1.msra.mxu0 %v2985
    %3039 = vmatprep.subr.mxu0 0.0
    %3040 = vmatpush1.msra.mxu0 %v2984
    %3041 = vmatprep.subr.mxu0 0.0
    %3042 = vmatpush1.msra.mxu0 %v2983
    %3043 = vmatprep.subr.mxu0 0.0
    %3044 = vmatpush1.msra.mxu0 %v2982
    %3045 = vmatprep.subr.mxu0 0.0
    %3046 = vmatpush1.msra.mxu0 %v2981
    %3047 = vmatprep.subr.mxu0 0.0
    %3048 = vmatpush1.msra.mxu0 %v2980
    %3049 = vmatprep.subr.mxu0 0.0
    %3050 = vmatpush2.msra.mxu0 %v3011
    %3051 = vmatprep.subr.mxu0 0.0
    %3052 = vmatpush2.msra.mxu0 %v3010
    %3053 = vmatprep.subr.mxu0 0.0
    %3054 = vmatpush2.msra.mxu0 %v3009
    %3055 = vmatprep.subr.mxu0 0.0
    %3056 = vmatpush2.msra.mxu0 %v3008
    %3057 = vmatprep.subr.mxu0 0.0
    %3058 = vmatpush2.msra.mxu0 %v3007
    %3059 = vmatprep.subr.mxu0 0.0
    %3060 = vmatpush2.msra.mxu0 %v3006
    %3061 = vmatprep.subr.mxu0 0.0
    %3062 = vmatpush2.msra.mxu0 %v3005
    %3063 = vmatprep.subr.mxu0 0.0
    %3064 = vmatpush2.msra.mxu0 %v3004
    %3065 = vmatprep.subr.mxu0 0.0
    %3066 = vmatpush2.msra.mxu0 %v3003
    %3067 = vmatprep.subr.mxu0 0.0
    %3068 = vmatpush2.msra.mxu0 %v3002
    %3069 = vmatprep.subr.mxu0 0.0
    %3070 = vmatpush2.msra.mxu0 %v3001
    %3071 = vmatprep.subr.mxu0 0.0
    %3072 = vmatpush2.msra.mxu0 %v3000
    %3073 = vmatprep.subr.mxu0 0.0
    %3074 = vmatpush2.msra.mxu0 %v2999
    %3075 = vmatprep.subr.mxu0 0.0
    %3076 = vmatpush2.msra.mxu0 %v2998
    %3077 = vmatprep.subr.mxu0 0.0
    %3078 = vmatpush2.msra.mxu0 %v2997
    %3079 = vmatprep.subr.mxu0 0.0
    %3080 = vmatpush2.msra.mxu0 %v2996
    %3081 = vmatprep.mubr.f32.mxu0 %v2979
    %3082 = vmatmul.mubr.f32.gmra.mxu0 %v2978
    %v3083 = vpop.f32.mrf.mxu0
    %v3084 = vadd.f32 %v3016, %v3083
    %v3085 = vpop.f32.mrf.mxu0
    %3086 = vdwg.mxu0
    %v3087 = vtanh.pop %v3084
    %3088 = vst [vmem:[#allocation11] sm:$0xff] %v3087
    // Predicated region
    $region54: #{tpu_custom_call.1} parent=1 // pred_check
      _
    $region55: #{tpu_custom_call.1} parent=1 // pred_check_branch
      %3090 = sbr.rel (0) target = $region57
    $region56: #{tpu_custom_call.1} parent=1 // pred_region
      %s3092 = ssub.s32 128, 128
      %3093 = vsyncadd [#allocation8], %s3092
      %s3095 = sshll.u32 [#allocation11], 4
      %s3096 = int_to_ptr.vmem [resolvable:$true] %s3095
      %3098 = dma.vmem_to_hbm [thread:$0]  %s3096, 128, %s11, [#allocation8]
    $region57: #{tpu_custom_call.1} parent=1 // pred_fallthru
      _
    // Predicated region
    $region58: #{tpu_custom_call.1} parent=1 // pred_check
      _
    $region59: #{tpu_custom_call.1} parent=1 // pred_check_branch
      %3100 = sbr.rel (0) target = $region61
    $region60: #{tpu_custom_call.1} parent=1 // pred_region
      %3101 = dma.done [#allocation8], 128
    $region61: #{tpu_custom_call.1} parent=1 // pred_fallthru
      _
    %3102 = vsyncpa [#allocation7], 1
    %3103 = vsyncpa [#allocation10], 1
    %3104 = vsyncpa [#allocation8], 1
  %3105 = vsyncmov [#allocation5]
  %s3106 = vpop.sfrf %3105
  %p3107 = scmp.eq.s32.totalorder %s3106, 0
  %p3108 = pneg %p3107
  %3110 = shalt.err (%p3108)
  %s3111 = scalar_lea.sflag [#allocation5], 1
  %3112 = vsyncmov %s3111
  %s3113 = vpop.sfrf %3112
  %p3114 = scmp.eq.s32.totalorder %s3113, 0
  %p3115 = pneg %p3114
  %3117 = shalt.err (%p3115)

</llo_original>
